<compile_context>
chip_gen: v7x
topology: tpu7x:2x2x1
jax: 0.10.0
libtpu: 0.0.40
codegen_flags: <defaults>
</compile_context>

<pallas_src>
import functools

import jax
import jax.numpy as jnp
from jax.experimental import pallas as pl
from jax.experimental.pallas import tpu as pltpu

EPS = 1e-5


def _bn_fold(gamma, beta, mean, var):
    inv = gamma / jnp.sqrt(var + EPS)
    return inv, beta - mean * inv


# ------------------------------ fused kernel ---------------------------------

def _bottleneck_kernel(*refs, H, W, Ho, Wo, stride, has_shortcut):
    if has_shortcut:
        (x_ref, w1_ref, s1_ref, b1_ref, w2_ref, s2_ref, b2_ref,
         w3_ref, s3_ref, b3_ref, ws_ref, ss_ref, bs_ref,
         o_ref, h1p_ref) = refs
    else:
        (x_ref, w1_ref, s1_ref, b1_ref, w2_ref, s2_ref, b2_ref,
         w3_ref, s3_ref, b3_ref, o_ref, h1p_ref) = refs

    f32 = jnp.float32
    cdt = h1p_ref.dtype          # matmul operand dtype (bf16 by default)
    planes = w1_ref.shape[1]

    # ---- conv1 (1x1) + bn1 + relu (f32 accumulate / epilogue) ---------------
    x2 = x_ref[0]                                          # (H*W, Cin), cdt
    h1 = jnp.dot(x2, w1_ref[...], preferred_element_type=f32)
    h1 = jnp.maximum(h1 * s1_ref[...] + b1_ref[...], 0.0)

    # ---- stage h1 into a zero-padded VMEM halo buffer (pad = 1) -------------
    h1p_ref[...] = jnp.zeros(h1p_ref.shape, h1p_ref.dtype)
    h1p_ref[1:H + 1, 1:W + 1, :] = h1.astype(cdt).reshape(H, W, planes)

    # ---- conv2 (3x3, stride) as 9 accumulated tap matmuls + bn2 + relu ------
    acc = jnp.zeros((Ho * Wo, planes), f32)
    for dy in range(3):                                    # statically unrolled
        for dx in range(3):
            reg = h1p_ref[dy:dy + (Ho - 1) * stride + 1,
                          dx:dx + (Wo - 1) * stride + 1, :]
            if stride > 1:
                reg = reg[::stride, ::stride, :]
            acc = acc + jnp.dot(reg.reshape(Ho * Wo, planes),
                                w2_ref[3 * dy + dx],
                                preferred_element_type=f32)
    h2 = jnp.maximum(acc * s2_ref[...] + b2_ref[...], 0.0).astype(cdt)

    # ---- conv3 (1x1) + bn3 ---------------------------------------------------
    main = jnp.dot(h2, w3_ref[...], preferred_element_type=f32)
    main = main * s3_ref[...] + b3_ref[...]

    # ---- shortcut (1x1 conv + bn, or identity), add, final relu -------------
    if stride > 1:
        cin = x2.shape[-1]
        xs = x2.reshape(H, W, cin)[::stride, ::stride, :].reshape(Ho * Wo, cin)
    else:
        xs = x2
    if has_shortcut:
        sc = jnp.dot(xs, ws_ref[...], preferred_element_type=f32)
        sc = sc * ss_ref[...] + bs_ref[...]
    else:
        sc = xs.astype(f32)

    o_ref[0] = jnp.maximum(main + sc, 0.0).astype(o_ref.dtype)


# --------------------------- forward (wrapper) --------------------------------

def bottleneck_forward(x_nchw, params, stride=1, compute_dtype=jnp.bfloat16):
    N, Cin, H, W = x_nchw.shape
    planes = params["w1"].shape[0]
    exp = params["w3"].shape[0]
    Ho = (H - 1) // stride + 1
    Wo = (W - 1) // stride + 1
    cdt = compute_dtype

    # NCHW -> NHWC -> (N, H*W, Cin); layout glue only, no compute.
    xh = jnp.transpose(x_nchw, (0, 2, 3, 1)).reshape(N, H * W, Cin).astype(cdt)

    s1, b1 = _bn_fold(*params["bn1"])
    s2, b2 = _bn_fold(*params["bn2"])
    s3, b3 = _bn_fold(*params["bn3"])

    w1 = params["w1"].reshape(planes, Cin).T.astype(cdt)               # (Cin, P)
    w2 = jnp.transpose(params["w2"], (2, 3, 1, 0)).reshape(9, planes, planes)
    w2 = w2.astype(cdt)                                                # (9, P, P)
    w3 = params["w3"].reshape(exp, planes).T.astype(cdt)               # (P, E)

    has_shortcut = "ws" in params

    inputs = [xh,
              w1, s1.reshape(1, planes), b1.reshape(1, planes),
              w2, s2.reshape(1, planes), b2.reshape(1, planes),
              w3, s3.reshape(1, exp), b3.reshape(1, exp)]
    in_specs = [
        pl.BlockSpec((1, H * W, Cin), lambda n: (n, 0, 0)),
        pl.BlockSpec((Cin, planes), lambda n: (0, 0)),
        pl.BlockSpec((1, planes), lambda n: (0, 0)),
        pl.BlockSpec((1, planes), lambda n: (0, 0)),
        pl.BlockSpec((9, planes, planes), lambda n: (0, 0, 0)),
        pl.BlockSpec((1, planes), lambda n: (0, 0)),
        pl.BlockSpec((1, planes), lambda n: (0, 0)),
        pl.BlockSpec((planes, exp), lambda n: (0, 0)),
        pl.BlockSpec((1, exp), lambda n: (0, 0)),
        pl.BlockSpec((1, exp), lambda n: (0, 0)),
    ]

    flops = 2 * N * (H * W * Cin * planes
                     + Ho * Wo * (9 * planes * planes + planes * exp))
    if has_shortcut:
        ws = params["ws"].reshape(exp, Cin).T.astype(cdt)              # (Cin, E)
        ss, bs = _bn_fold(*params["bns"])
        inputs += [ws, ss.reshape(1, exp), bs.reshape(1, exp)]
        in_specs += [
            pl.BlockSpec((Cin, exp), lambda n: (0, 0)),
            pl.BlockSpec((1, exp), lambda n: (0, 0)),
            pl.BlockSpec((1, exp), lambda n: (0, 0)),
        ]
        flops += 2 * N * Ho * Wo * Cin * exp

    bytes_accessed = int(sum(a.size * a.dtype.itemsize for a in inputs)
                         + N * Ho * Wo * exp * 4)

    kernel = functools.partial(_bottleneck_kernel, H=H, W=W, Ho=Ho, Wo=Wo,
                               stride=stride, has_shortcut=has_shortcut)

    out = pl.pallas_call(
        kernel,
        out_shape=jax.ShapeDtypeStruct((N, Ho * Wo, exp), jnp.float32),
        grid=(N,),
        in_specs=in_specs,
        out_specs=pl.BlockSpec((1, Ho * Wo, exp), lambda n: (n, 0, 0)),
        scratch_shapes=[pltpu.VMEM((H + 2, W + 2, planes), cdt)],
        compiler_params=pltpu.CompilerParams(
            dimension_semantics=("parallel",),
            vmem_limit_bytes=64 * 1024 * 1024),
        cost_estimate=pl.CostEstimate(flops=flops, transcendentals=0,
                                      bytes_accessed=bytes_accessed),
    )(*inputs)

    out = out.reshape(N, Ho, Wo, exp)
    return jnp.transpose(out, (0, 3, 1, 2))        # back to NCHW


# --------------------------- parameter setup ---------------------------------

def init_params(key, in_planes, planes, stride=1):
    exp = 4 * planes
    ks = jax.random.split(key, 8)

    def bn(k, c):
        k1, k2, k3, k4 = jax.random.split(k, 4)
        gamma = 1.0 + 0.1 * jax.random.normal(k1, (c,), jnp.float32)
        beta = 0.1 * jax.random.normal(k2, (c,), jnp.float32)
        mean = 0.1 * jax.random.normal(k3, (c,), jnp.float32)
        var = jnp.abs(0.1 * jax.random.normal(k4, (c,), jnp.float32)) + 1.0
        return gamma, beta, mean, var

    params = {
        "w1": 0.1 * jax.random.normal(ks[0], (planes, in_planes, 1, 1), jnp.float32),
        "bn1": bn(ks[1], planes),
        "w2": 0.1 * jax.random.normal(ks[2], (planes, planes, 3, 3), jnp.float32),
        "bn2": bn(ks[3], planes),
        "w3": 0.1 * jax.random.normal(ks[4], (exp, planes, 1, 1), jnp.float32),
        "bn3": bn(ks[5], exp),
    }
    if stride != 1 or in_planes != exp:
        params["ws"] = 0.1 * jax.random.normal(ks[6], (exp, in_planes, 1, 1),
                                               jnp.float32)
        params["bns"] = bn(ks[7], exp)
    return params


# --------------------------- plain-JAX reference ------------------------------
# Mirrors the kernel's numerics: bf16 matmul operands, f32 accumulation,
# BatchNorm (inference form) and ReLU in f32 — so the check stays tight.

def reference_forward(x, params, stride=1, compute_dtype=jnp.bfloat16):
    cdt = compute_dtype

    def conv(x, w, stride=1, pad=0):
        return jax.lax.conv_general_dilated(
            x.astype(cdt), w.astype(cdt), (stride, stride),
            [(pad, pad), (pad, pad)],
            dimension_numbers=("NCHW", "OIHW", "NCHW"),
            preferred_element_type=jnp.float32)

    def bn(x, p):
        g, b, m, v = p
        inv = g / jnp.sqrt(v + EPS)
        return x * inv[None, :, None, None] + (b - m * inv)[None, :, None, None]

    h1 = jax.nn.relu(bn(conv(x, params["w1"]), params["bn1"]))
    h2 = jax.nn.relu(bn(conv(h1, params["w2"], stride=stride, pad=1),
                        params["bn2"]))
    out = bn(conv(h2, params["w3"]), params["bn3"])
    if "ws" in params:
        sc = bn(conv(x, params["ws"], stride=stride), params["bns"])
    else:
        sc = x.astype(cdt).astype(jnp.float32)[:, :, ::stride, ::stride]
    return jax.nn.relu(out + sc)


if __name__ == "__main__":
    key = jax.random.PRNGKey(0)

    N, H, W = 2, 16, 16
    configs = [
        (16, 8, 1),   # in_planes != 4*planes  -> conv+BN shortcut path
        (32, 8, 1),   # in_planes == 4*planes  -> identity-shortcut path
    ]

    for idx, (in_planes, planes, stride) in enumerate(configs):
        kx, kp, key = jax.random.split(key, 3)
        x = jax.random.normal(kx, (N, in_planes, H, W), jnp.float32)
        params = init_params(kp, in_planes, planes, stride)

        out = jax.block_until_ready(bottleneck_forward(x, params, stride))
        ref = reference_forward(x, params, stride)

        Ho = (H - 1) // stride + 1
        Wo = (W - 1) // stride + 1
        assert out.shape == (N, 4 * planes, Ho, Wo), out.shape
        if not jnp.allclose(out, ref, atol=2e-3, rtol=2e-3):
            err = float(jnp.max(jnp.abs(out - ref)))
            raise AssertionError(
                f"config {idx}: Pallas output mismatch vs reference "
                f"(max abs err {err})")

    print("KERNEL_OK")
</pallas_src>

<mosaic_0001>
module attributes {stable_mosaic.version = 11 : i64} {
  func.func @_bottleneck_kernel(%arg0: i32, %arg1: memref<1x256x16xbf16, #tpu.memory_space<vmem>>, %arg2: memref<16x8xbf16, #tpu.memory_space<vmem>>, %arg3: memref<1x8xf32, #tpu.memory_space<vmem>>, %arg4: memref<1x8xf32, #tpu.memory_space<vmem>>, %arg5: memref<9x8x8xbf16, #tpu.memory_space<vmem>>, %arg6: memref<1x8xf32, #tpu.memory_space<vmem>>, %arg7: memref<1x8xf32, #tpu.memory_space<vmem>>, %arg8: memref<8x32xbf16, #tpu.memory_space<vmem>>, %arg9: memref<1x32xf32, #tpu.memory_space<vmem>>, %arg10: memref<1x32xf32, #tpu.memory_space<vmem>>, %arg11: memref<16x32xbf16, #tpu.memory_space<vmem>>, %arg12: memref<1x32xf32, #tpu.memory_space<vmem>>, %arg13: memref<1x32xf32, #tpu.memory_space<vmem>>, %arg14: memref<1x256x32xf32, #tpu.memory_space<vmem>>, %arg15: memref<18x18x8xbf16, #tpu.memory_space<vmem>>) attributes {dimension_semantics = [#tpu.dimension_semantics<parallel>], iteration_bounds = array<i64: 2>, scalar_prefetch = 0 : i64, scratch_operands = 1 : i64, tpu.core_type = #tpu.core_type<tc>, window_params = [{transform_indices = @transform_0, window_bounds = array<i64: 1, 256, 16>}, {pipeline_mode = #tpu.pipeline_mode<synchronous>, transform_indices = @transform_1, window_bounds = array<i64: 16, 8>}, {pipeline_mode = #tpu.pipeline_mode<synchronous>, transform_indices = @transform_2, window_bounds = array<i64: 1, 8>}, {pipeline_mode = #tpu.pipeline_mode<synchronous>, transform_indices = @transform_3, window_bounds = array<i64: 1, 8>}, {pipeline_mode = #tpu.pipeline_mode<synchronous>, transform_indices = @transform_4, window_bounds = array<i64: 9, 8, 8>}, {pipeline_mode = #tpu.pipeline_mode<synchronous>, transform_indices = @transform_5, window_bounds = array<i64: 1, 8>}, {pipeline_mode = #tpu.pipeline_mode<synchronous>, transform_indices = @transform_6, window_bounds = array<i64: 1, 8>}, {pipeline_mode = #tpu.pipeline_mode<synchronous>, transform_indices = @transform_7, window_bounds = array<i64: 8, 32>}, {pipeline_mode = #tpu.pipeline_mode<synchronous>, transform_indices = @transform_8, window_bounds = array<i64: 1, 32>}, {pipeline_mode = #tpu.pipeline_mode<synchronous>, transform_indices = @transform_9, window_bounds = array<i64: 1, 32>}, {pipeline_mode = #tpu.pipeline_mode<synchronous>, transform_indices = @transform_10, window_bounds = array<i64: 16, 32>}, {pipeline_mode = #tpu.pipeline_mode<synchronous>, transform_indices = @transform_11, window_bounds = array<i64: 1, 32>}, {pipeline_mode = #tpu.pipeline_mode<synchronous>, transform_indices = @transform_12, window_bounds = array<i64: 1, 32>}, {transform_indices = @transform_13, window_bounds = array<i64: 1, 256, 32>}]} {
    %c0 = arith.constant 0 : index
    %c0_0 = arith.constant 0 : index
    %c0_1 = arith.constant 0 : index
    %0 = vector.load %arg1[%c0, %c0_0, %c0_1] : memref<1x256x16xbf16, #tpu.memory_space<vmem>>, vector<1x256x16xbf16>
    %1 = vector.shape_cast %0 : vector<1x256x16xbf16> to vector<256x16xbf16>
    %c0_2 = arith.constant 0 : index
    %c0_3 = arith.constant 0 : index
    %2 = vector.load %arg2[%c0_2, %c0_3] : memref<16x8xbf16, #tpu.memory_space<vmem>>, vector<16x8xbf16>
    %cst = arith.constant dense<0.000000e+00> : vector<256x8xf32>
    %3 = tpu.matmul %1, %2, %cst {dimension_numbers = #tpu.dot_dimension_numbers<[1], [0], [0], [1], [0, 0, 1, 1], [], []>} : vector<256x16xbf16>, vector<16x8xbf16>, vector<256x8xf32> -> vector<256x8xf32>
    %c0_4 = arith.constant 0 : index
    %c0_5 = arith.constant 0 : index
    %4 = vector.load %arg3[%c0_4, %c0_5] : memref<1x8xf32, #tpu.memory_space<vmem>>, vector<1x8xf32>
    %5 = vector.broadcast %4 : vector<1x8xf32> to vector<256x8xf32>
    %6 = arith.mulf %3, %5 : vector<256x8xf32>
    %c0_6 = arith.constant 0 : index
    %c0_7 = arith.constant 0 : index
    %7 = vector.load %arg4[%c0_6, %c0_7] : memref<1x8xf32, #tpu.memory_space<vmem>>, vector<1x8xf32>
    %8 = vector.broadcast %7 : vector<1x8xf32> to vector<256x8xf32>
    %9 = arith.addf %6, %8 : vector<256x8xf32>
    %cst_8 = arith.constant 0.000000e+00 : f32
    %10 = vector.broadcast %cst_8 : f32 to vector<256x8xf32>
    %11 = arith.maximumf %9, %10 : vector<256x8xf32>
    %cst_9 = arith.constant 0.000000e+00 : bf16
    %12 = vector.broadcast %cst_9 : bf16 to vector<18x18x8xbf16>
    %c0_10 = arith.constant 0 : index
    %c0_11 = arith.constant 0 : index
    %c0_12 = arith.constant 0 : index
    %13 = vector.load %arg15[%c0_10, %c0_11, %c0_12] : memref<18x18x8xbf16, #tpu.memory_space<vmem>>, vector<18x18x8xbf16>
    tpu.vector_store %arg15[%c0_10, %c0_11, %c0_12], %12 {strides = array<i32>} : memref<18x18x8xbf16, #tpu.memory_space<vmem>>, vector<18x18x8xbf16>,
    %14 = arith.truncf %11 : vector<256x8xf32> to vector<256x8xbf16>
    %15 = vector.shape_cast %14 : vector<256x8xbf16> to vector<16x16x8xbf16>
    %c1 = arith.constant 1 : index
    %c1_13 = arith.constant 1 : index
    %c0_14 = arith.constant 0 : index
    %16 = vector.load %arg15[%c1, %c1_13, %c0_14] : memref<18x18x8xbf16, #tpu.memory_space<vmem>>, vector<16x16x8xbf16>
    tpu.vector_store %arg15[%c1, %c1_13, %c0_14], %15 {strides = array<i32>} : memref<18x18x8xbf16, #tpu.memory_space<vmem>>, vector<16x16x8xbf16>,
    %cst_15 = arith.constant 0.000000e+00 : f32
    %17 = vector.broadcast %cst_15 : f32 to vector<256x8xf32>
    %c0_16 = arith.constant 0 : index
    %c0_17 = arith.constant 0 : index
    %c0_18 = arith.constant 0 : index
    %18 = vector.load %arg15[%c0_16, %c0_17, %c0_18] : memref<18x18x8xbf16, #tpu.memory_space<vmem>>, vector<16x16x8xbf16>
    %19 = vector.shape_cast %18 : vector<16x16x8xbf16> to vector<256x8xbf16>
    %c0_19 = arith.constant 0 : index
    %c0_20 = arith.constant 0 : index
    %c0_21 = arith.constant 0 : index
    %20 = vector.load %arg5[%c0_19, %c0_20, %c0_21] : memref<9x8x8xbf16, #tpu.memory_space<vmem>>, vector<1x8x8xbf16>
    %21 = vector.shape_cast %20 : vector<1x8x8xbf16> to vector<8x8xbf16>
    %cst_22 = arith.constant dense<0.000000e+00> : vector<256x8xf32>
    %22 = tpu.matmul %19, %21, %cst_22 {dimension_numbers = #tpu.dot_dimension_numbers<[1], [0], [0], [1], [0, 0, 1, 1], [], []>} : vector<256x8xbf16>, vector<8x8xbf16>, vector<256x8xf32> -> vector<256x8xf32>
    %23 = arith.addf %17, %22 : vector<256x8xf32>
    %c0_23 = arith.constant 0 : index
    %c1_24 = arith.constant 1 : index
    %c0_25 = arith.constant 0 : index
    %24 = vector.load %arg15[%c0_23, %c1_24, %c0_25] : memref<18x18x8xbf16, #tpu.memory_space<vmem>>, vector<16x16x8xbf16>
    %25 = vector.shape_cast %24 : vector<16x16x8xbf16> to vector<256x8xbf16>
    %c1_26 = arith.constant 1 : index
    %c0_27 = arith.constant 0 : index
    %c0_28 = arith.constant 0 : index
    %26 = vector.load %arg5[%c1_26, %c0_27, %c0_28] : memref<9x8x8xbf16, #tpu.memory_space<vmem>>, vector<1x8x8xbf16>
    %27 = vector.shape_cast %26 : vector<1x8x8xbf16> to vector<8x8xbf16>
    %cst_29 = arith.constant dense<0.000000e+00> : vector<256x8xf32>
    %28 = tpu.matmul %25, %27, %cst_29 {dimension_numbers = #tpu.dot_dimension_numbers<[1], [0], [0], [1], [0, 0, 1, 1], [], []>} : vector<256x8xbf16>, vector<8x8xbf16>, vector<256x8xf32> -> vector<256x8xf32>
    %29 = arith.addf %23, %28 : vector<256x8xf32>
    %c0_30 = arith.constant 0 : index
    %c2 = arith.constant 2 : index
    %c0_31 = arith.constant 0 : index
    %30 = vector.load %arg15[%c0_30, %c2, %c0_31] : memref<18x18x8xbf16, #tpu.memory_space<vmem>>, vector<16x16x8xbf16>
    %31 = vector.shape_cast %30 : vector<16x16x8xbf16> to vector<256x8xbf16>
    %c2_32 = arith.constant 2 : index
    %c0_33 = arith.constant 0 : index
    %c0_34 = arith.constant 0 : index
    %32 = vector.load %arg5[%c2_32, %c0_33, %c0_34] : memref<9x8x8xbf16, #tpu.memory_space<vmem>>, vector<1x8x8xbf16>
    %33 = vector.shape_cast %32 : vector<1x8x8xbf16> to vector<8x8xbf16>
    %cst_35 = arith.constant dense<0.000000e+00> : vector<256x8xf32>
    %34 = tpu.matmul %31, %33, %cst_35 {dimension_numbers = #tpu.dot_dimension_numbers<[1], [0], [0], [1], [0, 0, 1, 1], [], []>} : vector<256x8xbf16>, vector<8x8xbf16>, vector<256x8xf32> -> vector<256x8xf32>
    %35 = arith.addf %29, %34 : vector<256x8xf32>
    %c1_36 = arith.constant 1 : index
    %c0_37 = arith.constant 0 : index
    %c0_38 = arith.constant 0 : index
    %36 = vector.load %arg15[%c1_36, %c0_37, %c0_38] : memref<18x18x8xbf16, #tpu.memory_space<vmem>>, vector<16x16x8xbf16>
    %37 = vector.shape_cast %36 : vector<16x16x8xbf16> to vector<256x8xbf16>
    %c3 = arith.constant 3 : index
    %c0_39 = arith.constant 0 : index
    %c0_40 = arith.constant 0 : index
    %38 = vector.load %arg5[%c3, %c0_39, %c0_40] : memref<9x8x8xbf16, #tpu.memory_space<vmem>>, vector<1x8x8xbf16>
    %39 = vector.shape_cast %38 : vector<1x8x8xbf16> to vector<8x8xbf16>
    %cst_41 = arith.constant dense<0.000000e+00> : vector<256x8xf32>
    %40 = tpu.matmul %37, %39, %cst_41 {dimension_numbers = #tpu.dot_dimension_numbers<[1], [0], [0], [1], [0, 0, 1, 1], [], []>} : vector<256x8xbf16>, vector<8x8xbf16>, vector<256x8xf32> -> vector<256x8xf32>
    %41 = arith.addf %35, %40 : vector<256x8xf32>
    %c1_42 = arith.constant 1 : index
    %c1_43 = arith.constant 1 : index
    %c0_44 = arith.constant 0 : index
    %42 = vector.load %arg15[%c1_42, %c1_43, %c0_44] : memref<18x18x8xbf16, #tpu.memory_space<vmem>>, vector<16x16x8xbf16>
    %43 = vector.shape_cast %42 : vector<16x16x8xbf16> to vector<256x8xbf16>
    %c4 = arith.constant 4 : index
    %c0_45 = arith.constant 0 : index
    %c0_46 = arith.constant 0 : index
    %44 = vector.load %arg5[%c4, %c0_45, %c0_46] : memref<9x8x8xbf16, #tpu.memory_space<vmem>>, vector<1x8x8xbf16>
    %45 = vector.shape_cast %44 : vector<1x8x8xbf16> to vector<8x8xbf16>
    %cst_47 = arith.constant dense<0.000000e+00> : vector<256x8xf32>
    %46 = tpu.matmul %43, %45, %cst_47 {dimension_numbers = #tpu.dot_dimension_numbers<[1], [0], [0], [1], [0, 0, 1, 1], [], []>} : vector<256x8xbf16>, vector<8x8xbf16>, vector<256x8xf32> -> vector<256x8xf32>
    %47 = arith.addf %41, %46 : vector<256x8xf32>
    %c1_48 = arith.constant 1 : index
    %c2_49 = arith.constant 2 : index
    %c0_50 = arith.constant 0 : index
    %48 = vector.load %arg15[%c1_48, %c2_49, %c0_50] : memref<18x18x8xbf16, #tpu.memory_space<vmem>>, vector<16x16x8xbf16>
    %49 = vector.shape_cast %48 : vector<16x16x8xbf16> to vector<256x8xbf16>
    %c5 = arith.constant 5 : index
    %c0_51 = arith.constant 0 : index
    %c0_52 = arith.constant 0 : index
    %50 = vector.load %arg5[%c5, %c0_51, %c0_52] : memref<9x8x8xbf16, #tpu.memory_space<vmem>>, vector<1x8x8xbf16>
    %51 = vector.shape_cast %50 : vector<1x8x8xbf16> to vector<8x8xbf16>
    %cst_53 = arith.constant dense<0.000000e+00> : vector<256x8xf32>
    %52 = tpu.matmul %49, %51, %cst_53 {dimension_numbers = #tpu.dot_dimension_numbers<[1], [0], [0], [1], [0, 0, 1, 1], [], []>} : vector<256x8xbf16>, vector<8x8xbf16>, vector<256x8xf32> -> vector<256x8xf32>
    %53 = arith.addf %47, %52 : vector<256x8xf32>
    %c2_54 = arith.constant 2 : index
    %c0_55 = arith.constant 0 : index
    %c0_56 = arith.constant 0 : index
    %54 = vector.load %arg15[%c2_54, %c0_55, %c0_56] : memref<18x18x8xbf16, #tpu.memory_space<vmem>>, vector<16x16x8xbf16>
    %55 = vector.shape_cast %54 : vector<16x16x8xbf16> to vector<256x8xbf16>
    %c6 = arith.constant 6 : index
    %c0_57 = arith.constant 0 : index
    %c0_58 = arith.constant 0 : index
    %56 = vector.load %arg5[%c6, %c0_57, %c0_58] : memref<9x8x8xbf16, #tpu.memory_space<vmem>>, vector<1x8x8xbf16>
    %57 = vector.shape_cast %56 : vector<1x8x8xbf16> to vector<8x8xbf16>
    %cst_59 = arith.constant dense<0.000000e+00> : vector<256x8xf32>
    %58 = tpu.matmul %55, %57, %cst_59 {dimension_numbers = #tpu.dot_dimension_numbers<[1], [0], [0], [1], [0, 0, 1, 1], [], []>} : vector<256x8xbf16>, vector<8x8xbf16>, vector<256x8xf32> -> vector<256x8xf32>
    %59 = arith.addf %53, %58 : vector<256x8xf32>
    %c2_60 = arith.constant 2 : index
    %c1_61 = arith.constant 1 : index
    %c0_62 = arith.constant 0 : index
    %60 = vector.load %arg15[%c2_60, %c1_61, %c0_62] : memref<18x18x8xbf16, #tpu.memory_space<vmem>>, vector<16x16x8xbf16>
    %61 = vector.shape_cast %60 : vector<16x16x8xbf16> to vector<256x8xbf16>
    %c7 = arith.constant 7 : index
    %c0_63 = arith.constant 0 : index
    %c0_64 = arith.constant 0 : index
    %62 = vector.load %arg5[%c7, %c0_63, %c0_64] : memref<9x8x8xbf16, #tpu.memory_space<vmem>>, vector<1x8x8xbf16>
    %63 = vector.shape_cast %62 : vector<1x8x8xbf16> to vector<8x8xbf16>
    %cst_65 = arith.constant dense<0.000000e+00> : vector<256x8xf32>
    %64 = tpu.matmul %61, %63, %cst_65 {dimension_numbers = #tpu.dot_dimension_numbers<[1], [0], [0], [1], [0, 0, 1, 1], [], []>} : vector<256x8xbf16>, vector<8x8xbf16>, vector<256x8xf32> -> vector<256x8xf32>
    %65 = arith.addf %59, %64 : vector<256x8xf32>
    %c2_66 = arith.constant 2 : index
    %c2_67 = arith.constant 2 : index
    %c0_68 = arith.constant 0 : index
    %66 = vector.load %arg15[%c2_66, %c2_67, %c0_68] : memref<18x18x8xbf16, #tpu.memory_space<vmem>>, vector<16x16x8xbf16>
    %67 = vector.shape_cast %66 : vector<16x16x8xbf16> to vector<256x8xbf16>
    %c8 = arith.constant 8 : index
    %c0_69 = arith.constant 0 : index
    %c0_70 = arith.constant 0 : index
    %68 = vector.load %arg5[%c8, %c0_69, %c0_70] : memref<9x8x8xbf16, #tpu.memory_space<vmem>>, vector<1x8x8xbf16>
    %69 = vector.shape_cast %68 : vector<1x8x8xbf16> to vector<8x8xbf16>
    %cst_71 = arith.constant dense<0.000000e+00> : vector<256x8xf32>
    %70 = tpu.matmul %67, %69, %cst_71 {dimension_numbers = #tpu.dot_dimension_numbers<[1], [0], [0], [1], [0, 0, 1, 1], [], []>} : vector<256x8xbf16>, vector<8x8xbf16>, vector<256x8xf32> -> vector<256x8xf32>
    %71 = arith.addf %65, %70 : vector<256x8xf32>
    %c0_72 = arith.constant 0 : index
    %c0_73 = arith.constant 0 : index
    %72 = vector.load %arg6[%c0_72, %c0_73] : memref<1x8xf32, #tpu.memory_space<vmem>>, vector<1x8xf32>
    %73 = vector.broadcast %72 : vector<1x8xf32> to vector<256x8xf32>
    %74 = arith.mulf %71, %73 : vector<256x8xf32>
    %c0_74 = arith.constant 0 : index
    %c0_75 = arith.constant 0 : index
    %75 = vector.load %arg7[%c0_74, %c0_75] : memref<1x8xf32, #tpu.memory_space<vmem>>, vector<1x8xf32>
    %76 = vector.broadcast %75 : vector<1x8xf32> to vector<256x8xf32>
    %77 = arith.addf %74, %76 : vector<256x8xf32>
    %cst_76 = arith.constant 0.000000e+00 : f32
    %78 = vector.broadcast %cst_76 : f32 to vector<256x8xf32>
    %79 = arith.maximumf %77, %78 : vector<256x8xf32>
    %80 = arith.truncf %79 : vector<256x8xf32> to vector<256x8xbf16>
    %c0_77 = arith.constant 0 : index
    %c0_78 = arith.constant 0 : index
    %81 = vector.load %arg8[%c0_77, %c0_78] : memref<8x32xbf16, #tpu.memory_space<vmem>>, vector<8x32xbf16>
    %cst_79 = arith.constant dense<0.000000e+00> : vector<256x32xf32>
    %82 = tpu.matmul %80, %81, %cst_79 {dimension_numbers = #tpu.dot_dimension_numbers<[1], [0], [0], [1], [0, 0, 1, 1], [], []>} : vector<256x8xbf16>, vector<8x32xbf16>, vector<256x32xf32> -> vector<256x32xf32>
    %c0_80 = arith.constant 0 : index
    %c0_81 = arith.constant 0 : index
    %83 = vector.load %arg9[%c0_80, %c0_81] : memref<1x32xf32, #tpu.memory_space<vmem>>, vector<1x32xf32>
    %84 = vector.broadcast %83 : vector<1x32xf32> to vector<256x32xf32>
    %85 = arith.mulf %82, %84 : vector<256x32xf32>
    %c0_82 = arith.constant 0 : index
    %c0_83 = arith.constant 0 : index
    %86 = vector.load %arg10[%c0_82, %c0_83] : memref<1x32xf32, #tpu.memory_space<vmem>>, vector<1x32xf32>
    %87 = vector.broadcast %86 : vector<1x32xf32> to vector<256x32xf32>
    %88 = arith.addf %85, %87 : vector<256x32xf32>
    %c0_84 = arith.constant 0 : index
    %c0_85 = arith.constant 0 : index
    %89 = vector.load %arg11[%c0_84, %c0_85] : memref<16x32xbf16, #tpu.memory_space<vmem>>, vector<16x32xbf16>
    %cst_86 = arith.constant dense<0.000000e+00> : vector<256x32xf32>
    %90 = tpu.matmul %1, %89, %cst_86 {dimension_numbers = #tpu.dot_dimension_numbers<[1], [0], [0], [1], [0, 0, 1, 1], [], []>} : vector<256x16xbf16>, vector<16x32xbf16>, vector<256x32xf32> -> vector<256x32xf32>
    %c0_87 = arith.constant 0 : index
    %c0_88 = arith.constant 0 : index
    %91 = vector.load %arg12[%c0_87, %c0_88] : memref<1x32xf32, #tpu.memory_space<vmem>>, vector<1x32xf32>
    %92 = vector.broadcast %91 : vector<1x32xf32> to vector<256x32xf32>
    %93 = arith.mulf %90, %92 : vector<256x32xf32>
    %c0_89 = arith.constant 0 : index
    %c0_90 = arith.constant 0 : index
    %94 = vector.load %arg13[%c0_89, %c0_90] : memref<1x32xf32, #tpu.memory_space<vmem>>, vector<1x32xf32>
    %95 = vector.broadcast %94 : vector<1x32xf32> to vector<256x32xf32>
    %96 = arith.addf %93, %95 : vector<256x32xf32>
    %97 = arith.addf %88, %96 : vector<256x32xf32>
    %cst_91 = arith.constant 0.000000e+00 : f32
    %98 = vector.broadcast %cst_91 : f32 to vector<256x32xf32>
    %99 = arith.maximumf %97, %98 : vector<256x32xf32>
    %c0_92 = arith.constant 0 : index
    %c0_93 = arith.constant 0 : index
    %c0_94 = arith.constant 0 : index
    %100 = vector.load %arg14[%c0_92, %c0_93, %c0_94] : memref<1x256x32xf32, #tpu.memory_space<vmem>>, vector<1x256x32xf32>
    %101 = vector.shape_cast %100 : vector<1x256x32xf32> to vector<256x32xf32>
    %102 = vector.shape_cast %99 : vector<256x32xf32> to vector<1x256x32xf32>
    tpu.vector_store %arg14[%c0_92, %c0_93, %c0_94], %102 {strides = array<i32>} : memref<1x256x32xf32, #tpu.memory_space<vmem>>, vector<1x256x32xf32>,
    return
  }
  func.func @transform_0(%arg0: i32) -> (i32, i32, i32) {
    %c0_i32 = arith.constant 0 : i32
    %c0_i32_0 = arith.constant 0 : i32
    %c0_i32_1 = arith.constant 0 : i32
    return %arg0, %c0_i32, %c0_i32_0 : i32, i32, i32
  }
  func.func @transform_1(%arg0: i32) -> (i32, i32) {
    %c0_i32 = arith.constant 0 : i32
    %c0_i32_0 = arith.constant 0 : i32
    %c0_i32_1 = arith.constant 0 : i32
    return %c0_i32, %c0_i32_0 : i32, i32
  }
  func.func @transform_2(%arg0: i32) -> (i32, i32) {
    %c0_i32 = arith.constant 0 : i32
    %c0_i32_0 = arith.constant 0 : i32
    %c0_i32_1 = arith.constant 0 : i32
    return %c0_i32, %c0_i32_0 : i32, i32
  }
  func.func @transform_3(%arg0: i32) -> (i32, i32) {
    %c0_i32 = arith.constant 0 : i32
    %c0_i32_0 = arith.constant 0 : i32
    %c0_i32_1 = arith.constant 0 : i32
    return %c0_i32, %c0_i32_0 : i32, i32
  }
  func.func @transform_4(%arg0: i32) -> (i32, i32, i32) {
    %c0_i32 = arith.constant 0 : i32
    %c0_i32_0 = arith.constant 0 : i32
    %c0_i32_1 = arith.constant 0 : i32
    %c0_i32_2 = arith.constant 0 : i32
    return %c0_i32, %c0_i32_0, %c0_i32_1 : i32, i32, i32
  }
  func.func @transform_5(%arg0: i32) -> (i32, i32) {
    %c0_i32 = arith.constant 0 : i32
    %c0_i32_0 = arith.constant 0 : i32
    %c0_i32_1 = arith.constant 0 : i32
    return %c0_i32, %c0_i32_0 : i32, i32
  }
  func.func @transform_6(%arg0: i32) -> (i32, i32) {
    %c0_i32 = arith.constant 0 : i32
    %c0_i32_0 = arith.constant 0 : i32
    %c0_i32_1 = arith.constant 0 : i32
    return %c0_i32, %c0_i32_0 : i32, i32
  }
  func.func @transform_7(%arg0: i32) -> (i32, i32) {
    %c0_i32 = arith.constant 0 : i32
    %c0_i32_0 = arith.constant 0 : i32
    %c0_i32_1 = arith.constant 0 : i32
    return %c0_i32, %c0_i32_0 : i32, i32
  }
  func.func @transform_8(%arg0: i32) -> (i32, i32) {
    %c0_i32 = arith.constant 0 : i32
    %c0_i32_0 = arith.constant 0 : i32
    %c0_i32_1 = arith.constant 0 : i32
    return %c0_i32, %c0_i32_0 : i32, i32
  }
  func.func @transform_9(%arg0: i32) -> (i32, i32) {
    %c0_i32 = arith.constant 0 : i32
    %c0_i32_0 = arith.constant 0 : i32
    %c0_i32_1 = arith.constant 0 : i32
    return %c0_i32, %c0_i32_0 : i32, i32
  }
  func.func @transform_10(%arg0: i32) -> (i32, i32) {
    %c0_i32 = arith.constant 0 : i32
    %c0_i32_0 = arith.constant 0 : i32
    %c0_i32_1 = arith.constant 0 : i32
    return %c0_i32, %c0_i32_0 : i32, i32
  }
  func.func @transform_11(%arg0: i32) -> (i32, i32) {
    %c0_i32 = arith.constant 0 : i32
    %c0_i32_0 = arith.constant 0 : i32
    %c0_i32_1 = arith.constant 0 : i32
    return %c0_i32, %c0_i32_0 : i32, i32
  }
  func.func @transform_12(%arg0: i32) -> (i32, i32) {
    %c0_i32 = arith.constant 0 : i32
    %c0_i32_0 = arith.constant 0 : i32
    %c0_i32_1 = arith.constant 0 : i32
    return %c0_i32, %c0_i32_0 : i32, i32
  }
  func.func @transform_13(%arg0: i32) -> (i32, i32, i32) {
    %c0_i32 = arith.constant 0 : i32
    %c0_i32_0 = arith.constant 0 : i32
    %c0_i32_1 = arith.constant 0 : i32
    return %arg0, %c0_i32, %c0_i32_0 : i32, i32, i32
  }
}

</mosaic_0001>

<llo_original>
// kernel: tpu_custom_call.1
$region0: #{tpu_custom_call.1}
  #allocation0 [shape = 'u32[]', space=smem, size = 0x4, offset = 0x4, fixed_abs, tag = 'smem constant byte address 0x4 - core index']
  #allocation1 [shape = 'u32[144,128]{1,0:T(1,128)}', space=vmem, size = 0x12000, scoped, tag = 'internal scratch']
  #allocation2 [shape = 'bf16[18,18,8]{2,1,0:T(8,128)(2,1)}', space=vmem, size = 0x1b000, scoped, tag = 'scratch operand']
  %s0 = inlined_call_operand.hbm [shape: bf16[2,256,16], index: 0, kind: input, shape index: {}]
  %s1 = inlined_call_operand.hbm [shape: bf16[16,8], index: 1, kind: input, shape index: {}]
  %s2 = inlined_call_operand.hbm [shape: f32[1,8], index: 2, kind: input, shape index: {}]
  %s3 = inlined_call_operand.hbm [shape: f32[1,8], index: 3, kind: input, shape index: {}]
  %s4 = inlined_call_operand.hbm [shape: bf16[9,8,8], index: 4, kind: input, shape index: {}]
  %s5 = inlined_call_operand.hbm [shape: f32[1,8], index: 5, kind: input, shape index: {}]
  %s6 = inlined_call_operand.hbm [shape: f32[1,8], index: 6, kind: input, shape index: {}]
  %s7 = inlined_call_operand.hbm [shape: bf16[8,32], index: 7, kind: input, shape index: {}]
  %s8 = inlined_call_operand.hbm [shape: f32[1,32], index: 8, kind: input, shape index: {}]
  %s9 = inlined_call_operand.hbm [shape: f32[1,32], index: 9, kind: input, shape index: {}]
  %s10 = inlined_call_operand.hbm [shape: bf16[16,32], index: 10, kind: input, shape index: {}]
  %s11 = inlined_call_operand.hbm [shape: f32[1,32], index: 11, kind: input, shape index: {}]
  %s12 = inlined_call_operand.hbm [shape: f32[1,32], index: 12, kind: input, shape index: {}]
  %s13 = inlined_call_operand.hbm [shape: f32[2,256,32], index: 13, kind: output, shape index: {}]
  %s14 = sld [smem:[#allocation0]]
  $region137: #{tpu_custom_call.1} parent=0
    _
  %s16 = ssub.s32 1, %s14
  %s17 = scalar_select 0, %s16, %s14
  $region1: #{tpu_custom_call.1} parent=0
    #allocation3 [shape = 'u8[131072]{0}', space=vmem, size = 0x20000, scoped, tag = 'input window, operand 0']
    #allocation4 [shape = 's32[2]{0}', space=sflag, size = 0x8, scoped, tag = 'scoped memory for tpu_custom_call.1']
    #allocation5 [shape = 's32[2]{0}', space=sflag, size = 0x8, scoped, tag = 'scoped memory for tpu_custom_call.1']
    #allocation6 [shape = 'u8[4096]{0}', space=vmem, size = 0x1000, scoped, tag = 'input window, operand 1, single buffered']
    #allocation7 [shape = 's32[1]{0}', space=sflag, size = 0x4, scoped, tag = 'scoped memory for tpu_custom_call.1']
    #allocation8 [shape = 'u8[512]{0}', space=vmem, size = 0x400, scoped, tag = 'input window, operand 2, single buffered']
    #allocation9 [shape = 'u8[512]{0}', space=vmem, size = 0x400, scoped, tag = 'input window, operand 3, single buffered']
    #allocation10 [shape = 's32[1]{0}', space=sflag, size = 0x4, scoped, tag = 'scoped memory for tpu_custom_call.1']
    #allocation11 [shape = 'u8[18432]{0}', space=vmem, size = 0x4800, scoped, tag = 'input window, operand 4, single buffered']
    #allocation12 [shape = 'u8[512]{0}', space=vmem, size = 0x400, scoped, tag = 'input window, operand 5, single buffered']
    #allocation13 [shape = 's32[1]{0}', space=sflag, size = 0x4, scoped, tag = 'scoped memory for tpu_custom_call.1']
    #allocation14 [shape = 'u8[512]{0}', space=vmem, size = 0x400, scoped, tag = 'input window, operand 6, single buffered']
    #allocation15 [shape = 'u8[2048]{0}', space=vmem, size = 0x800, scoped, tag = 'input window, operand 7, single buffered']
    #allocation16 [shape = 's32[1]{0}', space=sflag, size = 0x4, scoped, tag = 'scoped memory for tpu_custom_call.1']
    #allocation17 [shape = 'u8[512]{0}', space=vmem, size = 0x400, scoped, tag = 'input window, operand 8, single buffered']
    #allocation18 [shape = 'u8[512]{0}', space=vmem, size = 0x400, scoped, tag = 'input window, operand 9, single buffered']
    #allocation19 [shape = 's32[1]{0}', space=sflag, size = 0x4, scoped, tag = 'scoped memory for tpu_custom_call.1']
    #allocation20 [shape = 'u8[4096]{0}', space=vmem, size = 0x1000, scoped, tag = 'input window, operand 10, single buffered']
    #allocation21 [shape = 'u8[512]{0}', space=vmem, size = 0x400, scoped, tag = 'input window, operand 11, single buffered']
    #allocation22 [shape = 's32[1]{0}', space=sflag, size = 0x4, scoped, tag = 'scoped memory for tpu_custom_call.1']
    #allocation23 [shape = 'u8[512]{0}', space=vmem, size = 0x400, scoped, tag = 'input window, operand 12, single buffered']
    #allocation24 [shape = 'u8[262144]{0}', space=vmem, size = 0x40000, scoped, tag = 'output window, operand 0']
    %18 = vsyncpa [#allocation4], 0
    %s19 = scalar_lea.sflag [#allocation4], 1
    %20 = vsyncpa %s19, 0
    %21 = vsyncpa [#allocation7], 0
    %22 = vsyncpa [#allocation10], 0
    %23 = vsyncpa [#allocation13], 0
    %24 = vsyncpa [#allocation16], 0
    %25 = vsyncpa [#allocation19], 0
    %26 = vsyncpa [#allocation22], 0
    %27 = vsyncpa [#allocation5], 0
    %s28 = scalar_lea.sflag [#allocation5], 1
    %29 = vsyncpa %s28, 0
    loop: start=0, step=1, limit=4
    $region2: #{tpu_custom_call.1} parent=1 // loop_pre_header
      _
    $region3: #{tpu_custom_call.1} parent=1 // loop_header
      %s31 = sphi 0, %s35
      %p32 = scmp.ge.s32.totalorder %s31, 4
      %s41 = sphi 0, %s43
      %s44 = sphi 0, %s41
      %s45 = sphi 0, %s44
      %s61 = sphi 0, %s45
      %s65 = sphi 0, %s65
      %s67 = sphi 0, %s65
      %s68 = sphi 0, %s67
      %s82 = sphi 0, %s68
      %s86 = sphi 0, %s86
      %s88 = sphi 0, %s86
      %s89 = sphi 0, %s88
      %s103 = sphi 0, %s89
      %s107 = sphi 0, %s107
      %s109 = sphi 0, %s107
      %s110 = sphi 0, %s109
      %s124 = sphi 0, %s110
      %s128 = sphi 0, %s128
      %s130 = sphi 0, %s128
      %s131 = sphi 0, %s130
      %s145 = sphi 0, %s131
      %s149 = sphi 0, %s149
      %s151 = sphi 0, %s149
      %s152 = sphi 0, %s151
      %s166 = sphi 0, %s152
      %s170 = sphi 0, %s170
      %s172 = sphi 0, %s170
      %s173 = sphi 0, %s172
      %s187 = sphi 0, %s173
      %s191 = sphi 0, %s191
      %s193 = sphi 0, %s191
      %s194 = sphi 0, %s193
      %s208 = sphi 0, %s194
      %s212 = sphi 0, %s212
      %s214 = sphi 0, %s212
      %s215 = sphi 0, %s214
      %s229 = sphi 0, %s215
      %s233 = sphi 0, %s233
      %s235 = sphi 0, %s233
      %s236 = sphi 0, %s235
      %s250 = sphi 0, %s236
      %s254 = sphi 0, %s254
      %s256 = sphi 0, %s254
      %s257 = sphi 0, %s256
      %s271 = sphi 0, %s257
      %s275 = sphi 0, %s275
      %s277 = sphi 0, %s275
      %s278 = sphi 0, %s277
      %s292 = sphi 0, %s278
      %s296 = sphi 0, %s296
      %s298 = sphi 0, %s296
      %s299 = sphi 0, %s298
      %s313 = sphi 0, %s299
      %s319 = sphi 0, %s321
      %s322 = sphi 0, %s319
      %s323 = sphi 0, %s322
      %s339 = sphi 0, %s323
    $region4: #{tpu_custom_call.1} parent=1 // loop_header_branch
      %34 = sbr.rel (%p32) target = $region8
    $region5: #{tpu_custom_call.1} parent=1 // loop_body
      %s36 = ssub.s32 %s31, 1
      %s37 = ssub.s32 %s31, 2
      %s38 = sadd.s32 %s31, 1
      %s39 = ssub.s32 %s31, %s38
      %p40 = scmp.eq.s32.totalorder %s39, 0
      %s42 = sadd.s32 %s41, 1
      %s43 = scalar_select %p40, %s41, %s42
      %p46 = pneg %p40
      %p47 = scmp.eq.s32.totalorder %s31, 1
      %p48 = por %p46, %p47
      %p49 = scmp.ne.s32.totalorder %s41, %s44
      %p50 = scmp.eq.s32.totalorder %s31, 0
      %p51 = por %p49, %p50
      %p52 = scmp.ne.s32.totalorder %s41, %s44
      %p53 = scmp.eq.s32.totalorder %s36, 1
      %p54 = por %p52, %p53
      %p55 = scmp.ne.s32.totalorder %s44, %s45
      %p56 = scmp.eq.s32.totalorder %s36, 0
      %p57 = por %p55, %p56
      %p58 = scmp.ne.s32.totalorder %s44, %s45
      %p59 = scmp.eq.s32.totalorder %s37, 1
      %p60 = por %p58, %p59
      %p62 = scmp.ne.s32.totalorder %s45, %s61
      %p63 = scmp.eq.s32.totalorder %s37, 0
      %p64 = por %p62, %p63
      %s66 = sadd.s32 %s65, 1
      %p69 = scmp.eq.s32.totalorder %s31, 1
      %p70 = scmp.ne.s32.totalorder %s65, %s67
      %p71 = scmp.eq.s32.totalorder %s31, 0
      %p72 = por %p70, %p71
      %p73 = scmp.ne.s32.totalorder %s65, %s67
      %p74 = scmp.eq.s32.totalorder %s36, 1
      %p75 = por %p73, %p74
      %p76 = scmp.ne.s32.totalorder %s67, %s68
      %p77 = scmp.eq.s32.totalorder %s36, 0
      %p78 = por %p76, %p77
      %p79 = scmp.ne.s32.totalorder %s67, %s68
      %p80 = scmp.eq.s32.totalorder %s37, 1
      %p81 = por %p79, %p80
      %p83 = scmp.ne.s32.totalorder %s68, %s82
      %p84 = scmp.eq.s32.totalorder %s37, 0
      %p85 = por %p83, %p84
      %s87 = sadd.s32 %s86, 1
      %p90 = scmp.eq.s32.totalorder %s31, 1
      %p91 = scmp.ne.s32.totalorder %s86, %s88
      %p92 = scmp.eq.s32.totalorder %s31, 0
      %p93 = por %p91, %p92
      %p94 = scmp.ne.s32.totalorder %s86, %s88
      %p95 = scmp.eq.s32.totalorder %s36, 1
      %p96 = por %p94, %p95
      %p97 = scmp.ne.s32.totalorder %s88, %s89
      %p98 = scmp.eq.s32.totalorder %s36, 0
      %p99 = por %p97, %p98
      %p100 = scmp.ne.s32.totalorder %s88, %s89
      %p101 = scmp.eq.s32.totalorder %s37, 1
      %p102 = por %p100, %p101
      %p104 = scmp.ne.s32.totalorder %s89, %s103
      %p105 = scmp.eq.s32.totalorder %s37, 0
      %p106 = por %p104, %p105
      %s108 = sadd.s32 %s107, 1
      %p111 = scmp.eq.s32.totalorder %s31, 1
      %p112 = scmp.ne.s32.totalorder %s107, %s109
      %p113 = scmp.eq.s32.totalorder %s31, 0
      %p114 = por %p112, %p113
      %p115 = scmp.ne.s32.totalorder %s107, %s109
      %p116 = scmp.eq.s32.totalorder %s36, 1
      %p117 = por %p115, %p116
      %p118 = scmp.ne.s32.totalorder %s109, %s110
      %p119 = scmp.eq.s32.totalorder %s36, 0
      %p120 = por %p118, %p119
      %p121 = scmp.ne.s32.totalorder %s109, %s110
      %p122 = scmp.eq.s32.totalorder %s37, 1
      %p123 = por %p121, %p122
      %p125 = scmp.ne.s32.totalorder %s110, %s124
      %p126 = scmp.eq.s32.totalorder %s37, 0
      %p127 = por %p125, %p126
      %s129 = sadd.s32 %s128, 1
      %p132 = scmp.eq.s32.totalorder %s31, 1
      %p133 = scmp.ne.s32.totalorder %s128, %s130
      %p134 = scmp.eq.s32.totalorder %s31, 0
      %p135 = por %p133, %p134
      %p136 = scmp.ne.s32.totalorder %s128, %s130
      %p137 = scmp.eq.s32.totalorder %s36, 1
      %p138 = por %p136, %p137
      %p139 = scmp.ne.s32.totalorder %s130, %s131
      %p140 = scmp.eq.s32.totalorder %s36, 0
      %p141 = por %p139, %p140
      %p142 = scmp.ne.s32.totalorder %s130, %s131
      %p143 = scmp.eq.s32.totalorder %s37, 1
      %p144 = por %p142, %p143
      %p146 = scmp.ne.s32.totalorder %s131, %s145
      %p147 = scmp.eq.s32.totalorder %s37, 0
      %p148 = por %p146, %p147
      %s150 = sadd.s32 %s149, 1
      %p153 = scmp.eq.s32.totalorder %s31, 1
      %p154 = scmp.ne.s32.totalorder %s149, %s151
      %p155 = scmp.eq.s32.totalorder %s31, 0
      %p156 = por %p154, %p155
      %p157 = scmp.ne.s32.totalorder %s149, %s151
      %p158 = scmp.eq.s32.totalorder %s36, 1
      %p159 = por %p157, %p158
      %p160 = scmp.ne.s32.totalorder %s151, %s152
      %p161 = scmp.eq.s32.totalorder %s36, 0
      %p162 = por %p160, %p161
      %p163 = scmp.ne.s32.totalorder %s151, %s152
      %p164 = scmp.eq.s32.totalorder %s37, 1
      %p165 = por %p163, %p164
      %p167 = scmp.ne.s32.totalorder %s152, %s166
      %p168 = scmp.eq.s32.totalorder %s37, 0
      %p169 = por %p167, %p168
      %s171 = sadd.s32 %s170, 1
      %p174 = scmp.eq.s32.totalorder %s31, 1
      %p175 = scmp.ne.s32.totalorder %s170, %s172
      %p176 = scmp.eq.s32.totalorder %s31, 0
      %p177 = por %p175, %p176
      %p178 = scmp.ne.s32.totalorder %s170, %s172
      %p179 = scmp.eq.s32.totalorder %s36, 1
      %p180 = por %p178, %p179
      %p181 = scmp.ne.s32.totalorder %s172, %s173
      %p182 = scmp.eq.s32.totalorder %s36, 0
      %p183 = por %p181, %p182
      %p184 = scmp.ne.s32.totalorder %s172, %s173
      %p185 = scmp.eq.s32.totalorder %s37, 1
      %p186 = por %p184, %p185
      %p188 = scmp.ne.s32.totalorder %s173, %s187
      %p189 = scmp.eq.s32.totalorder %s37, 0
      %p190 = por %p188, %p189
      %s192 = sadd.s32 %s191, 1
      %p195 = scmp.eq.s32.totalorder %s31, 1
      %p196 = scmp.ne.s32.totalorder %s191, %s193
      %p197 = scmp.eq.s32.totalorder %s31, 0
      %p198 = por %p196, %p197
      %p199 = scmp.ne.s32.totalorder %s191, %s193
      %p200 = scmp.eq.s32.totalorder %s36, 1
      %p201 = por %p199, %p200
      %p202 = scmp.ne.s32.totalorder %s193, %s194
      %p203 = scmp.eq.s32.totalorder %s36, 0
      %p204 = por %p202, %p203
      %p205 = scmp.ne.s32.totalorder %s193, %s194
      %p206 = scmp.eq.s32.totalorder %s37, 1
      %p207 = por %p205, %p206
      %p209 = scmp.ne.s32.totalorder %s194, %s208
      %p210 = scmp.eq.s32.totalorder %s37, 0
      %p211 = por %p209, %p210
      %s213 = sadd.s32 %s212, 1
      %p216 = scmp.eq.s32.totalorder %s31, 1
      %p217 = scmp.ne.s32.totalorder %s212, %s214
      %p218 = scmp.eq.s32.totalorder %s31, 0
      %p219 = por %p217, %p218
      %p220 = scmp.ne.s32.totalorder %s212, %s214
      %p221 = scmp.eq.s32.totalorder %s36, 1
      %p222 = por %p220, %p221
      %p223 = scmp.ne.s32.totalorder %s214, %s215
      %p224 = scmp.eq.s32.totalorder %s36, 0
      %p225 = por %p223, %p224
      %p226 = scmp.ne.s32.totalorder %s214, %s215
      %p227 = scmp.eq.s32.totalorder %s37, 1
      %p228 = por %p226, %p227
      %p230 = scmp.ne.s32.totalorder %s215, %s229
      %p231 = scmp.eq.s32.totalorder %s37, 0
      %p232 = por %p230, %p231
      %s234 = sadd.s32 %s233, 1
      %p237 = scmp.eq.s32.totalorder %s31, 1
      %p238 = scmp.ne.s32.totalorder %s233, %s235
      %p239 = scmp.eq.s32.totalorder %s31, 0
      %p240 = por %p238, %p239
      %p241 = scmp.ne.s32.totalorder %s233, %s235
      %p242 = scmp.eq.s32.totalorder %s36, 1
      %p243 = por %p241, %p242
      %p244 = scmp.ne.s32.totalorder %s235, %s236
      %p245 = scmp.eq.s32.totalorder %s36, 0
      %p246 = por %p244, %p245
      %p247 = scmp.ne.s32.totalorder %s235, %s236
      %p248 = scmp.eq.s32.totalorder %s37, 1
      %p249 = por %p247, %p248
      %p251 = scmp.ne.s32.totalorder %s236, %s250
      %p252 = scmp.eq.s32.totalorder %s37, 0
      %p253 = por %p251, %p252
      %s255 = sadd.s32 %s254, 1
      %p258 = scmp.eq.s32.totalorder %s31, 1
      %p259 = scmp.ne.s32.totalorder %s254, %s256
      %p260 = scmp.eq.s32.totalorder %s31, 0
      %p261 = por %p259, %p260
      %p262 = scmp.ne.s32.totalorder %s254, %s256
      %p263 = scmp.eq.s32.totalorder %s36, 1
      %p264 = por %p262, %p263
      %p265 = scmp.ne.s32.totalorder %s256, %s257
      %p266 = scmp.eq.s32.totalorder %s36, 0
      %p267 = por %p265, %p266
      %p268 = scmp.ne.s32.totalorder %s256, %s257
      %p269 = scmp.eq.s32.totalorder %s37, 1
      %p270 = por %p268, %p269
      %p272 = scmp.ne.s32.totalorder %s257, %s271
      %p273 = scmp.eq.s32.totalorder %s37, 0
      %p274 = por %p272, %p273
      %s276 = sadd.s32 %s275, 1
      %p279 = scmp.eq.s32.totalorder %s31, 1
      %p280 = scmp.ne.s32.totalorder %s275, %s277
      %p281 = scmp.eq.s32.totalorder %s31, 0
      %p282 = por %p280, %p281
      %p283 = scmp.ne.s32.totalorder %s275, %s277
      %p284 = scmp.eq.s32.totalorder %s36, 1
      %p285 = por %p283, %p284
      %p286 = scmp.ne.s32.totalorder %s277, %s278
      %p287 = scmp.eq.s32.totalorder %s36, 0
      %p288 = por %p286, %p287
      %p289 = scmp.ne.s32.totalorder %s277, %s278
      %p290 = scmp.eq.s32.totalorder %s37, 1
      %p291 = por %p289, %p290
      %p293 = scmp.ne.s32.totalorder %s278, %s292
      %p294 = scmp.eq.s32.totalorder %s37, 0
      %p295 = por %p293, %p294
      %s297 = sadd.s32 %s296, 1
      %p300 = scmp.eq.s32.totalorder %s31, 1
      %p301 = scmp.ne.s32.totalorder %s296, %s298
      %p302 = scmp.eq.s32.totalorder %s31, 0
      %p303 = por %p301, %p302
      %p304 = scmp.ne.s32.totalorder %s296, %s298
      %p305 = scmp.eq.s32.totalorder %s36, 1
      %p306 = por %p304, %p305
      %p307 = scmp.ne.s32.totalorder %s298, %s299
      %p308 = scmp.eq.s32.totalorder %s36, 0
      %p309 = por %p307, %p308
      %p310 = scmp.ne.s32.totalorder %s298, %s299
      %p311 = scmp.eq.s32.totalorder %s37, 1
      %p312 = por %p310, %p311
      %p314 = scmp.ne.s32.totalorder %s299, %s313
      %p315 = scmp.eq.s32.totalorder %s37, 0
      %p316 = por %p314, %p315
      %s317 = ssub.s32 %s31, %s38
      %p318 = scmp.eq.s32.totalorder %s317, 0
      %s320 = sadd.s32 %s319, 1
      %s321 = scalar_select %p318, %s319, %s320
      %p324 = pneg %p318
      %p325 = scmp.eq.s32.totalorder %s31, 1
      %p326 = por %p324, %p325
      %p327 = scmp.ne.s32.totalorder %s319, %s322
      %p328 = scmp.eq.s32.totalorder %s31, 0
      %p329 = por %p327, %p328
      %p330 = scmp.ne.s32.totalorder %s319, %s322
      %p331 = scmp.eq.s32.totalorder %s36, 1
      %p332 = por %p330, %p331
      %p333 = scmp.ne.s32.totalorder %s322, %s323
      %p334 = scmp.eq.s32.totalorder %s36, 0
      %p335 = por %p333, %p334
      %p336 = scmp.ne.s32.totalorder %s322, %s323
      %p337 = scmp.eq.s32.totalorder %s37, 1
      %p338 = por %p336, %p337
      %p340 = scmp.ne.s32.totalorder %s323, %s339
      %p341 = scmp.eq.s32.totalorder %s37, 0
      %p342 = por %p340, %p341
      %p343 = scmp.le.s32.totalorder 1, %s31
      %p344 = scmp.lt.s32.totalorder %s31, 3
      %p345 = pnand %p343, %p344
      %p346 = pneg %p345
      // Predicated region
      $region9: #{tpu_custom_call.1} parent=5 // pred_check
        _
      $region10: #{tpu_custom_call.1} parent=5 // pred_check_branch
        %348 = sbr.rel (%p345) target = $region12
      $region11: #{tpu_custom_call.1} parent=5 // pred_region
        %s349 = ssub.s32 %s31, 1
        // Predicated region
        $region13: #{tpu_custom_call.1} parent=11 // pred_check
          %p350 = pneg %p78
        $region14: #{tpu_custom_call.1} parent=11 // pred_check_branch
          %352 = sbr.rel (%p350) target = $region16
        $region15: #{tpu_custom_call.1} parent=11 // pred_region
          %s354 = ssub.s32 128, 128
          %355 = vsyncadd [#allocation7], %s354
          %s356 = sshll.u32 [#allocation6], 4
          %s357 = int_to_ptr.vmem [resolvable:$true] %s356
          %362 = dma.hbm_to_vmem [thread:$0]  %s1, 128, %s357, [#allocation7], 64, 64, 4
        $region16: #{tpu_custom_call.1} parent=11 // pred_fallthru
          _
        // Predicated region
        $region17: #{tpu_custom_call.1} parent=11 // pred_check
          %p363 = pneg %p99
        $region18: #{tpu_custom_call.1} parent=11 // pred_check_branch
          %365 = sbr.rel (%p363) target = $region20
        $region19: #{tpu_custom_call.1} parent=11 // pred_region
          %s367 = ssub.s32 16, 16
          %368 = vsyncadd [#allocation7], %s367
          %s370 = sshll.u32 [#allocation8], 4
          %s371 = int_to_ptr.vmem [resolvable:$true] %s370
          %373 = dma.hbm_to_vmem [thread:$0]  %s2, 16, %s371, [#allocation7]
        $region20: #{tpu_custom_call.1} parent=11 // pred_fallthru
          _
        // Predicated region
        $region21: #{tpu_custom_call.1} parent=11 // pred_check
          %p374 = pneg %p120
        $region22: #{tpu_custom_call.1} parent=11 // pred_check_branch
          %376 = sbr.rel (%p374) target = $region24
        $region23: #{tpu_custom_call.1} parent=11 // pred_region
          %s378 = ssub.s32 16, 16
          %379 = vsyncadd [#allocation10], %s378
          %s381 = sshll.u32 [#allocation9], 4
          %s382 = int_to_ptr.vmem [resolvable:$true] %s381
          %384 = dma.hbm_to_vmem [thread:$0]  %s3, 16, %s382, [#allocation10]
        $region24: #{tpu_custom_call.1} parent=11 // pred_fallthru
          _
        // Predicated region
        $region25: #{tpu_custom_call.1} parent=11 // pred_check
          %p385 = pneg %p141
        $region26: #{tpu_custom_call.1} parent=11 // pred_check_branch
          %387 = sbr.rel (%p385) target = $region28
        $region27: #{tpu_custom_call.1} parent=11 // pred_region
          %s389 = ssub.s32 576, 576
          %390 = vsyncadd [#allocation10], %s389
          %s391 = sshll.u32 [#allocation11], 4
          %s392 = int_to_ptr.vmem [resolvable:$true] %s391
          %397 = dma.hbm_to_vmem [thread:$0]  %s4, 576, %s392, [#allocation10], 64, 64, 4
        $region28: #{tpu_custom_call.1} parent=11 // pred_fallthru
          _
        // Predicated region
        $region29: #{tpu_custom_call.1} parent=11 // pred_check
          %p398 = pneg %p162
        $region30: #{tpu_custom_call.1} parent=11 // pred_check_branch
          %400 = sbr.rel (%p398) target = $region32
        $region31: #{tpu_custom_call.1} parent=11 // pred_region
          %s402 = ssub.s32 16, 16
          %403 = vsyncadd [#allocation13], %s402
          %s405 = sshll.u32 [#allocation12], 4
          %s406 = int_to_ptr.vmem [resolvable:$true] %s405
          %408 = dma.hbm_to_vmem [thread:$0]  %s5, 16, %s406, [#allocation13]
        $region32: #{tpu_custom_call.1} parent=11 // pred_fallthru
          _
        // Predicated region
        $region33: #{tpu_custom_call.1} parent=11 // pred_check
          %p409 = pneg %p183
        $region34: #{tpu_custom_call.1} parent=11 // pred_check_branch
          %411 = sbr.rel (%p409) target = $region36
        $region35: #{tpu_custom_call.1} parent=11 // pred_region
          %s413 = ssub.s32 16, 16
          %414 = vsyncadd [#allocation13], %s413
          %s416 = sshll.u32 [#allocation14], 4
          %s417 = int_to_ptr.vmem [resolvable:$true] %s416
          %419 = dma.hbm_to_vmem [thread:$0]  %s6, 16, %s417, [#allocation13]
        $region36: #{tpu_custom_call.1} parent=11 // pred_fallthru
          _
        // Predicated region
        $region37: #{tpu_custom_call.1} parent=11 // pred_check
          %p420 = pneg %p204
        $region38: #{tpu_custom_call.1} parent=11 // pred_check_branch
          %422 = sbr.rel (%p420) target = $region40
        $region39: #{tpu_custom_call.1} parent=11 // pred_region
          %s424 = ssub.s32 64, 64
          %425 = vsyncadd [#allocation16], %s424
          %s427 = sshll.u32 [#allocation15], 4
          %s428 = int_to_ptr.vmem [resolvable:$true] %s427
          %430 = dma.hbm_to_vmem [thread:$0]  %s7, 64, %s428, [#allocation16]
        $region40: #{tpu_custom_call.1} parent=11 // pred_fallthru
          _
        // Predicated region
        $region41: #{tpu_custom_call.1} parent=11 // pred_check
          %p431 = pneg %p225
        $region42: #{tpu_custom_call.1} parent=11 // pred_check_branch
          %433 = sbr.rel (%p431) target = $region44
        $region43: #{tpu_custom_call.1} parent=11 // pred_region
          %s435 = ssub.s32 16, 16
          %436 = vsyncadd [#allocation16], %s435
          %s438 = sshll.u32 [#allocation17], 4
          %s439 = int_to_ptr.vmem [resolvable:$true] %s438
          %441 = dma.hbm_to_vmem [thread:$0]  %s8, 16, %s439, [#allocation16]
        $region44: #{tpu_custom_call.1} parent=11 // pred_fallthru
          _
        // Predicated region
        $region45: #{tpu_custom_call.1} parent=11 // pred_check
          %p442 = pneg %p246
        $region46: #{tpu_custom_call.1} parent=11 // pred_check_branch
          %444 = sbr.rel (%p442) target = $region48
        $region47: #{tpu_custom_call.1} parent=11 // pred_region
          %s446 = ssub.s32 16, 16
          %447 = vsyncadd [#allocation19], %s446
          %s449 = sshll.u32 [#allocation18], 4
          %s450 = int_to_ptr.vmem [resolvable:$true] %s449
          %452 = dma.hbm_to_vmem [thread:$0]  %s9, 16, %s450, [#allocation19]
        $region48: #{tpu_custom_call.1} parent=11 // pred_fallthru
          _
        // Predicated region
        $region49: #{tpu_custom_call.1} parent=11 // pred_check
          %p453 = pneg %p267
        $region50: #{tpu_custom_call.1} parent=11 // pred_check_branch
          %455 = sbr.rel (%p453) target = $region52
        $region51: #{tpu_custom_call.1} parent=11 // pred_region
          %s457 = ssub.s32 128, 128
          %458 = vsyncadd [#allocation19], %s457
          %s459 = sshll.u32 [#allocation20], 4
          %s460 = int_to_ptr.vmem [resolvable:$true] %s459
          %465 = dma.hbm_to_vmem [thread:$0]  %s10, 128, %s460, [#allocation19], 64, 64, 4
        $region52: #{tpu_custom_call.1} parent=11 // pred_fallthru
          _
        // Predicated region
        $region53: #{tpu_custom_call.1} parent=11 // pred_check
          %p466 = pneg %p288
        $region54: #{tpu_custom_call.1} parent=11 // pred_check_branch
          %468 = sbr.rel (%p466) target = $region56
        $region55: #{tpu_custom_call.1} parent=11 // pred_region
          %s470 = ssub.s32 16, 16
          %471 = vsyncadd [#allocation22], %s470
          %s473 = sshll.u32 [#allocation21], 4
          %s474 = int_to_ptr.vmem [resolvable:$true] %s473
          %476 = dma.hbm_to_vmem [thread:$0]  %s11, 16, %s474, [#allocation22]
        $region56: #{tpu_custom_call.1} parent=11 // pred_fallthru
          _
        // Predicated region
        $region57: #{tpu_custom_call.1} parent=11 // pred_check
          %p477 = pneg %p309
        $region58: #{tpu_custom_call.1} parent=11 // pred_check_branch
          %479 = sbr.rel (%p477) target = $region60
        $region59: #{tpu_custom_call.1} parent=11 // pred_region
          %s481 = ssub.s32 16, 16
          %482 = vsyncadd [#allocation22], %s481
          %s484 = sshll.u32 [#allocation23], 4
          %s485 = int_to_ptr.vmem [resolvable:$true] %s484
          %487 = dma.hbm_to_vmem [thread:$0]  %s12, 16, %s485, [#allocation22]
        $region60: #{tpu_custom_call.1} parent=11 // pred_fallthru
          _
      $region12: #{tpu_custom_call.1} parent=5 // pred_fallthru
        _
      %p488 = scmp.lt.s32.totalorder %s31, 2
      // Predicated region
      $region61: #{tpu_custom_call.1} parent=5 // pred_check
        %p489 = pneg %p488
      $region62: #{tpu_custom_call.1} parent=5 // pred_check_branch
        %491 = sbr.rel (%p489) target = $region64
      $region63: #{tpu_custom_call.1} parent=5 // pred_region
        // Predicated region
        $region65: #{tpu_custom_call.1} parent=63 // pred_check
          %p492 = pneg %p51
        $region66: #{tpu_custom_call.1} parent=63 // pred_check_branch
          %494 = sbr.rel (%p492) target = $region68
        $region67: #{tpu_custom_call.1} parent=63 // pred_region
          %s495 = sand.u32 %s41, 1
          %s496 = scalar_lea.sflag [#allocation4], %s495
          %s497 = sand.u32 %s41, 1
          %s498 = smul.addr %s497, 128
          %s499 = scalar_lea.vmem [#allocation3], %s498
          %s501 = ssub.s32 2048, 2048
          %502 = vsyncadd %s496, %s501
          %s503 = smul.addr %s31, 32
          %s504 = smul.addr %s503, 64
          %s505 = scalar_lea.hbm %s0, %s504
          %s506 = sshll.u32 %s499, 4
          %s507 = int_to_ptr.vmem [resolvable:$true] %s506
          %512 = dma.hbm_to_vmem [thread:$0]  %s505, 2048, %s507, %s496, 64, 64, 4
        $region68: #{tpu_custom_call.1} parent=63 // pred_fallthru
          _
      $region64: #{tpu_custom_call.1} parent=5 // pred_fallthru
        _
      %p513 = scmp.le.s32.totalorder 1, %s31
      %p514 = scmp.lt.s32.totalorder %s31, 3
      %p515 = pnand %p513, %p514
      %p516 = pneg %p515
      // Predicated region
      $region69: #{tpu_custom_call.1} parent=5 // pred_check
        _
      $region70: #{tpu_custom_call.1} parent=5 // pred_check_branch
        %518 = sbr.rel (%p515) target = $region72
      $region71: #{tpu_custom_call.1} parent=5 // pred_region
        %s519 = ssub.s32 %s31, 1
        %s520 = sand.u32 %s44, 1
        %s521 = scalar_lea.sflag [#allocation4], %s520
        %s522 = sand.u32 %s44, 1
        %s523 = smul.addr %s522, 128
        %s524 = scalar_lea.vmem [#allocation3], %s523
        // Predicated region
        $region73: #{tpu_custom_call.1} parent=71 // pred_check
          %p525 = pneg %p57
        $region74: #{tpu_custom_call.1} parent=71 // pred_check_branch
          %527 = sbr.rel (%p525) target = $region76
        $region75: #{tpu_custom_call.1} parent=71 // pred_region
          %528 = dma.done %s521, 2048
        $region76: #{tpu_custom_call.1} parent=71 // pred_fallthru
          _
        // Predicated region
        $region77: #{tpu_custom_call.1} parent=71 // pred_check
          %p529 = pneg %p78
        $region78: #{tpu_custom_call.1} parent=71 // pred_check_branch
          %531 = sbr.rel (%p529) target = $region80
        $region79: #{tpu_custom_call.1} parent=71 // pred_region
          %532 = dma.done [#allocation7], 128
        $region80: #{tpu_custom_call.1} parent=71 // pred_fallthru
          _
        // Predicated region
        $region81: #{tpu_custom_call.1} parent=71 // pred_check
          %p533 = pneg %p99
        $region82: #{tpu_custom_call.1} parent=71 // pred_check_branch
          %535 = sbr.rel (%p533) target = $region84
        $region83: #{tpu_custom_call.1} parent=71 // pred_region
          %536 = dma.done [#allocation7], 16
        $region84: #{tpu_custom_call.1} parent=71 // pred_fallthru
          _
        // Predicated region
        $region85: #{tpu_custom_call.1} parent=71 // pred_check
          %p537 = pneg %p120
        $region86: #{tpu_custom_call.1} parent=71 // pred_check_branch
          %539 = sbr.rel (%p537) target = $region88
        $region87: #{tpu_custom_call.1} parent=71 // pred_region
          %540 = dma.done [#allocation10], 16
        $region88: #{tpu_custom_call.1} parent=71 // pred_fallthru
          _
        // Predicated region
        $region89: #{tpu_custom_call.1} parent=71 // pred_check
          %p541 = pneg %p141
        $region90: #{tpu_custom_call.1} parent=71 // pred_check_branch
          %543 = sbr.rel (%p541) target = $region92
        $region91: #{tpu_custom_call.1} parent=71 // pred_region
          %544 = dma.done [#allocation10], 576
        $region92: #{tpu_custom_call.1} parent=71 // pred_fallthru
          _
        // Predicated region
        $region93: #{tpu_custom_call.1} parent=71 // pred_check
          %p545 = pneg %p162
        $region94: #{tpu_custom_call.1} parent=71 // pred_check_branch
          %547 = sbr.rel (%p545) target = $region96
        $region95: #{tpu_custom_call.1} parent=71 // pred_region
          %548 = dma.done [#allocation13], 16
        $region96: #{tpu_custom_call.1} parent=71 // pred_fallthru
          _
        // Predicated region
        $region97: #{tpu_custom_call.1} parent=71 // pred_check
          %p549 = pneg %p183
        $region98: #{tpu_custom_call.1} parent=71 // pred_check_branch
          %551 = sbr.rel (%p549) target = $region100
        $region99: #{tpu_custom_call.1} parent=71 // pred_region
          %552 = dma.done [#allocation13], 16
        $region100: #{tpu_custom_call.1} parent=71 // pred_fallthru
          _
        // Predicated region
        $region101: #{tpu_custom_call.1} parent=71 // pred_check
          %p553 = pneg %p204
        $region102: #{tpu_custom_call.1} parent=71 // pred_check_branch
          %555 = sbr.rel (%p553) target = $region104
        $region103: #{tpu_custom_call.1} parent=71 // pred_region
          %556 = dma.done [#allocation16], 64
        $region104: #{tpu_custom_call.1} parent=71 // pred_fallthru
          _
        // Predicated region
        $region105: #{tpu_custom_call.1} parent=71 // pred_check
          %p557 = pneg %p225
        $region106: #{tpu_custom_call.1} parent=71 // pred_check_branch
          %559 = sbr.rel (%p557) target = $region108
        $region107: #{tpu_custom_call.1} parent=71 // pred_region
          %560 = dma.done [#allocation16], 16
        $region108: #{tpu_custom_call.1} parent=71 // pred_fallthru
          _
        // Predicated region
        $region109: #{tpu_custom_call.1} parent=71 // pred_check
          %p561 = pneg %p246
        $region110: #{tpu_custom_call.1} parent=71 // pred_check_branch
          %563 = sbr.rel (%p561) target = $region112
        $region111: #{tpu_custom_call.1} parent=71 // pred_region
          %564 = dma.done [#allocation19], 16
        $region112: #{tpu_custom_call.1} parent=71 // pred_fallthru
          _
        // Predicated region
        $region113: #{tpu_custom_call.1} parent=71 // pred_check
          %p565 = pneg %p267
        $region114: #{tpu_custom_call.1} parent=71 // pred_check_branch
          %567 = sbr.rel (%p565) target = $region116
        $region115: #{tpu_custom_call.1} parent=71 // pred_region
          %568 = dma.done [#allocation19], 128
        $region116: #{tpu_custom_call.1} parent=71 // pred_fallthru
          _
        // Predicated region
        $region117: #{tpu_custom_call.1} parent=71 // pred_check
          %p569 = pneg %p288
        $region118: #{tpu_custom_call.1} parent=71 // pred_check_branch
          %571 = sbr.rel (%p569) target = $region120
        $region119: #{tpu_custom_call.1} parent=71 // pred_region
          %572 = dma.done [#allocation22], 16
        $region120: #{tpu_custom_call.1} parent=71 // pred_fallthru
          _
        // Predicated region
        $region121: #{tpu_custom_call.1} parent=71 // pred_check
          %p573 = pneg %p309
        $region122: #{tpu_custom_call.1} parent=71 // pred_check_branch
          %575 = sbr.rel (%p573) target = $region124
        $region123: #{tpu_custom_call.1} parent=71 // pred_region
          %576 = dma.done [#allocation22], 16
        $region124: #{tpu_custom_call.1} parent=71 // pred_fallthru
          _
        %s577 = sand.u32 %s44, 1
        %s578 = scalar_lea.sflag [#allocation4], %s577
        %s579 = sand.u32 %s44, 1
        %s580 = smul.addr %s579, 128
        %s581 = scalar_lea.vmem [#allocation3], %s580
        %p582 = pneg %p57
        %p583 = pneg %p54
        %p584 = pneg %p78
        %p585 = pneg %p75
        %p586 = pneg %p99
        %p587 = pneg %p96
        %p588 = pneg %p120
        %p589 = pneg %p117
        %p590 = pneg %p141
        %p591 = pneg %p138
        %p592 = pneg %p162
        %p593 = pneg %p159
        %p594 = pneg %p183
        %p595 = pneg %p180
        %p596 = pneg %p204
        %p597 = pneg %p201
        %p598 = pneg %p225
        %p599 = pneg %p222
        %p600 = pneg %p246
        %p601 = pneg %p243
        %p602 = pneg %p267
        %p603 = pneg %p264
        %p604 = pneg %p288
        %p605 = pneg %p285
        %p606 = pneg %p309
        %p607 = pneg %p306
        %p608 = pneg %p335
        %p609 = pneg %p332
        %s610 = sand.u32 %s322, 1
        %s611 = scalar_lea.sflag [#allocation5], %s610
        %s612 = sand.u32 %s322, 1
        %s613 = smul.addr %s612, 256
        %s614 = scalar_lea.vmem [#allocation24], %s613
        %v616 = vld [vmem:[%s524] sm:$0xf]
        %v617 = vld [vmem:[%s524 + $0x4] sm:$0xf]
        %v618 = vld [vmem:[%s524 + $0x8] sm:$0xf]
        %v619 = vld [vmem:[%s524 + $0xc] sm:$0xf]
        %v620 = vld [vmem:[%s524 + $0x10] sm:$0xf]
        %v621 = vld [vmem:[%s524 + $0x14] sm:$0xf]
        %v622 = vld [vmem:[%s524 + $0x18] sm:$0xf]
        %v623 = vld [vmem:[%s524 + $0x1c] sm:$0xf]
        %v624 = vld [vmem:[%s524 + $0x20] sm:$0xf]
        %v625 = vld [vmem:[%s524 + $0x24] sm:$0xf]
        %v626 = vld [vmem:[%s524 + $0x28] sm:$0xf]
        %v627 = vld [vmem:[%s524 + $0x2c] sm:$0xf]
        %v628 = vld [vmem:[%s524 + $0x30] sm:$0xf]
        %v629 = vld [vmem:[%s524 + $0x34] sm:$0xf]
        %v630 = vld [vmem:[%s524 + $0x38] sm:$0xf]
        %v631 = vld [vmem:[%s524 + $0x3c] sm:$0xf]
        %v632 = vld [vmem:[%s524 + $0x40] sm:$0xf]
        %v633 = vld [vmem:[%s524 + $0x44] sm:$0xf]
        %v634 = vld [vmem:[%s524 + $0x48] sm:$0xf]
        %v635 = vld [vmem:[%s524 + $0x4c] sm:$0xf]
        %v636 = vld [vmem:[%s524 + $0x50] sm:$0xf]
        %v637 = vld [vmem:[%s524 + $0x54] sm:$0xf]
        %v638 = vld [vmem:[%s524 + $0x58] sm:$0xf]
        %v639 = vld [vmem:[%s524 + $0x5c] sm:$0xf]
        %v640 = vld [vmem:[%s524 + $0x60] sm:$0xf]
        %v641 = vld [vmem:[%s524 + $0x64] sm:$0xf]
        %v642 = vld [vmem:[%s524 + $0x68] sm:$0xf]
        %v643 = vld [vmem:[%s524 + $0x6c] sm:$0xf]
        %v644 = vld [vmem:[%s524 + $0x70] sm:$0xf]
        %v645 = vld [vmem:[%s524 + $0x74] sm:$0xf]
        %v646 = vld [vmem:[%s524 + $0x78] sm:$0xf]
        %v647 = vld [vmem:[%s524 + $0x7c] sm:$0xf]
        %v648 = vld [vmem:[#allocation6] sm:$0xf]
        %v649 = vld [vmem:[#allocation6 + $0x4] sm:$0xf]
        %v682 = vunpack.c.l.b16 %v616
        %v683 = vunpack.c.l.b16 %v617
        %v684 = vunpack.c.l.b16 %v618
        %v685 = vunpack.c.l.b16 %v619
        %v686 = vunpack.c.l.b16 %v620
        %v687 = vunpack.c.l.b16 %v621
        %v688 = vunpack.c.l.b16 %v622
        %v689 = vunpack.c.l.b16 %v623
        %v690 = vunpack.c.l.b16 %v624
        %v691 = vunpack.c.l.b16 %v625
        %v692 = vunpack.c.l.b16 %v626
        %v693 = vunpack.c.l.b16 %v627
        %v694 = vunpack.c.l.b16 %v628
        %v695 = vunpack.c.l.b16 %v629
        %v696 = vunpack.c.l.b16 %v630
        %v697 = vunpack.c.l.b16 %v631
        %v698 = vunpack.c.l.b16 %v632
        %v699 = vunpack.c.l.b16 %v633
        %v700 = vunpack.c.l.b16 %v634
        %v701 = vunpack.c.l.b16 %v635
        %v702 = vunpack.c.l.b16 %v636
        %v703 = vunpack.c.l.b16 %v637
        %v704 = vunpack.c.l.b16 %v638
        %v705 = vunpack.c.l.b16 %v639
        %v706 = vunpack.c.l.b16 %v640
        %v707 = vunpack.c.l.b16 %v641
        %v708 = vunpack.c.l.b16 %v642
        %v709 = vunpack.c.l.b16 %v643
        %v710 = vunpack.c.l.b16 %v644
        %v711 = vunpack.c.l.b16 %v645
        %v712 = vunpack.c.l.b16 %v646
        %v713 = vunpack.c.l.b16 %v647
        %v714 = vpack.c.b16 %v683, %v682
        %v715 = vpack.c.b16 %v685, %v684
        %v716 = vpack.c.b16 %v687, %v686
        %v717 = vpack.c.b16 %v689, %v688
        %v718 = vpack.c.b16 %v691, %v690
        %v719 = vpack.c.b16 %v693, %v692
        %v720 = vpack.c.b16 %v695, %v694
        %v721 = vpack.c.b16 %v697, %v696
        %v722 = vpack.c.b16 %v699, %v698
        %v723 = vpack.c.b16 %v701, %v700
        %v724 = vpack.c.b16 %v703, %v702
        %v725 = vpack.c.b16 %v705, %v704
        %v726 = vpack.c.b16 %v707, %v706
        %v727 = vpack.c.b16 %v709, %v708
        %v728 = vpack.c.b16 %v711, %v710
        %v729 = vpack.c.b16 %v713, %v712
        %v732 = vunpack.c.l.b16 %v648
        %v733 = vunpack.c.l.b16 %v649
        %v734 = vpack.c.b16 %v733, %v732
        %vm736 = vcmask 130048
        %v738 = vsel %vm736, %v714, 0
        %v741 = vsel %vm736, %v715, 0
        %v744 = vsel %vm736, %v716, 0
        %v747 = vsel %vm736, %v717, 0
        %v750 = vsel %vm736, %v718, 0
        %v753 = vsel %vm736, %v719, 0
        %v756 = vsel %vm736, %v720, 0
        %v759 = vsel %vm736, %v721, 0
        %v762 = vsel %vm736, %v722, 0
        %v765 = vsel %vm736, %v723, 0
        %v768 = vsel %vm736, %v724, 0
        %v771 = vsel %vm736, %v725, 0
        %v774 = vsel %vm736, %v726, 0
        %v777 = vsel %vm736, %v727, 0
        %v780 = vsel %vm736, %v728, 0
        %v783 = vsel %vm736, %v729, 0
        %785 = vmatprep.subr.bf16.mxu0 0
        %786 = vmatpush1.bf16.msra.mxu0 %v734
        %787 = vmatprep.subr.bf16.mxu0 0
        %788 = vmatpush1.bf16.msra.mxu0 0
        %789 = vmatprep.subr.bf16.mxu0 0
        %790 = vmatpush1.bf16.msra.mxu0 0
        %791 = vmatprep.subr.bf16.mxu0 0
        %792 = vmatpush1.bf16.msra.mxu0 0
        %793 = vmatprep.subr.bf16.mxu0 0
        %794 = vmatpush1.bf16.msra.mxu0 0
        %795 = vmatprep.subr.bf16.mxu0 0
        %796 = vmatpush1.bf16.msra.mxu0 0
        %797 = vmatprep.subr.bf16.mxu0 0
        %798 = vmatpush1.bf16.msra.mxu0 0
        %799 = vmatprep.subr.bf16.mxu0 0
        %800 = vmatpush1.bf16.msra.mxu0 0
        %801 = vmatprep.subr.bf16.mxu0 0
        %802 = vmatpush1.bf16.msra.mxu0 0
        %803 = vmatprep.subr.bf16.mxu0 0
        %804 = vmatpush1.bf16.msra.mxu0 0
        %805 = vmatprep.subr.bf16.mxu0 0
        %806 = vmatpush1.bf16.msra.mxu0 0
        %807 = vmatprep.subr.bf16.mxu0 0
        %808 = vmatpush1.bf16.msra.mxu0 0
        %809 = vmatprep.subr.bf16.mxu0 0
        %810 = vmatpush1.bf16.msra.mxu0 0
        %811 = vmatprep.subr.bf16.mxu0 0
        %812 = vmatpush1.bf16.msra.mxu0 0
        %813 = vmatprep.subr.bf16.mxu0 0
        %814 = vmatpush1.bf16.msra.mxu0 0
        %815 = vmatprep.subr.bf16.mxu0 0
        %816 = vmatpush1.bf16.msra.mxu0 0
        %817 = vmatprep.mubr.bf16.mxu0 0
        %818 = vmatmul.mubr.bf16.gmra.mrb[0].mxu0 %v738
        %v819 = vpop.f32.mrb[0].mxu0
        %v820 = vadd.f32 0.0, %v819
        %v821 = vpop.f32.mrb[0].mxu0
        %v822 = vpop.f32.mrb[0].mxu0
        %v823 = vadd.f32 0.0, %v822
        %v824 = vpop.f32.mrb[0].mxu0
        %825 = vmatprep.mubr.bf16.mxu0 0
        %826 = vmatmul.mubr.bf16.gmra.mrb[0].mxu0 %v741
        %v827 = vpop.f32.mrb[0].mxu0
        %v828 = vadd.f32 0.0, %v827
        %v829 = vpop.f32.mrb[0].mxu0
        %v830 = vpop.f32.mrb[0].mxu0
        %v831 = vadd.f32 0.0, %v830
        %v832 = vpop.f32.mrb[0].mxu0
        %833 = vmatprep.mubr.bf16.mxu0 0
        %834 = vmatmul.mubr.bf16.gmra.mrb[0].mxu0 %v744
        %v835 = vpop.f32.mrb[0].mxu0
        %v836 = vadd.f32 0.0, %v835
        %v837 = vpop.f32.mrb[0].mxu0
        %v838 = vpop.f32.mrb[0].mxu0
        %v839 = vadd.f32 0.0, %v838
        %v840 = vpop.f32.mrb[0].mxu0
        %841 = vmatprep.mubr.bf16.mxu0 0
        %842 = vmatmul.mubr.bf16.gmra.mrb[0].mxu0 %v747
        %v843 = vpop.f32.mrb[0].mxu0
        %v844 = vadd.f32 0.0, %v843
        %v845 = vpop.f32.mrb[0].mxu0
        %v846 = vpop.f32.mrb[0].mxu0
        %v847 = vadd.f32 0.0, %v846
        %v848 = vpop.f32.mrb[0].mxu0
        %849 = vmatprep.mubr.bf16.mxu0 0
        %850 = vmatmul.mubr.bf16.gmra.mrb[0].mxu0 %v750
        %v851 = vpop.f32.mrb[0].mxu0
        %v852 = vadd.f32 0.0, %v851
        %v853 = vpop.f32.mrb[0].mxu0
        %v854 = vpop.f32.mrb[0].mxu0
        %v855 = vadd.f32 0.0, %v854
        %v856 = vpop.f32.mrb[0].mxu0
        %857 = vmatprep.mubr.bf16.mxu0 0
        %858 = vmatmul.mubr.bf16.gmra.mrb[0].mxu0 %v753
        %v859 = vpop.f32.mrb[0].mxu0
        %v860 = vadd.f32 0.0, %v859
        %v861 = vpop.f32.mrb[0].mxu0
        %v862 = vpop.f32.mrb[0].mxu0
        %v863 = vadd.f32 0.0, %v862
        %v864 = vpop.f32.mrb[0].mxu0
        %865 = vmatprep.mubr.bf16.mxu0 0
        %866 = vmatmul.mubr.bf16.gmra.mrb[0].mxu0 %v756
        %v867 = vpop.f32.mrb[0].mxu0
        %v868 = vadd.f32 0.0, %v867
        %v869 = vpop.f32.mrb[0].mxu0
        %v870 = vpop.f32.mrb[0].mxu0
        %v871 = vadd.f32 0.0, %v870
        %v872 = vpop.f32.mrb[0].mxu0
        %873 = vmatprep.mubr.bf16.mxu0 0
        %874 = vmatmul.mubr.bf16.gmra.mrb[0].mxu0 %v759
        %v875 = vpop.f32.mrb[0].mxu0
        %v876 = vadd.f32 0.0, %v875
        %v877 = vpop.f32.mrb[0].mxu0
        %v878 = vpop.f32.mrb[0].mxu0
        %v879 = vadd.f32 0.0, %v878
        %v880 = vpop.f32.mrb[0].mxu0
        %881 = vmatprep.mubr.bf16.mxu0 0
        %882 = vmatmul.mubr.bf16.gmra.mrb[0].mxu0 %v762
        %v883 = vpop.f32.mrb[0].mxu0
        %v884 = vadd.f32 0.0, %v883
        %v885 = vpop.f32.mrb[0].mxu0
        %v886 = vpop.f32.mrb[0].mxu0
        %v887 = vadd.f32 0.0, %v886
        %v888 = vpop.f32.mrb[0].mxu0
        %889 = vmatprep.mubr.bf16.mxu0 0
        %890 = vmatmul.mubr.bf16.gmra.mrb[0].mxu0 %v765
        %v891 = vpop.f32.mrb[0].mxu0
        %v892 = vadd.f32 0.0, %v891
        %v893 = vpop.f32.mrb[0].mxu0
        %v894 = vpop.f32.mrb[0].mxu0
        %v895 = vadd.f32 0.0, %v894
        %v896 = vpop.f32.mrb[0].mxu0
        %897 = vmatprep.mubr.bf16.mxu0 0
        %898 = vmatmul.mubr.bf16.gmra.mrb[0].mxu0 %v768
        %v899 = vpop.f32.mrb[0].mxu0
        %v900 = vadd.f32 0.0, %v899
        %v901 = vpop.f32.mrb[0].mxu0
        %v902 = vpop.f32.mrb[0].mxu0
        %v903 = vadd.f32 0.0, %v902
        %v904 = vpop.f32.mrb[0].mxu0
        %905 = vmatprep.mubr.bf16.mxu0 0
        %906 = vmatmul.mubr.bf16.gmra.mrb[0].mxu0 %v771
        %v907 = vpop.f32.mrb[0].mxu0
        %v908 = vadd.f32 0.0, %v907
        %v909 = vpop.f32.mrb[0].mxu0
        %v910 = vpop.f32.mrb[0].mxu0
        %v911 = vadd.f32 0.0, %v910
        %v912 = vpop.f32.mrb[0].mxu0
        %913 = vmatprep.mubr.bf16.mxu0 0
        %914 = vmatmul.mubr.bf16.gmra.mrb[0].mxu0 %v774
        %v915 = vpop.f32.mrb[0].mxu0
        %v916 = vadd.f32 0.0, %v915
        %v917 = vpop.f32.mrb[0].mxu0
        %v918 = vpop.f32.mrb[0].mxu0
        %v919 = vadd.f32 0.0, %v918
        %v920 = vpop.f32.mrb[0].mxu0
        %921 = vmatprep.mubr.bf16.mxu0 0
        %922 = vmatmul.mubr.bf16.gmra.mrb[0].mxu0 %v777
        %v923 = vpop.f32.mrb[0].mxu0
        %v924 = vadd.f32 0.0, %v923
        %v925 = vpop.f32.mrb[0].mxu0
        %v926 = vpop.f32.mrb[0].mxu0
        %v927 = vadd.f32 0.0, %v926
        %v928 = vpop.f32.mrb[0].mxu0
        %929 = vmatprep.mubr.bf16.mxu0 0
        %930 = vmatmul.mubr.bf16.gmra.mrb[0].mxu0 %v780
        %v931 = vpop.f32.mrb[0].mxu0
        %v932 = vadd.f32 0.0, %v931
        %v933 = vpop.f32.mrb[0].mxu0
        %v934 = vpop.f32.mrb[0].mxu0
        %v935 = vadd.f32 0.0, %v934
        %v936 = vpop.f32.mrb[0].mxu0
        %937 = vmatprep.mubr.bf16.mxu0 0
        %938 = vmatmul.mubr.bf16.gmra.mrb[0].mxu0 %v783
        %v939 = vpop.f32.mrb[0].mxu0
        %v940 = vadd.f32 0.0, %v939
        %v941 = vpop.f32.mrb[0].mxu0
        %v942 = vpop.f32.mrb[0].mxu0
        %v943 = vadd.f32 0.0, %v942
        %v944 = vpop.f32.mrb[0].mxu0
        %945 = vdwg.mxu0
        %v946 = vld [vmem:[#allocation8] sm:$0x1]
        %v948 = vlaneseq
        %v949 = vshrl.u32 %v948, 7
        %v950 = vsub.s32 0, %v949
        %v951 = vrot.slane %v946, %v950
        %v953 = vmul.f32 %v820, %v951
        %v954 = vmul.f32 %v823, %v951
        %v955 = vmul.f32 %v828, %v951
        %v956 = vmul.f32 %v831, %v951
        %v957 = vmul.f32 %v836, %v951
        %v958 = vmul.f32 %v839, %v951
        %v959 = vmul.f32 %v844, %v951
        %v960 = vmul.f32 %v847, %v951
        %v961 = vmul.f32 %v852, %v951
        %v962 = vmul.f32 %v855, %v951
        %v963 = vmul.f32 %v860, %v951
        %v964 = vmul.f32 %v863, %v951
        %v965 = vmul.f32 %v868, %v951
        %v966 = vmul.f32 %v871, %v951
        %v967 = vmul.f32 %v876, %v951
        %v968 = vmul.f32 %v879, %v951
        %v969 = vmul.f32 %v884, %v951
        %v970 = vmul.f32 %v887, %v951
        %v971 = vmul.f32 %v892, %v951
        %v972 = vmul.f32 %v895, %v951
        %v973 = vmul.f32 %v900, %v951
        %v974 = vmul.f32 %v903, %v951
        %v975 = vmul.f32 %v908, %v951
        %v976 = vmul.f32 %v911, %v951
        %v977 = vmul.f32 %v916, %v951
        %v978 = vmul.f32 %v919, %v951
        %v979 = vmul.f32 %v924, %v951
        %v980 = vmul.f32 %v927, %v951
        %v981 = vmul.f32 %v932, %v951
        %v982 = vmul.f32 %v935, %v951
        %v983 = vmul.f32 %v940, %v951
        %v984 = vmul.f32 %v943, %v951
        %v985 = vld [vmem:[#allocation9] sm:$0x1]
        %v987 = vlaneseq
        %v988 = vshrl.u32 %v987, 7
        %v989 = vsub.s32 0, %v988
        %v990 = vrot.slane %v985, %v989
        %v992 = vadd.f32 %v953, %v990
        %v993 = vadd.f32 %v954, %v990
        %v994 = vadd.f32 %v955, %v990
        %v995 = vadd.f32 %v956, %v990
        %v996 = vadd.f32 %v957, %v990
        %v997 = vadd.f32 %v958, %v990
        %v998 = vadd.f32 %v959, %v990
        %v999 = vadd.f32 %v960, %v990
        %v1000 = vadd.f32 %v961, %v990
        %v1001 = vadd.f32 %v962, %v990
        %v1002 = vadd.f32 %v963, %v990
        %v1003 = vadd.f32 %v964, %v990
        %v1004 = vadd.f32 %v965, %v990
        %v1005 = vadd.f32 %v966, %v990
        %v1006 = vadd.f32 %v967, %v990
        %v1007 = vadd.f32 %v968, %v990
        %v1008 = vadd.f32 %v969, %v990
        %v1009 = vadd.f32 %v970, %v990
        %v1010 = vadd.f32 %v971, %v990
        %v1011 = vadd.f32 %v972, %v990
        %v1012 = vadd.f32 %v973, %v990
        %v1013 = vadd.f32 %v974, %v990
        %v1014 = vadd.f32 %v975, %v990
        %v1015 = vadd.f32 %v976, %v990
        %v1016 = vadd.f32 %v977, %v990
        %v1017 = vadd.f32 %v978, %v990
        %v1018 = vadd.f32 %v979, %v990
        %v1019 = vadd.f32 %v980, %v990
        %v1020 = vadd.f32 %v981, %v990
        %v1021 = vadd.f32 %v982, %v990
        %v1022 = vadd.f32 %v983, %v990
        %v1023 = vadd.f32 %v984, %v990
        %v1024 = vmax.f32 %v992, 0.0
        %v1025 = vmax.f32 %v993, 0.0
        %v1026 = vmax.f32 %v994, 0.0
        %v1027 = vmax.f32 %v995, 0.0
        %v1028 = vmax.f32 %v996, 0.0
        %v1029 = vmax.f32 %v997, 0.0
        %v1030 = vmax.f32 %v998, 0.0
        %v1031 = vmax.f32 %v999, 0.0
        %v1032 = vmax.f32 %v1000, 0.0
        %v1033 = vmax.f32 %v1001, 0.0
        %v1034 = vmax.f32 %v1002, 0.0
        %v1035 = vmax.f32 %v1003, 0.0
        %v1036 = vmax.f32 %v1004, 0.0
        %v1037 = vmax.f32 %v1005, 0.0
        %v1038 = vmax.f32 %v1006, 0.0
        %v1039 = vmax.f32 %v1007, 0.0
        %v1040 = vmax.f32 %v1008, 0.0
        %v1041 = vmax.f32 %v1009, 0.0
        %v1042 = vmax.f32 %v1010, 0.0
        %v1043 = vmax.f32 %v1011, 0.0
        %v1044 = vmax.f32 %v1012, 0.0
        %v1045 = vmax.f32 %v1013, 0.0
        %v1046 = vmax.f32 %v1014, 0.0
        %v1047 = vmax.f32 %v1015, 0.0
        %v1048 = vmax.f32 %v1016, 0.0
        %v1049 = vmax.f32 %v1017, 0.0
        %v1050 = vmax.f32 %v1018, 0.0
        %v1051 = vmax.f32 %v1019, 0.0
        %v1052 = vmax.f32 %v1020, 0.0
        %v1053 = vmax.f32 %v1021, 0.0
        %v1054 = vmax.f32 %v1022, 0.0
        %v1055 = vmax.f32 %v1023, 0.0
        %vm1056 = vcmask 60416
        %1057 = vst.msk [vmem:[#allocation2] sm:$0xf] %vm1056, 0
        %1058 = vst.msk [vmem:[#allocation2 + $0x4] sm:$0xf] %vm1056, 0
        %vm1059 = vcmask 57344
        %1060 = vst.msk [vmem:[#allocation2 + $0x8] sm:$0x1] %vm1059, 0
        %1061 = vst.msk [vmem:[#allocation2 + $0xc] sm:$0xf] %vm1056, 0
        %1062 = vst.msk [vmem:[#allocation2 + $0x10] sm:$0xf] %vm1056, 0
        %1063 = vst.msk [vmem:[#allocation2 + $0x14] sm:$0x1] %vm1059, 0
        %1064 = vst.msk [vmem:[#allocation2 + $0x18] sm:$0xf] %vm1056, 0
        %1065 = vst.msk [vmem:[#allocation2 + $0x1c] sm:$0xf] %vm1056, 0
        %1066 = vst.msk [vmem:[#allocation2 + $0x20] sm:$0x1] %vm1059, 0
        %1067 = vst.msk [vmem:[#allocation2 + $0x24] sm:$0xf] %vm1056, 0
        %1068 = vst.msk [vmem:[#allocation2 + $0x28] sm:$0xf] %vm1056, 0
        %1069 = vst.msk [vmem:[#allocation2 + $0x2c] sm:$0x1] %vm1059, 0
        %1070 = vst.msk [vmem:[#allocation2 + $0x30] sm:$0xf] %vm1056, 0
        %1071 = vst.msk [vmem:[#allocation2 + $0x34] sm:$0xf] %vm1056, 0
        %1072 = vst.msk [vmem:[#allocation2 + $0x38] sm:$0x1] %vm1059, 0
        %1073 = vst.msk [vmem:[#allocation2 + $0x3c] sm:$0xf] %vm1056, 0
        %1074 = vst.msk [vmem:[#allocation2 + $0x40] sm:$0xf] %vm1056, 0
        %1075 = vst.msk [vmem:[#allocation2 + $0x44] sm:$0x1] %vm1059, 0
        %1076 = vst.msk [vmem:[#allocation2 + $0x48] sm:$0xf] %vm1056, 0
        %1077 = vst.msk [vmem:[#allocation2 + $0x4c] sm:$0xf] %vm1056, 0
        %1078 = vst.msk [vmem:[#allocation2 + $0x50] sm:$0x1] %vm1059, 0
        %1079 = vst.msk [vmem:[#allocation2 + $0x54] sm:$0xf] %vm1056, 0
        %1080 = vst.msk [vmem:[#allocation2 + $0x58] sm:$0xf] %vm1056, 0
        %1081 = vst.msk [vmem:[#allocation2 + $0x5c] sm:$0x1] %vm1059, 0
        %1082 = vst.msk [vmem:[#allocation2 + $0x60] sm:$0xf] %vm1056, 0
        %1083 = vst.msk [vmem:[#allocation2 + $0x64] sm:$0xf] %vm1056, 0
        %1084 = vst.msk [vmem:[#allocation2 + $0x68] sm:$0x1] %vm1059, 0
        %1085 = vst.msk [vmem:[#allocation2 + $0x6c] sm:$0xf] %vm1056, 0
        %1086 = vst.msk [vmem:[#allocation2 + $0x70] sm:$0xf] %vm1056, 0
        %1087 = vst.msk [vmem:[#allocation2 + $0x74] sm:$0x1] %vm1059, 0
        %1088 = vst.msk [vmem:[#allocation2 + $0x78] sm:$0xf] %vm1056, 0
        %1089 = vst.msk [vmem:[#allocation2 + $0x7c] sm:$0xf] %vm1056, 0
        %1090 = vst.msk [vmem:[#allocation2 + $0x80] sm:$0x1] %vm1059, 0
        %1091 = vst.msk [vmem:[#allocation2 + $0x84] sm:$0xf] %vm1056, 0
        %1092 = vst.msk [vmem:[#allocation2 + $0x88] sm:$0xf] %vm1056, 0
        %1093 = vst.msk [vmem:[#allocation2 + $0x8c] sm:$0x1] %vm1059, 0
        %1094 = vst.msk [vmem:[#allocation2 + $0x90] sm:$0xf] %vm1056, 0
        %1095 = vst.msk [vmem:[#allocation2 + $0x94] sm:$0xf] %vm1056, 0
        %1096 = vst.msk [vmem:[#allocation2 + $0x98] sm:$0x1] %vm1059, 0
        %1097 = vst.msk [vmem:[#allocation2 + $0x9c] sm:$0xf] %vm1056, 0
        %1098 = vst.msk [vmem:[#allocation2 + $0xa0] sm:$0xf] %vm1056, 0
        %1099 = vst.msk [vmem:[#allocation2 + $0xa4] sm:$0x1] %vm1059, 0
        %1100 = vst.msk [vmem:[#allocation2 + $0xa8] sm:$0xf] %vm1056, 0
        %1101 = vst.msk [vmem:[#allocation2 + $0xac] sm:$0xf] %vm1056, 0
        %1102 = vst.msk [vmem:[#allocation2 + $0xb0] sm:$0x1] %vm1059, 0
        %1103 = vst.msk [vmem:[#allocation2 + $0xb4] sm:$0xf] %vm1056, 0
        %1104 = vst.msk [vmem:[#allocation2 + $0xb8] sm:$0xf] %vm1056, 0
        %1105 = vst.msk [vmem:[#allocation2 + $0xbc] sm:$0x1] %vm1059, 0
        %1106 = vst.msk [vmem:[#allocation2 + $0xc0] sm:$0xf] %vm1056, 0
        %1107 = vst.msk [vmem:[#allocation2 + $0xc4] sm:$0xf] %vm1056, 0
        %1108 = vst.msk [vmem:[#allocation2 + $0xc8] sm:$0x1] %vm1059, 0
        %1109 = vst.msk [vmem:[#allocation2 + $0xcc] sm:$0xf] %vm1056, 0
        %1110 = vst.msk [vmem:[#allocation2 + $0xd0] sm:$0xf] %vm1056, 0
        %1111 = vst.msk [vmem:[#allocation2 + $0xd4] sm:$0x1] %vm1059, 0
        %v1112 = vpack.c.bf16 %v1025, %v1024
        %v1113 = vpack.c.bf16 %v1027, %v1026
        %v1114 = vpack.c.bf16 %v1029, %v1028
        %v1115 = vpack.c.bf16 %v1031, %v1030
        %v1116 = vpack.c.bf16 %v1033, %v1032
        %v1117 = vpack.c.bf16 %v1035, %v1034
        %v1118 = vpack.c.bf16 %v1037, %v1036
        %v1119 = vpack.c.bf16 %v1039, %v1038
        %v1120 = vpack.c.bf16 %v1041, %v1040
        %v1121 = vpack.c.bf16 %v1043, %v1042
        %v1122 = vpack.c.bf16 %v1045, %v1044
        %v1123 = vpack.c.bf16 %v1047, %v1046
        %v1124 = vpack.c.bf16 %v1049, %v1048
        %v1125 = vpack.c.bf16 %v1051, %v1050
        %v1126 = vpack.c.bf16 %v1053, %v1052
        %v1127 = vpack.c.bf16 %v1055, %v1054
        %v1144 = vunpack.c.l.b16 %v1112
        %v1145 = vunpack.c.h.b16 %v1112
        %v1146 = vunpack.c.l.b16 %v1113
        %v1147 = vunpack.c.h.b16 %v1113
        %v1148 = vunpack.c.l.b16 %v1114
        %v1149 = vunpack.c.h.b16 %v1114
        %v1150 = vunpack.c.l.b16 %v1115
        %v1151 = vunpack.c.h.b16 %v1115
        %v1152 = vunpack.c.l.b16 %v1116
        %v1153 = vunpack.c.h.b16 %v1116
        %v1154 = vunpack.c.l.b16 %v1117
        %v1155 = vunpack.c.h.b16 %v1117
        %v1156 = vunpack.c.l.b16 %v1118
        %v1157 = vunpack.c.h.b16 %v1118
        %v1158 = vunpack.c.l.b16 %v1119
        %v1159 = vunpack.c.h.b16 %v1119
        %v1160 = vunpack.c.l.b16 %v1120
        %v1161 = vunpack.c.h.b16 %v1120
        %v1162 = vunpack.c.l.b16 %v1121
        %v1163 = vunpack.c.h.b16 %v1121
        %v1164 = vunpack.c.l.b16 %v1122
        %v1165 = vunpack.c.h.b16 %v1122
        %v1166 = vunpack.c.l.b16 %v1123
        %v1167 = vunpack.c.h.b16 %v1123
        %v1168 = vunpack.c.l.b16 %v1124
        %v1169 = vunpack.c.h.b16 %v1124
        %v1170 = vunpack.c.l.b16 %v1125
        %v1171 = vunpack.c.h.b16 %v1125
        %v1172 = vunpack.c.l.b16 %v1126
        %v1173 = vunpack.c.h.b16 %v1126
        %v1174 = vunpack.c.l.b16 %v1127
        %v1175 = vunpack.c.h.b16 %v1127
        %v1176 = vpack.c.b16 %v1144, %v1144
        %v1177 = vpack.c.b16 %v1145, %v1145
        %v1178 = vpack.c.b16 %v1146, %v1146
        %v1179 = vpack.c.b16 %v1147, %v1147
        %v1180 = vpack.c.b16 %v1148, %v1148
        %v1181 = vpack.c.b16 %v1149, %v1149
        %v1182 = vpack.c.b16 %v1150, %v1150
        %v1183 = vpack.c.b16 %v1151, %v1151
        %v1184 = vpack.c.b16 %v1152, %v1152
        %v1185 = vpack.c.b16 %v1153, %v1153
        %v1186 = vpack.c.b16 %v1154, %v1154
        %v1187 = vpack.c.b16 %v1155, %v1155
        %v1188 = vpack.c.b16 %v1156, %v1156
        %v1189 = vpack.c.b16 %v1157, %v1157
        %v1190 = vpack.c.b16 %v1158, %v1158
        %v1191 = vpack.c.b16 %v1159, %v1159
        %v1192 = vpack.c.b16 %v1160, %v1160
        %v1193 = vpack.c.b16 %v1161, %v1161
        %v1194 = vpack.c.b16 %v1162, %v1162
        %v1195 = vpack.c.b16 %v1163, %v1163
        %v1196 = vpack.c.b16 %v1164, %v1164
        %v1197 = vpack.c.b16 %v1165, %v1165
        %v1198 = vpack.c.b16 %v1166, %v1166
        %v1199 = vpack.c.b16 %v1167, %v1167
        %v1200 = vpack.c.b16 %v1168, %v1168
        %v1201 = vpack.c.b16 %v1169, %v1169
        %v1202 = vpack.c.b16 %v1170, %v1170
        %v1203 = vpack.c.b16 %v1171, %v1171
        %v1204 = vpack.c.b16 %v1172, %v1172
        %v1205 = vpack.c.b16 %v1173, %v1173
        %v1206 = vpack.c.b16 %v1174, %v1174
        %v1207 = vpack.c.b16 %v1175, %v1175
        %vm1208 = vsmask.f32 256
        %vm1209 = vsmask.f32 4368
        %vm1210 = vmor %vm1208, %vm1209
        %v1212 = vshrl.u32 %v1176, 16
        %v1214 = vrot.slane %v1212, 7
        %v1215 = vshll.u32 %v1176, 16
        %v1217 = vor.u32 %v1214, %v1215
        %v1218 = vrot.slane %v1214, 4
        %v1220 = vshrl.u32 %v1177, 16
        %v1222 = vrot.slane %v1220, 7
        %v1223 = vshll.u32 %v1177, 16
        %v1225 = vor.u32 %v1222, %v1223
        %v1226 = vsel %vm1210, %v1218, %v1225
        %v1227 = vrot.slane %v1222, 4
        %v1229 = vshrl.u32 %v1178, 16
        %v1231 = vrot.slane %v1229, 7
        %v1232 = vshll.u32 %v1178, 16
        %v1234 = vor.u32 %v1231, %v1232
        %v1235 = vrot.slane %v1231, 4
        %v1237 = vshrl.u32 %v1179, 16
        %v1239 = vrot.slane %v1237, 7
        %v1240 = vshll.u32 %v1179, 16
        %v1242 = vor.u32 %v1239, %v1240
        %v1243 = vsel %vm1210, %v1235, %v1242
        %v1244 = vrot.slane %v1239, 4
        %v1246 = vshrl.u32 %v1180, 16
        %v1248 = vrot.slane %v1246, 7
        %v1249 = vshll.u32 %v1180, 16
        %v1251 = vor.u32 %v1248, %v1249
        %v1252 = vrot.slane %v1248, 4
        %v1254 = vshrl.u32 %v1181, 16
        %v1256 = vrot.slane %v1254, 7
        %v1257 = vshll.u32 %v1181, 16
        %v1259 = vor.u32 %v1256, %v1257
        %v1260 = vsel %vm1210, %v1252, %v1259
        %v1261 = vrot.slane %v1256, 4
        %v1263 = vshrl.u32 %v1182, 16
        %v1265 = vrot.slane %v1263, 7
        %v1266 = vshll.u32 %v1182, 16
        %v1268 = vor.u32 %v1265, %v1266
        %v1269 = vrot.slane %v1265, 4
        %v1271 = vshrl.u32 %v1183, 16
        %v1273 = vrot.slane %v1271, 7
        %v1274 = vshll.u32 %v1183, 16
        %v1276 = vor.u32 %v1273, %v1274
        %v1277 = vsel %vm1210, %v1269, %v1276
        %v1278 = vrot.slane %v1273, 4
        %v1280 = vshrl.u32 %v1184, 16
        %v1282 = vrot.slane %v1280, 7
        %v1283 = vshll.u32 %v1184, 16
        %v1285 = vor.u32 %v1282, %v1283
        %v1286 = vrot.slane %v1282, 4
        %v1288 = vshrl.u32 %v1185, 16
        %v1290 = vrot.slane %v1288, 7
        %v1291 = vshll.u32 %v1185, 16
        %v1293 = vor.u32 %v1290, %v1291
        %v1294 = vsel %vm1210, %v1286, %v1293
        %v1295 = vrot.slane %v1290, 4
        %v1297 = vshrl.u32 %v1186, 16
        %v1299 = vrot.slane %v1297, 7
        %v1300 = vshll.u32 %v1186, 16
        %v1302 = vor.u32 %v1299, %v1300
        %v1303 = vrot.slane %v1299, 4
        %v1305 = vshrl.u32 %v1187, 16
        %v1307 = vrot.slane %v1305, 7
        %v1308 = vshll.u32 %v1187, 16
        %v1310 = vor.u32 %v1307, %v1308
        %v1311 = vsel %vm1210, %v1303, %v1310
        %v1312 = vrot.slane %v1307, 4
        %v1314 = vshrl.u32 %v1188, 16
        %v1316 = vrot.slane %v1314, 7
        %v1317 = vshll.u32 %v1188, 16
        %v1319 = vor.u32 %v1316, %v1317
        %v1320 = vrot.slane %v1316, 4
        %v1322 = vshrl.u32 %v1189, 16
        %v1324 = vrot.slane %v1322, 7
        %v1325 = vshll.u32 %v1189, 16
        %v1327 = vor.u32 %v1324, %v1325
        %v1328 = vsel %vm1210, %v1320, %v1327
        %v1329 = vrot.slane %v1324, 4
        %v1331 = vshrl.u32 %v1190, 16
        %v1333 = vrot.slane %v1331, 7
        %v1334 = vshll.u32 %v1190, 16
        %v1336 = vor.u32 %v1333, %v1334
        %v1337 = vrot.slane %v1333, 4
        %v1339 = vshrl.u32 %v1191, 16
        %v1341 = vrot.slane %v1339, 7
        %v1342 = vshll.u32 %v1191, 16
        %v1344 = vor.u32 %v1341, %v1342
        %v1345 = vsel %vm1210, %v1337, %v1344
        %v1346 = vrot.slane %v1341, 4
        %v1348 = vshrl.u32 %v1192, 16
        %v1350 = vrot.slane %v1348, 7
        %v1351 = vshll.u32 %v1192, 16
        %v1353 = vor.u32 %v1350, %v1351
        %v1354 = vrot.slane %v1350, 4
        %v1356 = vshrl.u32 %v1193, 16
        %v1358 = vrot.slane %v1356, 7
        %v1359 = vshll.u32 %v1193, 16
        %v1361 = vor.u32 %v1358, %v1359
        %v1362 = vsel %vm1210, %v1354, %v1361
        %v1363 = vrot.slane %v1358, 4
        %v1365 = vshrl.u32 %v1194, 16
        %v1367 = vrot.slane %v1365, 7
        %v1368 = vshll.u32 %v1194, 16
        %v1370 = vor.u32 %v1367, %v1368
        %v1371 = vrot.slane %v1367, 4
        %v1373 = vshrl.u32 %v1195, 16
        %v1375 = vrot.slane %v1373, 7
        %v1376 = vshll.u32 %v1195, 16
        %v1378 = vor.u32 %v1375, %v1376
        %v1379 = vsel %vm1210, %v1371, %v1378
        %v1380 = vrot.slane %v1375, 4
        %v1382 = vshrl.u32 %v1196, 16
        %v1384 = vrot.slane %v1382, 7
        %v1385 = vshll.u32 %v1196, 16
        %v1387 = vor.u32 %v1384, %v1385
        %v1388 = vrot.slane %v1384, 4
        %v1390 = vshrl.u32 %v1197, 16
        %v1392 = vrot.slane %v1390, 7
        %v1393 = vshll.u32 %v1197, 16
        %v1395 = vor.u32 %v1392, %v1393
        %v1396 = vsel %vm1210, %v1388, %v1395
        %v1397 = vrot.slane %v1392, 4
        %v1399 = vshrl.u32 %v1198, 16
        %v1401 = vrot.slane %v1399, 7
        %v1402 = vshll.u32 %v1198, 16
        %v1404 = vor.u32 %v1401, %v1402
        %v1405 = vrot.slane %v1401, 4
        %v1407 = vshrl.u32 %v1199, 16
        %v1409 = vrot.slane %v1407, 7
        %v1410 = vshll.u32 %v1199, 16
        %v1412 = vor.u32 %v1409, %v1410
        %v1413 = vsel %vm1210, %v1405, %v1412
        %v1414 = vrot.slane %v1409, 4
        %v1416 = vshrl.u32 %v1200, 16
        %v1418 = vrot.slane %v1416, 7
        %v1419 = vshll.u32 %v1200, 16
        %v1421 = vor.u32 %v1418, %v1419
        %v1422 = vrot.slane %v1418, 4
        %v1424 = vshrl.u32 %v1201, 16
        %v1426 = vrot.slane %v1424, 7
        %v1427 = vshll.u32 %v1201, 16
        %v1429 = vor.u32 %v1426, %v1427
        %v1430 = vsel %vm1210, %v1422, %v1429
        %v1431 = vrot.slane %v1426, 4
        %v1433 = vshrl.u32 %v1202, 16
        %v1435 = vrot.slane %v1433, 7
        %v1436 = vshll.u32 %v1202, 16
        %v1438 = vor.u32 %v1435, %v1436
        %v1439 = vrot.slane %v1435, 4
        %v1441 = vshrl.u32 %v1203, 16
        %v1443 = vrot.slane %v1441, 7
        %v1444 = vshll.u32 %v1203, 16
        %v1446 = vor.u32 %v1443, %v1444
        %v1447 = vsel %vm1210, %v1439, %v1446
        %v1448 = vrot.slane %v1443, 4
        %v1450 = vshrl.u32 %v1204, 16
        %v1452 = vrot.slane %v1450, 7
        %v1453 = vshll.u32 %v1204, 16
        %v1455 = vor.u32 %v1452, %v1453
        %v1456 = vrot.slane %v1452, 4
        %v1458 = vshrl.u32 %v1205, 16
        %v1460 = vrot.slane %v1458, 7
        %v1461 = vshll.u32 %v1205, 16
        %v1463 = vor.u32 %v1460, %v1461
        %v1464 = vsel %vm1210, %v1456, %v1463
        %v1465 = vrot.slane %v1460, 4
        %v1467 = vshrl.u32 %v1206, 16
        %v1469 = vrot.slane %v1467, 7
        %v1470 = vshll.u32 %v1206, 16
        %v1472 = vor.u32 %v1469, %v1470
        %v1473 = vrot.slane %v1469, 4
        %v1475 = vshrl.u32 %v1207, 16
        %v1477 = vrot.slane %v1475, 7
        %v1478 = vshll.u32 %v1207, 16
        %v1480 = vor.u32 %v1477, %v1478
        %v1481 = vsel %vm1210, %v1473, %v1480
        %v1482 = vrot.slane %v1477, 4
        %s1531 = scalar_lea.vmem [#allocation2], 12
        %vm1532 = vcmask 60416
        %vm1533 = vsmask.f32 7938
        %vm1534 = vmand %vm1532, %vm1533
        %v1535 = vld [vmem:[%s1531] sm:$0xf]
        %v1536 = vsel %vm1534, %v1217, %v1535
        %1537 = vst [vmem:[%s1531] sm:$0xf] %v1536
        %1538 = vst.msk [vmem:[%s1531 + $0x4] sm:$0xf] %vm1056, %v1226
        %vm1539 = vcmask 57344
        %vm1540 = vmand %vm1539, %vm1208
        %v1541 = vld [vmem:[%s1531 + $0x8] sm:$0x1]
        %v1542 = vsel %vm1540, %v1227, %v1541
        %1543 = vst [vmem:[%s1531 + $0x8] sm:$0x1] %v1542
        %v1544 = vld [vmem:[%s1531 + $0xc] sm:$0xf]
        %v1545 = vsel %vm1534, %v1234, %v1544
        %1546 = vst [vmem:[%s1531 + $0xc] sm:$0xf] %v1545
        %1547 = vst.msk [vmem:[%s1531 + $0x10] sm:$0xf] %vm1056, %v1243
        %v1548 = vld [vmem:[%s1531 + $0x14] sm:$0x1]
        %v1549 = vsel %vm1540, %v1244, %v1548
        %1550 = vst [vmem:[%s1531 + $0x14] sm:$0x1] %v1549
        %v1551 = vld [vmem:[%s1531 + $0x18] sm:$0xf]
        %v1552 = vsel %vm1534, %v1251, %v1551
        %1553 = vst [vmem:[%s1531 + $0x18] sm:$0xf] %v1552
        %1554 = vst.msk [vmem:[%s1531 + $0x1c] sm:$0xf] %vm1056, %v1260
        %v1555 = vld [vmem:[%s1531 + $0x20] sm:$0x1]
        %v1556 = vsel %vm1540, %v1261, %v1555
        %1557 = vst [vmem:[%s1531 + $0x20] sm:$0x1] %v1556
        %v1558 = vld [vmem:[%s1531 + $0x24] sm:$0xf]
        %v1559 = vsel %vm1534, %v1268, %v1558
        %1560 = vst [vmem:[%s1531 + $0x24] sm:$0xf] %v1559
        %1561 = vst.msk [vmem:[%s1531 + $0x28] sm:$0xf] %vm1056, %v1277
        %v1562 = vld [vmem:[%s1531 + $0x2c] sm:$0x1]
        %v1563 = vsel %vm1540, %v1278, %v1562
        %1564 = vst [vmem:[%s1531 + $0x2c] sm:$0x1] %v1563
        %v1565 = vld [vmem:[%s1531 + $0x30] sm:$0xf]
        %v1566 = vsel %vm1534, %v1285, %v1565
        %1567 = vst [vmem:[%s1531 + $0x30] sm:$0xf] %v1566
        %1568 = vst.msk [vmem:[%s1531 + $0x34] sm:$0xf] %vm1056, %v1294
        %v1569 = vld [vmem:[%s1531 + $0x38] sm:$0x1]
        %v1570 = vsel %vm1540, %v1295, %v1569
        %1571 = vst [vmem:[%s1531 + $0x38] sm:$0x1] %v1570
        %v1572 = vld [vmem:[%s1531 + $0x3c] sm:$0xf]
        %v1573 = vsel %vm1534, %v1302, %v1572
        %1574 = vst [vmem:[%s1531 + $0x3c] sm:$0xf] %v1573
        %1575 = vst.msk [vmem:[%s1531 + $0x40] sm:$0xf] %vm1056, %v1311
        %v1576 = vld [vmem:[%s1531 + $0x44] sm:$0x1]
        %v1577 = vsel %vm1540, %v1312, %v1576
        %1578 = vst [vmem:[%s1531 + $0x44] sm:$0x1] %v1577
        %v1579 = vld [vmem:[%s1531 + $0x48] sm:$0xf]
        %v1580 = vsel %vm1534, %v1319, %v1579
        %1581 = vst [vmem:[%s1531 + $0x48] sm:$0xf] %v1580
        %1582 = vst.msk [vmem:[%s1531 + $0x4c] sm:$0xf] %vm1056, %v1328
        %v1583 = vld [vmem:[%s1531 + $0x50] sm:$0x1]
        %v1584 = vsel %vm1540, %v1329, %v1583
        %1585 = vst [vmem:[%s1531 + $0x50] sm:$0x1] %v1584
        %v1586 = vld [vmem:[%s1531 + $0x54] sm:$0xf]
        %v1587 = vsel %vm1534, %v1336, %v1586
        %1588 = vst [vmem:[%s1531 + $0x54] sm:$0xf] %v1587
        %1589 = vst.msk [vmem:[%s1531 + $0x58] sm:$0xf] %vm1056, %v1345
        %v1590 = vld [vmem:[%s1531 + $0x5c] sm:$0x1]
        %v1591 = vsel %vm1540, %v1346, %v1590
        %1592 = vst [vmem:[%s1531 + $0x5c] sm:$0x1] %v1591
        %v1593 = vld [vmem:[%s1531 + $0x60] sm:$0xf]
        %v1594 = vsel %vm1534, %v1353, %v1593
        %1595 = vst [vmem:[%s1531 + $0x60] sm:$0xf] %v1594
        %1596 = vst.msk [vmem:[%s1531 + $0x64] sm:$0xf] %vm1056, %v1362
        %v1597 = vld [vmem:[%s1531 + $0x68] sm:$0x1]
        %v1598 = vsel %vm1540, %v1363, %v1597
        %1599 = vst [vmem:[%s1531 + $0x68] sm:$0x1] %v1598
        %v1600 = vld [vmem:[%s1531 + $0x6c] sm:$0xf]
        %v1601 = vsel %vm1534, %v1370, %v1600
        %1602 = vst [vmem:[%s1531 + $0x6c] sm:$0xf] %v1601
        %1603 = vst.msk [vmem:[%s1531 + $0x70] sm:$0xf] %vm1056, %v1379
        %v1604 = vld [vmem:[%s1531 + $0x74] sm:$0x1]
        %v1605 = vsel %vm1540, %v1380, %v1604
        %1606 = vst [vmem:[%s1531 + $0x74] sm:$0x1] %v1605
        %v1607 = vld [vmem:[%s1531 + $0x78] sm:$0xf]
        %v1608 = vsel %vm1534, %v1387, %v1607
        %1609 = vst [vmem:[%s1531 + $0x78] sm:$0xf] %v1608
        %1610 = vst.msk [vmem:[%s1531 + $0x7c] sm:$0xf] %vm1056, %v1396
        %v1611 = vld [vmem:[%s1531 + $0x80] sm:$0x1]
        %v1612 = vsel %vm1540, %v1397, %v1611
        %1613 = vst [vmem:[%s1531 + $0x80] sm:$0x1] %v1612
        %v1614 = vld [vmem:[%s1531 + $0x84] sm:$0xf]
        %v1615 = vsel %vm1534, %v1404, %v1614
        %1616 = vst [vmem:[%s1531 + $0x84] sm:$0xf] %v1615
        %1617 = vst.msk [vmem:[%s1531 + $0x88] sm:$0xf] %vm1056, %v1413
        %v1618 = vld [vmem:[%s1531 + $0x8c] sm:$0x1]
        %v1619 = vsel %vm1540, %v1414, %v1618
        %1620 = vst [vmem:[%s1531 + $0x8c] sm:$0x1] %v1619
        %v1621 = vld [vmem:[%s1531 + $0x90] sm:$0xf]
        %v1622 = vsel %vm1534, %v1421, %v1621
        %1623 = vst [vmem:[%s1531 + $0x90] sm:$0xf] %v1622
        %1624 = vst.msk [vmem:[%s1531 + $0x94] sm:$0xf] %vm1056, %v1430
        %v1625 = vld [vmem:[%s1531 + $0x98] sm:$0x1]
        %v1626 = vsel %vm1540, %v1431, %v1625
        %1627 = vst [vmem:[%s1531 + $0x98] sm:$0x1] %v1626
        %v1628 = vld [vmem:[%s1531 + $0x9c] sm:$0xf]
        %v1629 = vsel %vm1534, %v1438, %v1628
        %1630 = vst [vmem:[%s1531 + $0x9c] sm:$0xf] %v1629
        %1631 = vst.msk [vmem:[%s1531 + $0xa0] sm:$0xf] %vm1056, %v1447
        %v1632 = vld [vmem:[%s1531 + $0xa4] sm:$0x1]
        %v1633 = vsel %vm1540, %v1448, %v1632
        %1634 = vst [vmem:[%s1531 + $0xa4] sm:$0x1] %v1633
        %v1635 = vld [vmem:[%s1531 + $0xa8] sm:$0xf]
        %v1636 = vsel %vm1534, %v1455, %v1635
        %1637 = vst [vmem:[%s1531 + $0xa8] sm:$0xf] %v1636
        %1638 = vst.msk [vmem:[%s1531 + $0xac] sm:$0xf] %vm1056, %v1464
        %v1639 = vld [vmem:[%s1531 + $0xb0] sm:$0x1]
        %v1640 = vsel %vm1540, %v1465, %v1639
        %1641 = vst [vmem:[%s1531 + $0xb0] sm:$0x1] %v1640
        %v1642 = vld [vmem:[%s1531 + $0xb4] sm:$0xf]
        %v1643 = vsel %vm1534, %v1472, %v1642
        %1644 = vst [vmem:[%s1531 + $0xb4] sm:$0xf] %v1643
        %1645 = vst.msk [vmem:[%s1531 + $0xb8] sm:$0xf] %vm1056, %v1481
        %v1646 = vld [vmem:[%s1531 + $0xbc] sm:$0x1]
        %v1647 = vsel %vm1540, %v1482, %v1646
        %1648 = vst [vmem:[%s1531 + $0xbc] sm:$0x1] %v1647
        %v1649 = vld [vmem:[#allocation2] sm:$0xf]
        %v1650 = vld [vmem:[#allocation2 + $0x4] sm:$0xf]
        %v1651 = vld [vmem:[#allocation2 + $0xc] sm:$0xf]
        %v1652 = vld [vmem:[#allocation2 + $0x10] sm:$0xf]
        %v1653 = vld [vmem:[#allocation2 + $0x18] sm:$0xf]
        %v1654 = vld [vmem:[#allocation2 + $0x1c] sm:$0xf]
        %v1655 = vld [vmem:[#allocation2 + $0x24] sm:$0xf]
        %v1656 = vld [vmem:[#allocation2 + $0x28] sm:$0xf]
        %v1657 = vld [vmem:[#allocation2 + $0x30] sm:$0xf]
        %v1658 = vld [vmem:[#allocation2 + $0x34] sm:$0xf]
        %v1659 = vld [vmem:[#allocation2 + $0x3c] sm:$0xf]
        %v1660 = vld [vmem:[#allocation2 + $0x40] sm:$0xf]
        %v1661 = vld [vmem:[#allocation2 + $0x48] sm:$0xf]
        %v1662 = vld [vmem:[#allocation2 + $0x4c] sm:$0xf]
        %v1663 = vld [vmem:[#allocation2 + $0x54] sm:$0xf]
        %v1664 = vld [vmem:[#allocation2 + $0x58] sm:$0xf]
        %v1665 = vld [vmem:[#allocation2 + $0x60] sm:$0xf]
        %v1666 = vld [vmem:[#allocation2 + $0x64] sm:$0xf]
        %v1667 = vld [vmem:[#allocation2 + $0x6c] sm:$0xf]
        %v1668 = vld [vmem:[#allocation2 + $0x70] sm:$0xf]
        %v1669 = vld [vmem:[#allocation2 + $0x78] sm:$0xf]
        %v1670 = vld [vmem:[#allocation2 + $0x7c] sm:$0xf]
        %v1671 = vld [vmem:[#allocation2 + $0x84] sm:$0xf]
        %v1672 = vld [vmem:[#allocation2 + $0x88] sm:$0xf]
        %v1673 = vld [vmem:[#allocation2 + $0x90] sm:$0xf]
        %v1674 = vld [vmem:[#allocation2 + $0x94] sm:$0xf]
        %v1675 = vld [vmem:[#allocation2 + $0x9c] sm:$0xf]
        %v1676 = vld [vmem:[#allocation2 + $0xa0] sm:$0xf]
        %v1677 = vld [vmem:[#allocation2 + $0xa8] sm:$0xf]
        %v1678 = vld [vmem:[#allocation2 + $0xac] sm:$0xf]
        %v1679 = vld [vmem:[#allocation2 + $0xb4] sm:$0xf]
        %v1680 = vld [vmem:[#allocation2 + $0xb8] sm:$0xf]
        %v1681 = vld [vmem:[#allocation11] sm:$0xf]
        %v1682 = vld [vmem:[#allocation2 + $0x8] sm:$0x1]
        %v1683 = vld [vmem:[#allocation2 + $0x14] sm:$0x1]
        %v1684 = vld [vmem:[#allocation2 + $0x20] sm:$0x1]
        %v1685 = vld [vmem:[#allocation2 + $0x2c] sm:$0x1]
        %v1686 = vld [vmem:[#allocation2 + $0x38] sm:$0x1]
        %v1687 = vld [vmem:[#allocation2 + $0x44] sm:$0x1]
        %v1688 = vld [vmem:[#allocation2 + $0x50] sm:$0x1]
        %v1689 = vld [vmem:[#allocation2 + $0x5c] sm:$0x1]
        %v1690 = vld [vmem:[#allocation2 + $0x68] sm:$0x1]
        %v1691 = vld [vmem:[#allocation2 + $0x74] sm:$0x1]
        %v1692 = vld [vmem:[#allocation2 + $0x80] sm:$0x1]
        %v1693 = vld [vmem:[#allocation2 + $0x8c] sm:$0x1]
        %v1694 = vld [vmem:[#allocation2 + $0x98] sm:$0x1]
        %v1695 = vld [vmem:[#allocation2 + $0xa4] sm:$0x1]
        %v1696 = vld [vmem:[#allocation2 + $0xb0] sm:$0x1]
        %v1697 = vld [vmem:[#allocation2 + $0xbc] sm:$0x1]
        %vm1698 = vsmask.f32 3328
        %vm1699 = vsmask.f32 7440
        %vm1700 = vmor %vm1698, %vm1699
        %v1702 = vshrl.u32 %v1649, 16
        %v1704 = vrot.slane %v1702, 4
        %v1705 = vshll.u32 %v1649, 16
        %v1707 = vrot.slane %v1705, 5
        %v1708 = vor.u32 %v1704, %v1707
        %v1709 = vrot.slane %v1708, 4
        %v1711 = vshll.u32 %v1650, 16
        %v1713 = vrot.slane %v1711, 5
        %v1714 = vsel %vm1700, %v1709, %v1713
        %v1715 = vshrl.u32 %v1650, 16
        %v1717 = vrot.slane %v1715, 4
        %v1718 = vor.u32 %v1717, %v1713
        %v1719 = vrot.slane %v1718, 4
        %v1721 = vshll.u32 %v1682, 16
        %v1723 = vrot.slane %v1721, 5
        %v1724 = vsel %vm1700, %v1719, %v1723
        %v1726 = vshrl.u32 %v1651, 16
        %v1728 = vrot.slane %v1726, 4
        %v1729 = vshll.u32 %v1651, 16
        %v1731 = vrot.slane %v1729, 5
        %v1732 = vor.u32 %v1728, %v1731
        %v1733 = vrot.slane %v1732, 4
        %v1735 = vshll.u32 %v1652, 16
        %v1737 = vrot.slane %v1735, 5
        %v1738 = vsel %vm1700, %v1733, %v1737
        %v1739 = vshrl.u32 %v1652, 16
        %v1741 = vrot.slane %v1739, 4
        %v1742 = vor.u32 %v1741, %v1737
        %v1743 = vrot.slane %v1742, 4
        %v1745 = vshll.u32 %v1683, 16
        %v1747 = vrot.slane %v1745, 5
        %v1748 = vsel %vm1700, %v1743, %v1747
        %v1750 = vshrl.u32 %v1653, 16
        %v1752 = vrot.slane %v1750, 4
        %v1753 = vshll.u32 %v1653, 16
        %v1755 = vrot.slane %v1753, 5
        %v1756 = vor.u32 %v1752, %v1755
        %v1757 = vrot.slane %v1756, 4
        %v1759 = vshll.u32 %v1654, 16
        %v1761 = vrot.slane %v1759, 5
        %v1762 = vsel %vm1700, %v1757, %v1761
        %v1763 = vshrl.u32 %v1654, 16
        %v1765 = vrot.slane %v1763, 4
        %v1766 = vor.u32 %v1765, %v1761
        %v1767 = vrot.slane %v1766, 4
        %v1769 = vshll.u32 %v1684, 16
        %v1771 = vrot.slane %v1769, 5
        %v1772 = vsel %vm1700, %v1767, %v1771
        %v1774 = vshrl.u32 %v1655, 16
        %v1776 = vrot.slane %v1774, 4
        %v1777 = vshll.u32 %v1655, 16
        %v1779 = vrot.slane %v1777, 5
        %v1780 = vor.u32 %v1776, %v1779
        %v1781 = vrot.slane %v1780, 4
        %v1783 = vshll.u32 %v1656, 16
        %v1785 = vrot.slane %v1783, 5
        %v1786 = vsel %vm1700, %v1781, %v1785
        %v1787 = vshrl.u32 %v1656, 16
        %v1789 = vrot.slane %v1787, 4
        %v1790 = vor.u32 %v1789, %v1785
        %v1791 = vrot.slane %v1790, 4
        %v1793 = vshll.u32 %v1685, 16
        %v1795 = vrot.slane %v1793, 5
        %v1796 = vsel %vm1700, %v1791, %v1795
        %v1798 = vshrl.u32 %v1657, 16
        %v1800 = vrot.slane %v1798, 4
        %v1801 = vshll.u32 %v1657, 16
        %v1803 = vrot.slane %v1801, 5
        %v1804 = vor.u32 %v1800, %v1803
        %v1805 = vrot.slane %v1804, 4
        %v1807 = vshll.u32 %v1658, 16
        %v1809 = vrot.slane %v1807, 5
        %v1810 = vsel %vm1700, %v1805, %v1809
        %v1811 = vshrl.u32 %v1658, 16
        %v1813 = vrot.slane %v1811, 4
        %v1814 = vor.u32 %v1813, %v1809
        %v1815 = vrot.slane %v1814, 4
        %v1817 = vshll.u32 %v1686, 16
        %v1819 = vrot.slane %v1817, 5
        %v1820 = vsel %vm1700, %v1815, %v1819
        %v1822 = vshrl.u32 %v1659, 16
        %v1824 = vrot.slane %v1822, 4
        %v1825 = vshll.u32 %v1659, 16
        %v1827 = vrot.slane %v1825, 5
        %v1828 = vor.u32 %v1824, %v1827
        %v1829 = vrot.slane %v1828, 4
        %v1831 = vshll.u32 %v1660, 16
        %v1833 = vrot.slane %v1831, 5
        %v1834 = vsel %vm1700, %v1829, %v1833
        %v1835 = vshrl.u32 %v1660, 16
        %v1837 = vrot.slane %v1835, 4
        %v1838 = vor.u32 %v1837, %v1833
        %v1839 = vrot.slane %v1838, 4
        %v1841 = vshll.u32 %v1687, 16
        %v1843 = vrot.slane %v1841, 5
        %v1844 = vsel %vm1700, %v1839, %v1843
        %v1846 = vshrl.u32 %v1661, 16
        %v1848 = vrot.slane %v1846, 4
        %v1849 = vshll.u32 %v1661, 16
        %v1851 = vrot.slane %v1849, 5
        %v1852 = vor.u32 %v1848, %v1851
        %v1853 = vrot.slane %v1852, 4
        %v1855 = vshll.u32 %v1662, 16
        %v1857 = vrot.slane %v1855, 5
        %v1858 = vsel %vm1700, %v1853, %v1857
        %v1859 = vshrl.u32 %v1662, 16
        %v1861 = vrot.slane %v1859, 4
        %v1862 = vor.u32 %v1861, %v1857
        %v1863 = vrot.slane %v1862, 4
        %v1865 = vshll.u32 %v1688, 16
        %v1867 = vrot.slane %v1865, 5
        %v1868 = vsel %vm1700, %v1863, %v1867
        %v1870 = vshrl.u32 %v1663, 16
        %v1872 = vrot.slane %v1870, 4
        %v1873 = vshll.u32 %v1663, 16
        %v1875 = vrot.slane %v1873, 5
        %v1876 = vor.u32 %v1872, %v1875
        %v1877 = vrot.slane %v1876, 4
        %v1879 = vshll.u32 %v1664, 16
        %v1881 = vrot.slane %v1879, 5
        %v1882 = vsel %vm1700, %v1877, %v1881
        %v1883 = vshrl.u32 %v1664, 16
        %v1885 = vrot.slane %v1883, 4
        %v1886 = vor.u32 %v1885, %v1881
        %v1887 = vrot.slane %v1886, 4
        %v1889 = vshll.u32 %v1689, 16
        %v1891 = vrot.slane %v1889, 5
        %v1892 = vsel %vm1700, %v1887, %v1891
        %v1894 = vshrl.u32 %v1665, 16
        %v1896 = vrot.slane %v1894, 4
        %v1897 = vshll.u32 %v1665, 16
        %v1899 = vrot.slane %v1897, 5
        %v1900 = vor.u32 %v1896, %v1899
        %v1901 = vrot.slane %v1900, 4
        %v1903 = vshll.u32 %v1666, 16
        %v1905 = vrot.slane %v1903, 5
        %v1906 = vsel %vm1700, %v1901, %v1905
        %v1907 = vshrl.u32 %v1666, 16
        %v1909 = vrot.slane %v1907, 4
        %v1910 = vor.u32 %v1909, %v1905
        %v1911 = vrot.slane %v1910, 4
        %v1913 = vshll.u32 %v1690, 16
        %v1915 = vrot.slane %v1913, 5
        %v1916 = vsel %vm1700, %v1911, %v1915
        %v1918 = vshrl.u32 %v1667, 16
        %v1920 = vrot.slane %v1918, 4
        %v1921 = vshll.u32 %v1667, 16
        %v1923 = vrot.slane %v1921, 5
        %v1924 = vor.u32 %v1920, %v1923
        %v1925 = vrot.slane %v1924, 4
        %v1927 = vshll.u32 %v1668, 16
        %v1929 = vrot.slane %v1927, 5
        %v1930 = vsel %vm1700, %v1925, %v1929
        %v1931 = vshrl.u32 %v1668, 16
        %v1933 = vrot.slane %v1931, 4
        %v1934 = vor.u32 %v1933, %v1929
        %v1935 = vrot.slane %v1934, 4
        %v1937 = vshll.u32 %v1691, 16
        %v1939 = vrot.slane %v1937, 5
        %v1940 = vsel %vm1700, %v1935, %v1939
        %v1942 = vshrl.u32 %v1669, 16
        %v1944 = vrot.slane %v1942, 4
        %v1945 = vshll.u32 %v1669, 16
        %v1947 = vrot.slane %v1945, 5
        %v1948 = vor.u32 %v1944, %v1947
        %v1949 = vrot.slane %v1948, 4
        %v1951 = vshll.u32 %v1670, 16
        %v1953 = vrot.slane %v1951, 5
        %v1954 = vsel %vm1700, %v1949, %v1953
        %v1955 = vshrl.u32 %v1670, 16
        %v1957 = vrot.slane %v1955, 4
        %v1958 = vor.u32 %v1957, %v1953
        %v1959 = vrot.slane %v1958, 4
        %v1961 = vshll.u32 %v1692, 16
        %v1963 = vrot.slane %v1961, 5
        %v1964 = vsel %vm1700, %v1959, %v1963
        %v1966 = vshrl.u32 %v1671, 16
        %v1968 = vrot.slane %v1966, 4
        %v1969 = vshll.u32 %v1671, 16
        %v1971 = vrot.slane %v1969, 5
        %v1972 = vor.u32 %v1968, %v1971
        %v1973 = vrot.slane %v1972, 4
        %v1975 = vshll.u32 %v1672, 16
        %v1977 = vrot.slane %v1975, 5
        %v1978 = vsel %vm1700, %v1973, %v1977
        %v1979 = vshrl.u32 %v1672, 16
        %v1981 = vrot.slane %v1979, 4
        %v1982 = vor.u32 %v1981, %v1977
        %v1983 = vrot.slane %v1982, 4
        %v1985 = vshll.u32 %v1693, 16
        %v1987 = vrot.slane %v1985, 5
        %v1988 = vsel %vm1700, %v1983, %v1987
        %v1990 = vshrl.u32 %v1673, 16
        %v1992 = vrot.slane %v1990, 4
        %v1993 = vshll.u32 %v1673, 16
        %v1995 = vrot.slane %v1993, 5
        %v1996 = vor.u32 %v1992, %v1995
        %v1997 = vrot.slane %v1996, 4
        %v1999 = vshll.u32 %v1674, 16
        %v2001 = vrot.slane %v1999, 5
        %v2002 = vsel %vm1700, %v1997, %v2001
        %v2003 = vshrl.u32 %v1674, 16
        %v2005 = vrot.slane %v2003, 4
        %v2006 = vor.u32 %v2005, %v2001
        %v2007 = vrot.slane %v2006, 4
        %v2009 = vshll.u32 %v1694, 16
        %v2011 = vrot.slane %v2009, 5
        %v2012 = vsel %vm1700, %v2007, %v2011
        %v2014 = vshrl.u32 %v1675, 16
        %v2016 = vrot.slane %v2014, 4
        %v2017 = vshll.u32 %v1675, 16
        %v2019 = vrot.slane %v2017, 5
        %v2020 = vor.u32 %v2016, %v2019
        %v2021 = vrot.slane %v2020, 4
        %v2023 = vshll.u32 %v1676, 16
        %v2025 = vrot.slane %v2023, 5
        %v2026 = vsel %vm1700, %v2021, %v2025
        %v2027 = vshrl.u32 %v1676, 16
        %v2029 = vrot.slane %v2027, 4
        %v2030 = vor.u32 %v2029, %v2025
        %v2031 = vrot.slane %v2030, 4
        %v2033 = vshll.u32 %v1695, 16
        %v2035 = vrot.slane %v2033, 5
        %v2036 = vsel %vm1700, %v2031, %v2035
        %v2038 = vshrl.u32 %v1677, 16
        %v2040 = vrot.slane %v2038, 4
        %v2041 = vshll.u32 %v1677, 16
        %v2043 = vrot.slane %v2041, 5
        %v2044 = vor.u32 %v2040, %v2043
        %v2045 = vrot.slane %v2044, 4
        %v2047 = vshll.u32 %v1678, 16
        %v2049 = vrot.slane %v2047, 5
        %v2050 = vsel %vm1700, %v2045, %v2049
        %v2051 = vshrl.u32 %v1678, 16
        %v2053 = vrot.slane %v2051, 4
        %v2054 = vor.u32 %v2053, %v2049
        %v2055 = vrot.slane %v2054, 4
        %v2057 = vshll.u32 %v1696, 16
        %v2059 = vrot.slane %v2057, 5
        %v2060 = vsel %vm1700, %v2055, %v2059
        %v2062 = vshrl.u32 %v1679, 16
        %v2064 = vrot.slane %v2062, 4
        %v2065 = vshll.u32 %v1679, 16
        %v2067 = vrot.slane %v2065, 5
        %v2068 = vor.u32 %v2064, %v2067
        %v2069 = vrot.slane %v2068, 4
        %v2071 = vshll.u32 %v1680, 16
        %v2073 = vrot.slane %v2071, 5
        %v2074 = vsel %vm1700, %v2069, %v2073
        %v2075 = vshrl.u32 %v1680, 16
        %v2077 = vrot.slane %v2075, 4
        %v2078 = vor.u32 %v2077, %v2073
        %v2079 = vrot.slane %v2078, 4
        %v2081 = vshll.u32 %v1697, 16
        %v2083 = vrot.slane %v2081, 5
        %v2084 = vsel %vm1700, %v2079, %v2083
        %s2085 = scalar_lea.vmem [#allocation11], 4
        %v2086 = vld [vmem:[%s2085] sm:$0xf]
        %v2087 = vunpack.c.l.b16 %v1714
        %v2088 = vunpack.c.l.b16 %v1724
        %v2089 = vunpack.c.l.b16 %v1738
        %v2090 = vunpack.c.l.b16 %v1748
        %v2091 = vunpack.c.l.b16 %v1762
        %v2092 = vunpack.c.l.b16 %v1772
        %v2093 = vunpack.c.l.b16 %v1786
        %v2094 = vunpack.c.l.b16 %v1796
        %v2095 = vunpack.c.l.b16 %v1810
        %v2096 = vunpack.c.l.b16 %v1820
        %v2097 = vunpack.c.l.b16 %v1834
        %v2098 = vunpack.c.l.b16 %v1844
        %v2099 = vunpack.c.l.b16 %v1858
        %v2100 = vunpack.c.l.b16 %v1868
        %v2101 = vunpack.c.l.b16 %v1882
        %v2102 = vunpack.c.l.b16 %v1892
        %v2103 = vunpack.c.l.b16 %v1906
        %v2104 = vunpack.c.l.b16 %v1916
        %v2105 = vunpack.c.l.b16 %v1930
        %v2106 = vunpack.c.l.b16 %v1940
        %v2107 = vunpack.c.l.b16 %v1954
        %v2108 = vunpack.c.l.b16 %v1964
        %v2109 = vunpack.c.l.b16 %v1978
        %v2110 = vunpack.c.l.b16 %v1988
        %v2111 = vunpack.c.l.b16 %v2002
        %v2112 = vunpack.c.l.b16 %v2012
        %v2113 = vunpack.c.l.b16 %v2026
        %v2114 = vunpack.c.l.b16 %v2036
        %v2115 = vunpack.c.l.b16 %v2050
        %v2116 = vunpack.c.l.b16 %v2060
        %v2117 = vunpack.c.l.b16 %v2074
        %v2118 = vunpack.c.l.b16 %v2084
        %v2119 = vpack.c.b16 %v2088, %v2087
        %v2120 = vpack.c.b16 %v2090, %v2089
        %v2121 = vpack.c.b16 %v2092, %v2091
        %v2122 = vpack.c.b16 %v2094, %v2093
        %v2123 = vpack.c.b16 %v2096, %v2095
        %v2124 = vpack.c.b16 %v2098, %v2097
        %v2125 = vpack.c.b16 %v2100, %v2099
        %v2126 = vpack.c.b16 %v2102, %v2101
        %v2127 = vpack.c.b16 %v2104, %v2103
        %v2128 = vpack.c.b16 %v2106, %v2105
        %v2129 = vpack.c.b16 %v2108, %v2107
        %v2130 = vpack.c.b16 %v2110, %v2109
        %v2131 = vpack.c.b16 %v2112, %v2111
        %v2132 = vpack.c.b16 %v2114, %v2113
        %v2133 = vpack.c.b16 %v2116, %v2115
        %v2134 = vpack.c.b16 %v2118, %v2117
        %vm2135 = vcmask 64512
        %v2137 = vsel %vm2135, %v2119, 0
        %v2140 = vsel %vm2135, %v2120, 0
        %v2143 = vsel %vm2135, %v2121, 0
        %v2146 = vsel %vm2135, %v2122, 0
        %v2149 = vsel %vm2135, %v2123, 0
        %v2152 = vsel %vm2135, %v2124, 0
        %v2155 = vsel %vm2135, %v2125, 0
        %v2158 = vsel %vm2135, %v2126, 0
        %v2161 = vsel %vm2135, %v2127, 0
        %v2164 = vsel %vm2135, %v2128, 0
        %v2167 = vsel %vm2135, %v2129, 0
        %v2170 = vsel %vm2135, %v2130, 0
        %v2173 = vsel %vm2135, %v2131, 0
        %v2176 = vsel %vm2135, %v2132, 0
        %v2179 = vsel %vm2135, %v2133, 0
        %v2182 = vsel %vm2135, %v2134, 0
        %vm2184 = vcmask 1043456
        %v2186 = vsel %vm2184, %v2086, 0
        %2188 = vmatprep.subr.bf16.mxu0 0
        %2189 = vmatpush1.bf16.msra.mxu0 %v2186
        %2190 = vmatprep.subr.bf16.mxu0 0
        %2191 = vmatpush1.bf16.msra.mxu0 0
        %2192 = vmatprep.subr.bf16.mxu0 0
        %2193 = vmatpush1.bf16.msra.mxu0 0
        %2194 = vmatprep.subr.bf16.mxu0 0
        %2195 = vmatpush1.bf16.msra.mxu0 0
        %2196 = vmatprep.subr.bf16.mxu0 0
        %2197 = vmatpush1.bf16.msra.mxu0 0
        %2198 = vmatprep.subr.bf16.mxu0 0
        %2199 = vmatpush1.bf16.msra.mxu0 0
        %2200 = vmatprep.subr.bf16.mxu0 0
        %2201 = vmatpush1.bf16.msra.mxu0 0
        %2202 = vmatprep.subr.bf16.mxu0 0
        %2203 = vmatpush1.bf16.msra.mxu0 0
        %2204 = vmatprep.subr.bf16.mxu0 0
        %2205 = vmatpush1.bf16.msra.mxu0 0
        %2206 = vmatprep.subr.bf16.mxu0 0
        %2207 = vmatpush1.bf16.msra.mxu0 0
        %2208 = vmatprep.subr.bf16.mxu0 0
        %2209 = vmatpush1.bf16.msra.mxu0 0
        %2210 = vmatprep.subr.bf16.mxu0 0
        %2211 = vmatpush1.bf16.msra.mxu0 0
        %2212 = vmatprep.subr.bf16.mxu0 0
        %2213 = vmatpush1.bf16.msra.mxu0 0
        %2214 = vmatprep.subr.bf16.mxu0 0
        %2215 = vmatpush1.bf16.msra.mxu0 0
        %2216 = vmatprep.subr.bf16.mxu0 0
        %2217 = vmatpush1.bf16.msra.mxu0 0
        %2218 = vmatprep.subr.bf16.mxu0 0
        %2219 = vmatpush1.bf16.msra.mxu0 0
        %2220 = vmatprep.mubr.bf16.mxu0 0
        %2221 = vmatmul.mubr.bf16.gmra.mrb[0].mxu0 %v2137
        %v2222 = vpop.f32.mrb[0].mxu0
        %v2223 = vadd.f32 0.0, %v2222
        %v2224 = vpop.f32.mrb[0].mxu0
        %v2225 = vpop.f32.mrb[0].mxu0
        %v2226 = vadd.f32 0.0, %v2225
        %v2227 = vpop.f32.mrb[0].mxu0
        %2228 = vmatprep.mubr.bf16.mxu0 0
        %2229 = vmatmul.mubr.bf16.gmra.mrb[0].mxu0 %v2140
        %v2230 = vpop.f32.mrb[0].mxu0
        %v2231 = vadd.f32 0.0, %v2230
        %v2232 = vpop.f32.mrb[0].mxu0
        %v2233 = vpop.f32.mrb[0].mxu0
        %v2234 = vadd.f32 0.0, %v2233
        %v2235 = vpop.f32.mrb[0].mxu0
        %2236 = vmatprep.mubr.bf16.mxu0 0
        %2237 = vmatmul.mubr.bf16.gmra.mrb[0].mxu0 %v2143
        %v2238 = vpop.f32.mrb[0].mxu0
        %v2239 = vadd.f32 0.0, %v2238
        %v2240 = vpop.f32.mrb[0].mxu0
        %v2241 = vpop.f32.mrb[0].mxu0
        %v2242 = vadd.f32 0.0, %v2241
        %v2243 = vpop.f32.mrb[0].mxu0
        %2244 = vmatprep.mubr.bf16.mxu0 0
        %2245 = vmatmul.mubr.bf16.gmra.mrb[0].mxu0 %v2146
        %v2246 = vpop.f32.mrb[0].mxu0
        %v2247 = vadd.f32 0.0, %v2246
        %v2248 = vpop.f32.mrb[0].mxu0
        %v2249 = vpop.f32.mrb[0].mxu0
        %v2250 = vadd.f32 0.0, %v2249
        %v2251 = vpop.f32.mrb[0].mxu0
        %2252 = vmatprep.mubr.bf16.mxu0 0
        %2253 = vmatmul.mubr.bf16.gmra.mrb[0].mxu0 %v2149
        %v2254 = vpop.f32.mrb[0].mxu0
        %v2255 = vadd.f32 0.0, %v2254
        %v2256 = vpop.f32.mrb[0].mxu0
        %v2257 = vpop.f32.mrb[0].mxu0
        %v2258 = vadd.f32 0.0, %v2257
        %v2259 = vpop.f32.mrb[0].mxu0
        %2260 = vmatprep.mubr.bf16.mxu0 0
        %2261 = vmatmul.mubr.bf16.gmra.mrb[0].mxu0 %v2152
        %v2262 = vpop.f32.mrb[0].mxu0
        %v2263 = vadd.f32 0.0, %v2262
        %v2264 = vpop.f32.mrb[0].mxu0
        %v2265 = vpop.f32.mrb[0].mxu0
        %v2266 = vadd.f32 0.0, %v2265
        %v2267 = vpop.f32.mrb[0].mxu0
        %2268 = vmatprep.mubr.bf16.mxu0 0
        %2269 = vmatmul.mubr.bf16.gmra.mrb[0].mxu0 %v2155
        %v2270 = vpop.f32.mrb[0].mxu0
        %v2271 = vadd.f32 0.0, %v2270
        %v2272 = vpop.f32.mrb[0].mxu0
        %v2273 = vpop.f32.mrb[0].mxu0
        %v2274 = vadd.f32 0.0, %v2273
        %v2275 = vpop.f32.mrb[0].mxu0
        %2276 = vmatprep.mubr.bf16.mxu0 0
        %2277 = vmatmul.mubr.bf16.gmra.mrb[0].mxu0 %v2158
        %v2278 = vpop.f32.mrb[0].mxu0
        %v2279 = vadd.f32 0.0, %v2278
        %v2280 = vpop.f32.mrb[0].mxu0
        %v2281 = vpop.f32.mrb[0].mxu0
        %v2282 = vadd.f32 0.0, %v2281
        %v2283 = vpop.f32.mrb[0].mxu0
        %2284 = vmatprep.mubr.bf16.mxu0 0
        %2285 = vmatmul.mubr.bf16.gmra.mrb[0].mxu0 %v2161
        %v2286 = vpop.f32.mrb[0].mxu0
        %v2287 = vadd.f32 0.0, %v2286
        %v2288 = vpop.f32.mrb[0].mxu0
        %v2289 = vpop.f32.mrb[0].mxu0
        %v2290 = vadd.f32 0.0, %v2289
        %v2291 = vpop.f32.mrb[0].mxu0
        %2292 = vmatprep.mubr.bf16.mxu0 0
        %2293 = vmatmul.mubr.bf16.gmra.mrb[0].mxu0 %v2164
        %v2294 = vpop.f32.mrb[0].mxu0
        %v2295 = vadd.f32 0.0, %v2294
        %v2296 = vpop.f32.mrb[0].mxu0
        %v2297 = vpop.f32.mrb[0].mxu0
        %v2298 = vadd.f32 0.0, %v2297
        %v2299 = vpop.f32.mrb[0].mxu0
        %2300 = vmatprep.mubr.bf16.mxu0 0
        %2301 = vmatmul.mubr.bf16.gmra.mrb[0].mxu0 %v2167
        %v2302 = vpop.f32.mrb[0].mxu0
        %v2303 = vadd.f32 0.0, %v2302
        %v2304 = vpop.f32.mrb[0].mxu0
        %v2305 = vpop.f32.mrb[0].mxu0
        %v2306 = vadd.f32 0.0, %v2305
        %v2307 = vpop.f32.mrb[0].mxu0
        %2308 = vmatprep.mubr.bf16.mxu0 0
        %2309 = vmatmul.mubr.bf16.gmra.mrb[0].mxu0 %v2170
        %v2310 = vpop.f32.mrb[0].mxu0
        %v2311 = vadd.f32 0.0, %v2310
        %v2312 = vpop.f32.mrb[0].mxu0
        %v2313 = vpop.f32.mrb[0].mxu0
        %v2314 = vadd.f32 0.0, %v2313
        %v2315 = vpop.f32.mrb[0].mxu0
        %2316 = vmatprep.mubr.bf16.mxu0 0
        %2317 = vmatmul.mubr.bf16.gmra.mrb[0].mxu0 %v2173
        %v2318 = vpop.f32.mrb[0].mxu0
        %v2319 = vadd.f32 0.0, %v2318
        %v2320 = vpop.f32.mrb[0].mxu0
        %v2321 = vpop.f32.mrb[0].mxu0
        %v2322 = vadd.f32 0.0, %v2321
        %v2323 = vpop.f32.mrb[0].mxu0
        %2324 = vmatprep.mubr.bf16.mxu0 0
        %2325 = vmatmul.mubr.bf16.gmra.mrb[0].mxu0 %v2176
        %v2326 = vpop.f32.mrb[0].mxu0
        %v2327 = vadd.f32 0.0, %v2326
        %v2328 = vpop.f32.mrb[0].mxu0
        %v2329 = vpop.f32.mrb[0].mxu0
        %v2330 = vadd.f32 0.0, %v2329
        %v2331 = vpop.f32.mrb[0].mxu0
        %2332 = vmatprep.mubr.bf16.mxu0 0
        %2333 = vmatmul.mubr.bf16.gmra.mrb[0].mxu0 %v2179
        %v2334 = vpop.f32.mrb[0].mxu0
        %v2335 = vadd.f32 0.0, %v2334
        %v2336 = vpop.f32.mrb[0].mxu0
        %v2337 = vpop.f32.mrb[0].mxu0
        %v2338 = vadd.f32 0.0, %v2337
        %v2339 = vpop.f32.mrb[0].mxu0
        %2340 = vmatprep.mubr.bf16.mxu0 0
        %2341 = vmatmul.mubr.bf16.gmra.mrb[0].mxu0 %v2182
        %v2342 = vpop.f32.mrb[0].mxu0
        %v2343 = vadd.f32 0.0, %v2342
        %v2344 = vpop.f32.mrb[0].mxu0
        %v2345 = vpop.f32.mrb[0].mxu0
        %v2346 = vadd.f32 0.0, %v2345
        %v2347 = vpop.f32.mrb[0].mxu0
        %2348 = vdwg.mxu0
        %v2381 = vunpack.c.l.b16 %v1649
        %v2382 = vunpack.c.l.b16 %v1650
        %v2383 = vunpack.c.l.b16 %v1651
        %v2384 = vunpack.c.l.b16 %v1652
        %v2385 = vunpack.c.l.b16 %v1653
        %v2386 = vunpack.c.l.b16 %v1654
        %v2387 = vunpack.c.l.b16 %v1655
        %v2388 = vunpack.c.l.b16 %v1656
        %v2389 = vunpack.c.l.b16 %v1657
        %v2390 = vunpack.c.l.b16 %v1658
        %v2391 = vunpack.c.l.b16 %v1659
        %v2392 = vunpack.c.l.b16 %v1660
        %v2393 = vunpack.c.l.b16 %v1661
        %v2394 = vunpack.c.l.b16 %v1662
        %v2395 = vunpack.c.l.b16 %v1663
        %v2396 = vunpack.c.l.b16 %v1664
        %v2397 = vunpack.c.l.b16 %v1665
        %v2398 = vunpack.c.l.b16 %v1666
        %v2399 = vunpack.c.l.b16 %v1667
        %v2400 = vunpack.c.l.b16 %v1668
        %v2401 = vunpack.c.l.b16 %v1669
        %v2402 = vunpack.c.l.b16 %v1670
        %v2403 = vunpack.c.l.b16 %v1671
        %v2404 = vunpack.c.l.b16 %v1672
        %v2405 = vunpack.c.l.b16 %v1673
        %v2406 = vunpack.c.l.b16 %v1674
        %v2407 = vunpack.c.l.b16 %v1675
        %v2408 = vunpack.c.l.b16 %v1676
        %v2409 = vunpack.c.l.b16 %v1677
        %v2410 = vunpack.c.l.b16 %v1678
        %v2411 = vunpack.c.l.b16 %v1679
        %v2412 = vunpack.c.l.b16 %v1680
        %v2413 = vpack.c.b16 %v2382, %v2381
        %v2414 = vpack.c.b16 %v2384, %v2383
        %v2415 = vpack.c.b16 %v2386, %v2385
        %v2416 = vpack.c.b16 %v2388, %v2387
        %v2417 = vpack.c.b16 %v2390, %v2389
        %v2418 = vpack.c.b16 %v2392, %v2391
        %v2419 = vpack.c.b16 %v2394, %v2393
        %v2420 = vpack.c.b16 %v2396, %v2395
        %v2421 = vpack.c.b16 %v2398, %v2397
        %v2422 = vpack.c.b16 %v2400, %v2399
        %v2423 = vpack.c.b16 %v2402, %v2401
        %v2424 = vpack.c.b16 %v2404, %v2403
        %v2425 = vpack.c.b16 %v2406, %v2405
        %v2426 = vpack.c.b16 %v2408, %v2407
        %v2427 = vpack.c.b16 %v2410, %v2409
        %v2428 = vpack.c.b16 %v2412, %v2411
        %v2430 = vsel %vm2135, %v2413, 0
        %v2433 = vsel %vm2135, %v2414, 0
        %v2436 = vsel %vm2135, %v2415, 0
        %v2439 = vsel %vm2135, %v2416, 0
        %v2442 = vsel %vm2135, %v2417, 0
        %v2445 = vsel %vm2135, %v2418, 0
        %v2448 = vsel %vm2135, %v2419, 0
        %v2451 = vsel %vm2135, %v2420, 0
        %v2454 = vsel %vm2135, %v2421, 0
        %v2457 = vsel %vm2135, %v2422, 0
        %v2460 = vsel %vm2135, %v2423, 0
        %v2463 = vsel %vm2135, %v2424, 0
        %v2466 = vsel %vm2135, %v2425, 0
        %v2469 = vsel %vm2135, %v2426, 0
        %v2472 = vsel %vm2135, %v2427, 0
        %v2475 = vsel %vm2135, %v2428, 0
        %v2478 = vsel %vm2184, %v1681, 0
        %2480 = vmatprep.subr.bf16.mxu0 0
        %2481 = vmatpush1.bf16.msra.mxu0 %v2478
        %2482 = vmatprep.subr.bf16.mxu0 0
        %2483 = vmatpush1.bf16.msra.mxu0 0
        %2484 = vmatprep.subr.bf16.mxu0 0
        %2485 = vmatpush1.bf16.msra.mxu0 0
        %2486 = vmatprep.subr.bf16.mxu0 0
        %2487 = vmatpush1.bf16.msra.mxu0 0
        %2488 = vmatprep.subr.bf16.mxu0 0
        %2489 = vmatpush1.bf16.msra.mxu0 0
        %2490 = vmatprep.subr.bf16.mxu0 0
        %2491 = vmatpush1.bf16.msra.mxu0 0
        %2492 = vmatprep.subr.bf16.mxu0 0
        %2493 = vmatpush1.bf16.msra.mxu0 0
        %2494 = vmatprep.subr.bf16.mxu0 0
        %2495 = vmatpush1.bf16.msra.mxu0 0
        %2496 = vmatprep.subr.bf16.mxu0 0
        %2497 = vmatpush1.bf16.msra.mxu0 0
        %2498 = vmatprep.subr.bf16.mxu0 0
        %2499 = vmatpush1.bf16.msra.mxu0 0
        %2500 = vmatprep.subr.bf16.mxu0 0
        %2501 = vmatpush1.bf16.msra.mxu0 0
        %2502 = vmatprep.subr.bf16.mxu0 0
        %2503 = vmatpush1.bf16.msra.mxu0 0
        %2504 = vmatprep.subr.bf16.mxu0 0
        %2505 = vmatpush1.bf16.msra.mxu0 0
        %2506 = vmatprep.subr.bf16.mxu0 0
        %2507 = vmatpush1.bf16.msra.mxu0 0
        %2508 = vmatprep.subr.bf16.mxu0 0
        %2509 = vmatpush1.bf16.msra.mxu0 0
        %2510 = vmatprep.subr.bf16.mxu0 0
        %2511 = vmatpush1.bf16.msra.mxu0 0
        %2512 = vmatprep.mubr.bf16.mxu0 0
        %2513 = vmatmul.mubr.bf16.gmra.mrb[0].mxu0 %v2430
        %v2514 = vpop.f32.mrb[0].mxu0
        %v2515 = vadd.f32 %v2223, %v2514
        %v2516 = vpop.f32.mrb[0].mxu0
        %v2517 = vpop.f32.mrb[0].mxu0
        %v2518 = vadd.f32 %v2226, %v2517
        %v2519 = vpop.f32.mrb[0].mxu0
        %2520 = vmatprep.mubr.bf16.mxu0 0
        %2521 = vmatmul.mubr.bf16.gmra.mrb[0].mxu0 %v2433
        %v2522 = vpop.f32.mrb[0].mxu0
        %v2523 = vadd.f32 %v2231, %v2522
        %v2524 = vpop.f32.mrb[0].mxu0
        %v2525 = vpop.f32.mrb[0].mxu0
        %v2526 = vadd.f32 %v2234, %v2525
        %v2527 = vpop.f32.mrb[0].mxu0
        %2528 = vmatprep.mubr.bf16.mxu0 0
        %2529 = vmatmul.mubr.bf16.gmra.mrb[0].mxu0 %v2436
        %v2530 = vpop.f32.mrb[0].mxu0
        %v2531 = vadd.f32 %v2239, %v2530
        %v2532 = vpop.f32.mrb[0].mxu0
        %v2533 = vpop.f32.mrb[0].mxu0
        %v2534 = vadd.f32 %v2242, %v2533
        %v2535 = vpop.f32.mrb[0].mxu0
        %2536 = vmatprep.mubr.bf16.mxu0 0
        %2537 = vmatmul.mubr.bf16.gmra.mrb[0].mxu0 %v2439
        %v2538 = vpop.f32.mrb[0].mxu0
        %v2539 = vadd.f32 %v2247, %v2538
        %v2540 = vpop.f32.mrb[0].mxu0
        %v2541 = vpop.f32.mrb[0].mxu0
        %v2542 = vadd.f32 %v2250, %v2541
        %v2543 = vpop.f32.mrb[0].mxu0
        %2544 = vmatprep.mubr.bf16.mxu0 0
        %2545 = vmatmul.mubr.bf16.gmra.mrb[0].mxu0 %v2442
        %v2546 = vpop.f32.mrb[0].mxu0
        %v2547 = vadd.f32 %v2255, %v2546
        %v2548 = vpop.f32.mrb[0].mxu0
        %v2549 = vpop.f32.mrb[0].mxu0
        %v2550 = vadd.f32 %v2258, %v2549
        %v2551 = vpop.f32.mrb[0].mxu0
        %2552 = vmatprep.mubr.bf16.mxu0 0
        %2553 = vmatmul.mubr.bf16.gmra.mrb[0].mxu0 %v2445
        %v2554 = vpop.f32.mrb[0].mxu0
        %v2555 = vadd.f32 %v2263, %v2554
        %v2556 = vpop.f32.mrb[0].mxu0
        %v2557 = vpop.f32.mrb[0].mxu0
        %v2558 = vadd.f32 %v2266, %v2557
        %v2559 = vpop.f32.mrb[0].mxu0
        %2560 = vmatprep.mubr.bf16.mxu0 0
        %2561 = vmatmul.mubr.bf16.gmra.mrb[0].mxu0 %v2448
        %v2562 = vpop.f32.mrb[0].mxu0
        %v2563 = vadd.f32 %v2271, %v2562
        %v2564 = vpop.f32.mrb[0].mxu0
        %v2565 = vpop.f32.mrb[0].mxu0
        %v2566 = vadd.f32 %v2274, %v2565
        %v2567 = vpop.f32.mrb[0].mxu0
        %2568 = vmatprep.mubr.bf16.mxu0 0
        %2569 = vmatmul.mubr.bf16.gmra.mrb[0].mxu0 %v2451
        %v2570 = vpop.f32.mrb[0].mxu0
        %v2571 = vadd.f32 %v2279, %v2570
        %v2572 = vpop.f32.mrb[0].mxu0
        %v2573 = vpop.f32.mrb[0].mxu0
        %v2574 = vadd.f32 %v2282, %v2573
        %v2575 = vpop.f32.mrb[0].mxu0
        %2576 = vmatprep.mubr.bf16.mxu0 0
        %2577 = vmatmul.mubr.bf16.gmra.mrb[0].mxu0 %v2454
        %v2578 = vpop.f32.mrb[0].mxu0
        %v2579 = vadd.f32 %v2287, %v2578
        %v2580 = vpop.f32.mrb[0].mxu0
        %v2581 = vpop.f32.mrb[0].mxu0
        %v2582 = vadd.f32 %v2290, %v2581
        %v2583 = vpop.f32.mrb[0].mxu0
        %2584 = vmatprep.mubr.bf16.mxu0 0
        %2585 = vmatmul.mubr.bf16.gmra.mrb[0].mxu0 %v2457
        %v2586 = vpop.f32.mrb[0].mxu0
        %v2587 = vadd.f32 %v2295, %v2586
        %v2588 = vpop.f32.mrb[0].mxu0
        %v2589 = vpop.f32.mrb[0].mxu0
        %v2590 = vadd.f32 %v2298, %v2589
        %v2591 = vpop.f32.mrb[0].mxu0
        %2592 = vmatprep.mubr.bf16.mxu0 0
        %2593 = vmatmul.mubr.bf16.gmra.mrb[0].mxu0 %v2460
        %v2594 = vpop.f32.mrb[0].mxu0
        %v2595 = vadd.f32 %v2303, %v2594
        %v2596 = vpop.f32.mrb[0].mxu0
        %v2597 = vpop.f32.mrb[0].mxu0
        %v2598 = vadd.f32 %v2306, %v2597
        %v2599 = vpop.f32.mrb[0].mxu0
        %2600 = vmatprep.mubr.bf16.mxu0 0
        %2601 = vmatmul.mubr.bf16.gmra.mrb[0].mxu0 %v2463
        %v2602 = vpop.f32.mrb[0].mxu0
        %v2603 = vadd.f32 %v2311, %v2602
        %v2604 = vpop.f32.mrb[0].mxu0
        %v2605 = vpop.f32.mrb[0].mxu0
        %v2606 = vadd.f32 %v2314, %v2605
        %v2607 = vpop.f32.mrb[0].mxu0
        %2608 = vmatprep.mubr.bf16.mxu0 0
        %2609 = vmatmul.mubr.bf16.gmra.mrb[0].mxu0 %v2466
        %v2610 = vpop.f32.mrb[0].mxu0
        %v2611 = vadd.f32 %v2319, %v2610
        %v2612 = vpop.f32.mrb[0].mxu0
        %v2613 = vpop.f32.mrb[0].mxu0
        %v2614 = vadd.f32 %v2322, %v2613
        %v2615 = vpop.f32.mrb[0].mxu0
        %2616 = vmatprep.mubr.bf16.mxu0 0
        %2617 = vmatmul.mubr.bf16.gmra.mrb[0].mxu0 %v2469
        %v2618 = vpop.f32.mrb[0].mxu0
        %v2619 = vadd.f32 %v2327, %v2618
        %v2620 = vpop.f32.mrb[0].mxu0
        %v2621 = vpop.f32.mrb[0].mxu0
        %v2622 = vadd.f32 %v2330, %v2621
        %v2623 = vpop.f32.mrb[0].mxu0
        %2624 = vmatprep.mubr.bf16.mxu0 0
        %2625 = vmatmul.mubr.bf16.gmra.mrb[0].mxu0 %v2472
        %v2626 = vpop.f32.mrb[0].mxu0
        %v2627 = vadd.f32 %v2335, %v2626
        %v2628 = vpop.f32.mrb[0].mxu0
        %v2629 = vpop.f32.mrb[0].mxu0
        %v2630 = vadd.f32 %v2338, %v2629
        %v2631 = vpop.f32.mrb[0].mxu0
        %2632 = vmatprep.mubr.bf16.mxu0 0
        %2633 = vmatmul.mubr.bf16.gmra.mrb[0].mxu0 %v2475
        %v2634 = vpop.f32.mrb[0].mxu0
        %v2635 = vadd.f32 %v2343, %v2634
        %v2636 = vpop.f32.mrb[0].mxu0
        %v2637 = vpop.f32.mrb[0].mxu0
        %v2638 = vadd.f32 %v2346, %v2637
        %v2639 = vpop.f32.mrb[0].mxu0
        %2640 = vdwg.mxu0
        %v2641 = vld [vmem:[#allocation2] sm:$0xe]
        %v2642 = vld [vmem:[#allocation2 + $0xc] sm:$0xe]
        %v2643 = vld [vmem:[#allocation2 + $0x18] sm:$0xe]
        %v2644 = vld [vmem:[#allocation2 + $0x24] sm:$0xe]
        %v2645 = vld [vmem:[#allocation2 + $0x30] sm:$0xe]
        %v2646 = vld [vmem:[#allocation2 + $0x3c] sm:$0xe]
        %v2647 = vld [vmem:[#allocation2 + $0x48] sm:$0xe]
        %v2648 = vld [vmem:[#allocation2 + $0x54] sm:$0xe]
        %v2649 = vld [vmem:[#allocation2 + $0x60] sm:$0xe]
        %v2650 = vld [vmem:[#allocation2 + $0x6c] sm:$0xe]
        %v2651 = vld [vmem:[#allocation2 + $0x78] sm:$0xe]
        %v2652 = vld [vmem:[#allocation2 + $0x84] sm:$0xe]
        %v2653 = vld [vmem:[#allocation2 + $0x90] sm:$0xe]
        %v2654 = vld [vmem:[#allocation2 + $0x9c] sm:$0xe]
        %v2655 = vld [vmem:[#allocation2 + $0xa8] sm:$0xe]
        %v2656 = vld [vmem:[#allocation2 + $0xb4] sm:$0xe]
        %vm2689 = vcmask 1042432
        %vm2690 = vcmask 1046532
        %vm2691 = vmor %vm2689, %vm2690
        %v2692 = vrot.slane %v2641, 5
        %v2693 = vrot.slane %v2692, 4
        %v2694 = vrot.slane %v1650, 5
        %v2695 = vsel %vm2691, %v2693, %v2694
        %v2696 = vrot.slane %v2694, 4
        %v2697 = vrot.slane %v1682, 5
        %v2698 = vsel %vm2691, %v2696, %v2697
        %v2699 = vrot.slane %v2642, 5
        %v2700 = vrot.slane %v2699, 4
        %v2701 = vrot.slane %v1652, 5
        %v2702 = vsel %vm2691, %v2700, %v2701
        %v2703 = vrot.slane %v2701, 4
        %v2704 = vrot.slane %v1683, 5
        %v2705 = vsel %vm2691, %v2703, %v2704
        %v2706 = vrot.slane %v2643, 5
        %v2707 = vrot.slane %v2706, 4
        %v2708 = vrot.slane %v1654, 5
        %v2709 = vsel %vm2691, %v2707, %v2708
        %v2710 = vrot.slane %v2708, 4
        %v2711 = vrot.slane %v1684, 5
        %v2712 = vsel %vm2691, %v2710, %v2711
        %v2713 = vrot.slane %v2644, 5
        %v2714 = vrot.slane %v2713, 4
        %v2715 = vrot.slane %v1656, 5
        %v2716 = vsel %vm2691, %v2714, %v2715
        %v2717 = vrot.slane %v2715, 4
        %v2718 = vrot.slane %v1685, 5
        %v2719 = vsel %vm2691, %v2717, %v2718
        %v2720 = vrot.slane %v2645, 5
        %v2721 = vrot.slane %v2720, 4
        %v2722 = vrot.slane %v1658, 5
        %v2723 = vsel %vm2691, %v2721, %v2722
        %v2724 = vrot.slane %v2722, 4
        %v2725 = vrot.slane %v1686, 5
        %v2726 = vsel %vm2691, %v2724, %v2725
        %v2727 = vrot.slane %v2646, 5
        %v2728 = vrot.slane %v2727, 4
        %v2729 = vrot.slane %v1660, 5
        %v2730 = vsel %vm2691, %v2728, %v2729
        %v2731 = vrot.slane %v2729, 4
        %v2732 = vrot.slane %v1687, 5
        %v2733 = vsel %vm2691, %v2731, %v2732
        %v2734 = vrot.slane %v2647, 5
        %v2735 = vrot.slane %v2734, 4
        %v2736 = vrot.slane %v1662, 5
        %v2737 = vsel %vm2691, %v2735, %v2736
        %v2738 = vrot.slane %v2736, 4
        %v2739 = vrot.slane %v1688, 5
        %v2740 = vsel %vm2691, %v2738, %v2739
        %v2741 = vrot.slane %v2648, 5
        %v2742 = vrot.slane %v2741, 4
        %v2743 = vrot.slane %v1664, 5
        %v2744 = vsel %vm2691, %v2742, %v2743
        %v2745 = vrot.slane %v2743, 4
        %v2746 = vrot.slane %v1689, 5
        %v2747 = vsel %vm2691, %v2745, %v2746
        %v2748 = vrot.slane %v2649, 5
        %v2749 = vrot.slane %v2748, 4
        %v2750 = vrot.slane %v1666, 5
        %v2751 = vsel %vm2691, %v2749, %v2750
        %v2752 = vrot.slane %v2750, 4
        %v2753 = vrot.slane %v1690, 5
        %v2754 = vsel %vm2691, %v2752, %v2753
        %v2755 = vrot.slane %v2650, 5
        %v2756 = vrot.slane %v2755, 4
        %v2757 = vrot.slane %v1668, 5
        %v2758 = vsel %vm2691, %v2756, %v2757
        %v2759 = vrot.slane %v2757, 4
        %v2760 = vrot.slane %v1691, 5
        %v2761 = vsel %vm2691, %v2759, %v2760
        %v2762 = vrot.slane %v2651, 5
        %v2763 = vrot.slane %v2762, 4
        %v2764 = vrot.slane %v1670, 5
        %v2765 = vsel %vm2691, %v2763, %v2764
        %v2766 = vrot.slane %v2764, 4
        %v2767 = vrot.slane %v1692, 5
        %v2768 = vsel %vm2691, %v2766, %v2767
        %v2769 = vrot.slane %v2652, 5
        %v2770 = vrot.slane %v2769, 4
        %v2771 = vrot.slane %v1672, 5
        %v2772 = vsel %vm2691, %v2770, %v2771
        %v2773 = vrot.slane %v2771, 4
        %v2774 = vrot.slane %v1693, 5
        %v2775 = vsel %vm2691, %v2773, %v2774
        %v2776 = vrot.slane %v2653, 5
        %v2777 = vrot.slane %v2776, 4
        %v2778 = vrot.slane %v1674, 5
        %v2779 = vsel %vm2691, %v2777, %v2778
        %v2780 = vrot.slane %v2778, 4
        %v2781 = vrot.slane %v1694, 5
        %v2782 = vsel %vm2691, %v2780, %v2781
        %v2783 = vrot.slane %v2654, 5
        %v2784 = vrot.slane %v2783, 4
        %v2785 = vrot.slane %v1676, 5
        %v2786 = vsel %vm2691, %v2784, %v2785
        %v2787 = vrot.slane %v2785, 4
        %v2788 = vrot.slane %v1695, 5
        %v2789 = vsel %vm2691, %v2787, %v2788
        %v2790 = vrot.slane %v2655, 5
        %v2791 = vrot.slane %v2790, 4
        %v2792 = vrot.slane %v1678, 5
        %v2793 = vsel %vm2691, %v2791, %v2792
        %v2794 = vrot.slane %v2792, 4
        %v2795 = vrot.slane %v1696, 5
        %v2796 = vsel %vm2691, %v2794, %v2795
        %v2797 = vrot.slane %v2656, 5
        %v2798 = vrot.slane %v2797, 4
        %v2799 = vrot.slane %v1680, 5
        %v2800 = vsel %vm2691, %v2798, %v2799
        %v2801 = vrot.slane %v2799, 4
        %v2802 = vrot.slane %v1697, 5
        %v2803 = vsel %vm2691, %v2801, %v2802
        %s2804 = scalar_lea.vmem [#allocation11], 8
        %v2805 = vld [vmem:[%s2804] sm:$0xf]
        %v2806 = vunpack.c.l.b16 %v2695
        %v2807 = vunpack.c.l.b16 %v2698
        %v2808 = vunpack.c.l.b16 %v2702
        %v2809 = vunpack.c.l.b16 %v2705
        %v2810 = vunpack.c.l.b16 %v2709
        %v2811 = vunpack.c.l.b16 %v2712
        %v2812 = vunpack.c.l.b16 %v2716
        %v2813 = vunpack.c.l.b16 %v2719
        %v2814 = vunpack.c.l.b16 %v2723
        %v2815 = vunpack.c.l.b16 %v2726
        %v2816 = vunpack.c.l.b16 %v2730
        %v2817 = vunpack.c.l.b16 %v2733
        %v2818 = vunpack.c.l.b16 %v2737
        %v2819 = vunpack.c.l.b16 %v2740
        %v2820 = vunpack.c.l.b16 %v2744
        %v2821 = vunpack.c.l.b16 %v2747
        %v2822 = vunpack.c.l.b16 %v2751
        %v2823 = vunpack.c.l.b16 %v2754
        %v2824 = vunpack.c.l.b16 %v2758
        %v2825 = vunpack.c.l.b16 %v2761
        %v2826 = vunpack.c.l.b16 %v2765
        %v2827 = vunpack.c.l.b16 %v2768
        %v2828 = vunpack.c.l.b16 %v2772
        %v2829 = vunpack.c.l.b16 %v2775
        %v2830 = vunpack.c.l.b16 %v2779
        %v2831 = vunpack.c.l.b16 %v2782
        %v2832 = vunpack.c.l.b16 %v2786
        %v2833 = vunpack.c.l.b16 %v2789
        %v2834 = vunpack.c.l.b16 %v2793
        %v2835 = vunpack.c.l.b16 %v2796
        %v2836 = vunpack.c.l.b16 %v2800
        %v2837 = vunpack.c.l.b16 %v2803
        %v2838 = vpack.c.b16 %v2807, %v2806
        %v2839 = vpack.c.b16 %v2809, %v2808
        %v2840 = vpack.c.b16 %v2811, %v2810
        %v2841 = vpack.c.b16 %v2813, %v2812
        %v2842 = vpack.c.b16 %v2815, %v2814
        %v2843 = vpack.c.b16 %v2817, %v2816
        %v2844 = vpack.c.b16 %v2819, %v2818
        %v2845 = vpack.c.b16 %v2821, %v2820
        %v2846 = vpack.c.b16 %v2823, %v2822
        %v2847 = vpack.c.b16 %v2825, %v2824
        %v2848 = vpack.c.b16 %v2827, %v2826
        %v2849 = vpack.c.b16 %v2829, %v2828
        %v2850 = vpack.c.b16 %v2831, %v2830
        %v2851 = vpack.c.b16 %v2833, %v2832
        %v2852 = vpack.c.b16 %v2835, %v2834
        %v2853 = vpack.c.b16 %v2837, %v2836
        %v2855 = vsel %vm2135, %v2838, 0
        %v2858 = vsel %vm2135, %v2839, 0
        %v2861 = vsel %vm2135, %v2840, 0
        %v2864 = vsel %vm2135, %v2841, 0
        %v2867 = vsel %vm2135, %v2842, 0
        %v2870 = vsel %vm2135, %v2843, 0
        %v2873 = vsel %vm2135, %v2844, 0
        %v2876 = vsel %vm2135, %v2845, 0
        %v2879 = vsel %vm2135, %v2846, 0
        %v2882 = vsel %vm2135, %v2847, 0
        %v2885 = vsel %vm2135, %v2848, 0
        %v2888 = vsel %vm2135, %v2849, 0
        %v2891 = vsel %vm2135, %v2850, 0
        %v2894 = vsel %vm2135, %v2851, 0
        %v2897 = vsel %vm2135, %v2852, 0
        %v2900 = vsel %vm2135, %v2853, 0
        %v2903 = vsel %vm2184, %v2805, 0
        %2905 = vmatprep.subr.bf16.mxu0 0
        %2906 = vmatpush1.bf16.msra.mxu0 %v2903
        %2907 = vmatprep.subr.bf16.mxu0 0
        %2908 = vmatpush1.bf16.msra.mxu0 0
        %2909 = vmatprep.subr.bf16.mxu0 0
        %2910 = vmatpush1.bf16.msra.mxu0 0
        %2911 = vmatprep.subr.bf16.mxu0 0
        %2912 = vmatpush1.bf16.msra.mxu0 0
        %2913 = vmatprep.subr.bf16.mxu0 0
        %2914 = vmatpush1.bf16.msra.mxu0 0
        %2915 = vmatprep.subr.bf16.mxu0 0
        %2916 = vmatpush1.bf16.msra.mxu0 0
        %2917 = vmatprep.subr.bf16.mxu0 0
        %2918 = vmatpush1.bf16.msra.mxu0 0
        %2919 = vmatprep.subr.bf16.mxu0 0
        %2920 = vmatpush1.bf16.msra.mxu0 0
        %2921 = vmatprep.subr.bf16.mxu0 0
        %2922 = vmatpush1.bf16.msra.mxu0 0
        %2923 = vmatprep.subr.bf16.mxu0 0
        %2924 = vmatpush1.bf16.msra.mxu0 0
        %2925 = vmatprep.subr.bf16.mxu0 0
        %2926 = vmatpush1.bf16.msra.mxu0 0
        %2927 = vmatprep.subr.bf16.mxu0 0
        %2928 = vmatpush1.bf16.msra.mxu0 0
        %2929 = vmatprep.subr.bf16.mxu0 0
        %2930 = vmatpush1.bf16.msra.mxu0 0
        %2931 = vmatprep.subr.bf16.mxu0 0
        %2932 = vmatpush1.bf16.msra.mxu0 0
        %2933 = vmatprep.subr.bf16.mxu0 0
        %2934 = vmatpush1.bf16.msra.mxu0 0
        %2935 = vmatprep.subr.bf16.mxu0 0
        %2936 = vmatpush1.bf16.msra.mxu0 0
        %2937 = vmatprep.mubr.bf16.mxu0 0
        %2938 = vmatmul.mubr.bf16.gmra.mrb[0].mxu0 %v2855
        %v2939 = vpop.f32.mrb[0].mxu0
        %v2940 = vadd.f32 0.0, %v2939
        %v2941 = vpop.f32.mrb[0].mxu0
        %v2942 = vpop.f32.mrb[0].mxu0
        %v2943 = vadd.f32 0.0, %v2942
        %v2944 = vpop.f32.mrb[0].mxu0
        %2945 = vmatprep.mubr.bf16.mxu0 0
        %2946 = vmatmul.mubr.bf16.gmra.mrb[0].mxu0 %v2858
        %v2947 = vpop.f32.mrb[0].mxu0
        %v2948 = vadd.f32 0.0, %v2947
        %v2949 = vpop.f32.mrb[0].mxu0
        %v2950 = vpop.f32.mrb[0].mxu0
        %v2951 = vadd.f32 0.0, %v2950
        %v2952 = vpop.f32.mrb[0].mxu0
        %2953 = vmatprep.mubr.bf16.mxu0 0
        %2954 = vmatmul.mubr.bf16.gmra.mrb[0].mxu0 %v2861
        %v2955 = vpop.f32.mrb[0].mxu0
        %v2956 = vadd.f32 0.0, %v2955
        %v2957 = vpop.f32.mrb[0].mxu0
        %v2958 = vpop.f32.mrb[0].mxu0
        %v2959 = vadd.f32 0.0, %v2958
        %v2960 = vpop.f32.mrb[0].mxu0
        %2961 = vmatprep.mubr.bf16.mxu0 0
        %2962 = vmatmul.mubr.bf16.gmra.mrb[0].mxu0 %v2864
        %v2963 = vpop.f32.mrb[0].mxu0
        %v2964 = vadd.f32 0.0, %v2963
        %v2965 = vpop.f32.mrb[0].mxu0
        %v2966 = vpop.f32.mrb[0].mxu0
        %v2967 = vadd.f32 0.0, %v2966
        %v2968 = vpop.f32.mrb[0].mxu0
        %2969 = vmatprep.mubr.bf16.mxu0 0
        %2970 = vmatmul.mubr.bf16.gmra.mrb[0].mxu0 %v2867
        %v2971 = vpop.f32.mrb[0].mxu0
        %v2972 = vadd.f32 0.0, %v2971
        %v2973 = vpop.f32.mrb[0].mxu0
        %v2974 = vpop.f32.mrb[0].mxu0
        %v2975 = vadd.f32 0.0, %v2974
        %v2976 = vpop.f32.mrb[0].mxu0
        %2977 = vmatprep.mubr.bf16.mxu0 0
        %2978 = vmatmul.mubr.bf16.gmra.mrb[0].mxu0 %v2870
        %v2979 = vpop.f32.mrb[0].mxu0
        %v2980 = vadd.f32 0.0, %v2979
        %v2981 = vpop.f32.mrb[0].mxu0
        %v2982 = vpop.f32.mrb[0].mxu0
        %v2983 = vadd.f32 0.0, %v2982
        %v2984 = vpop.f32.mrb[0].mxu0
        %2985 = vmatprep.mubr.bf16.mxu0 0
        %2986 = vmatmul.mubr.bf16.gmra.mrb[0].mxu0 %v2873
        %v2987 = vpop.f32.mrb[0].mxu0
        %v2988 = vadd.f32 0.0, %v2987
        %v2989 = vpop.f32.mrb[0].mxu0
        %v2990 = vpop.f32.mrb[0].mxu0
        %v2991 = vadd.f32 0.0, %v2990
        %v2992 = vpop.f32.mrb[0].mxu0
        %2993 = vmatprep.mubr.bf16.mxu0 0
        %2994 = vmatmul.mubr.bf16.gmra.mrb[0].mxu0 %v2876
        %v2995 = vpop.f32.mrb[0].mxu0
        %v2996 = vadd.f32 0.0, %v2995
        %v2997 = vpop.f32.mrb[0].mxu0
        %v2998 = vpop.f32.mrb[0].mxu0
        %v2999 = vadd.f32 0.0, %v2998
        %v3000 = vpop.f32.mrb[0].mxu0
        %3001 = vmatprep.mubr.bf16.mxu0 0
        %3002 = vmatmul.mubr.bf16.gmra.mrb[0].mxu0 %v2879
        %v3003 = vpop.f32.mrb[0].mxu0
        %v3004 = vadd.f32 0.0, %v3003
        %v3005 = vpop.f32.mrb[0].mxu0
        %v3006 = vpop.f32.mrb[0].mxu0
        %v3007 = vadd.f32 0.0, %v3006
        %v3008 = vpop.f32.mrb[0].mxu0
        %3009 = vmatprep.mubr.bf16.mxu0 0
        %3010 = vmatmul.mubr.bf16.gmra.mrb[0].mxu0 %v2882
        %v3011 = vpop.f32.mrb[0].mxu0
        %v3012 = vadd.f32 0.0, %v3011
        %v3013 = vpop.f32.mrb[0].mxu0
        %v3014 = vpop.f32.mrb[0].mxu0
        %v3015 = vadd.f32 0.0, %v3014
        %v3016 = vpop.f32.mrb[0].mxu0
        %3017 = vmatprep.mubr.bf16.mxu0 0
        %3018 = vmatmul.mubr.bf16.gmra.mrb[0].mxu0 %v2885
        %v3019 = vpop.f32.mrb[0].mxu0
        %v3020 = vadd.f32 0.0, %v3019
        %v3021 = vpop.f32.mrb[0].mxu0
        %v3022 = vpop.f32.mrb[0].mxu0
        %v3023 = vadd.f32 0.0, %v3022
        %v3024 = vpop.f32.mrb[0].mxu0
        %3025 = vmatprep.mubr.bf16.mxu0 0
        %3026 = vmatmul.mubr.bf16.gmra.mrb[0].mxu0 %v2888
        %v3027 = vpop.f32.mrb[0].mxu0
        %v3028 = vadd.f32 0.0, %v3027
        %v3029 = vpop.f32.mrb[0].mxu0
        %v3030 = vpop.f32.mrb[0].mxu0
        %v3031 = vadd.f32 0.0, %v3030
        %v3032 = vpop.f32.mrb[0].mxu0
        %3033 = vmatprep.mubr.bf16.mxu0 0
        %3034 = vmatmul.mubr.bf16.gmra.mrb[0].mxu0 %v2891
        %v3035 = vpop.f32.mrb[0].mxu0
        %v3036 = vadd.f32 0.0, %v3035
        %v3037 = vpop.f32.mrb[0].mxu0
        %v3038 = vpop.f32.mrb[0].mxu0
        %v3039 = vadd.f32 0.0, %v3038
        %v3040 = vpop.f32.mrb[0].mxu0
        %3041 = vmatprep.mubr.bf16.mxu0 0
        %3042 = vmatmul.mubr.bf16.gmra.mrb[0].mxu0 %v2894
        %v3043 = vpop.f32.mrb[0].mxu0
        %v3044 = vadd.f32 0.0, %v3043
        %v3045 = vpop.f32.mrb[0].mxu0
        %v3046 = vpop.f32.mrb[0].mxu0
        %v3047 = vadd.f32 0.0, %v3046
        %v3048 = vpop.f32.mrb[0].mxu0
        %3049 = vmatprep.mubr.bf16.mxu0 0
        %3050 = vmatmul.mubr.bf16.gmra.mrb[0].mxu0 %v2897
        %v3051 = vpop.f32.mrb[0].mxu0
        %v3052 = vadd.f32 0.0, %v3051
        %v3053 = vpop.f32.mrb[0].mxu0
        %v3054 = vpop.f32.mrb[0].mxu0
        %v3055 = vadd.f32 0.0, %v3054
        %v3056 = vpop.f32.mrb[0].mxu0
        %3057 = vmatprep.mubr.bf16.mxu0 0
        %3058 = vmatmul.mubr.bf16.gmra.mrb[0].mxu0 %v2900
        %v3059 = vpop.f32.mrb[0].mxu0
        %v3060 = vadd.f32 0.0, %v3059
        %v3061 = vpop.f32.mrb[0].mxu0
        %v3062 = vpop.f32.mrb[0].mxu0
        %v3063 = vadd.f32 0.0, %v3062
        %v3064 = vpop.f32.mrb[0].mxu0
        %3065 = vdwg.mxu0
        %v3066 = vadd.f32 %v2515, %v2940
        %v3067 = vadd.f32 %v2518, %v2943
        %v3068 = vadd.f32 %v2523, %v2948
        %v3069 = vadd.f32 %v2526, %v2951
        %v3070 = vadd.f32 %v2531, %v2956
        %v3071 = vadd.f32 %v2534, %v2959
        %v3072 = vadd.f32 %v2539, %v2964
        %v3073 = vadd.f32 %v2542, %v2967
        %v3074 = vadd.f32 %v2547, %v2972
        %v3075 = vadd.f32 %v2550, %v2975
        %v3076 = vadd.f32 %v2555, %v2980
        %v3077 = vadd.f32 %v2558, %v2983
        %v3078 = vadd.f32 %v2563, %v2988
        %v3079 = vadd.f32 %v2566, %v2991
        %v3080 = vadd.f32 %v2571, %v2996
        %v3081 = vadd.f32 %v2574, %v2999
        %v3082 = vadd.f32 %v2579, %v3004
        %v3083 = vadd.f32 %v2582, %v3007
        %v3084 = vadd.f32 %v2587, %v3012
        %v3085 = vadd.f32 %v2590, %v3015
        %v3086 = vadd.f32 %v2595, %v3020
        %v3087 = vadd.f32 %v2598, %v3023
        %v3088 = vadd.f32 %v2603, %v3028
        %v3089 = vadd.f32 %v2606, %v3031
        %v3090 = vadd.f32 %v2611, %v3036
        %v3091 = vadd.f32 %v2614, %v3039
        %v3092 = vadd.f32 %v2619, %v3044
        %v3093 = vadd.f32 %v2622, %v3047
        %v3094 = vadd.f32 %v2627, %v3052
        %v3095 = vadd.f32 %v2630, %v3055
        %v3096 = vadd.f32 %v2635, %v3060
        %v3097 = vadd.f32 %v2638, %v3063
        %v3098 = vld [vmem:[%s1531] sm:$0xf]
        %v3099 = vld [vmem:[%s1531 + $0x4] sm:$0xf]
        %v3100 = vld [vmem:[%s1531 + $0xc] sm:$0xf]
        %v3101 = vld [vmem:[%s1531 + $0x10] sm:$0xf]
        %v3102 = vld [vmem:[%s1531 + $0x18] sm:$0xf]
        %v3103 = vld [vmem:[%s1531 + $0x1c] sm:$0xf]
        %v3104 = vld [vmem:[%s1531 + $0x24] sm:$0xf]
        %v3105 = vld [vmem:[%s1531 + $0x28] sm:$0xf]
        %v3106 = vld [vmem:[%s1531 + $0x30] sm:$0xf]
        %v3107 = vld [vmem:[%s1531 + $0x34] sm:$0xf]
        %v3108 = vld [vmem:[%s1531 + $0x3c] sm:$0xf]
        %v3109 = vld [vmem:[%s1531 + $0x40] sm:$0xf]
        %v3110 = vld [vmem:[%s1531 + $0x48] sm:$0xf]
        %v3111 = vld [vmem:[%s1531 + $0x4c] sm:$0xf]
        %v3112 = vld [vmem:[%s1531 + $0x54] sm:$0xf]
        %v3113 = vld [vmem:[%s1531 + $0x58] sm:$0xf]
        %v3114 = vld [vmem:[%s1531 + $0x60] sm:$0xf]
        %v3115 = vld [vmem:[%s1531 + $0x64] sm:$0xf]
        %v3116 = vld [vmem:[%s1531 + $0x6c] sm:$0xf]
        %v3117 = vld [vmem:[%s1531 + $0x70] sm:$0xf]
        %v3118 = vld [vmem:[%s1531 + $0x78] sm:$0xf]
        %v3119 = vld [vmem:[%s1531 + $0x7c] sm:$0xf]
        %v3120 = vld [vmem:[%s1531 + $0x84] sm:$0xf]
        %v3121 = vld [vmem:[%s1531 + $0x88] sm:$0xf]
        %v3122 = vld [vmem:[%s1531 + $0x90] sm:$0xf]
        %v3123 = vld [vmem:[%s1531 + $0x94] sm:$0xf]
        %v3124 = vld [vmem:[%s1531 + $0x9c] sm:$0xf]
        %v3125 = vld [vmem:[%s1531 + $0xa0] sm:$0xf]
        %v3126 = vld [vmem:[%s1531 + $0xa8] sm:$0xf]
        %v3127 = vld [vmem:[%s1531 + $0xac] sm:$0xf]
        %v3128 = vld [vmem:[%s1531 + $0xb4] sm:$0xf]
        %v3129 = vld [vmem:[%s1531 + $0xb8] sm:$0xf]
        %s3130 = scalar_lea.vmem [#allocation11], 12
        %v3131 = vld [vmem:[%s3130] sm:$0xf]
        %v3164 = vunpack.c.l.b16 %v3098
        %v3165 = vunpack.c.l.b16 %v3099
        %v3166 = vunpack.c.l.b16 %v3100
        %v3167 = vunpack.c.l.b16 %v3101
        %v3168 = vunpack.c.l.b16 %v3102
        %v3169 = vunpack.c.l.b16 %v3103
        %v3170 = vunpack.c.l.b16 %v3104
        %v3171 = vunpack.c.l.b16 %v3105
        %v3172 = vunpack.c.l.b16 %v3106
        %v3173 = vunpack.c.l.b16 %v3107
        %v3174 = vunpack.c.l.b16 %v3108
        %v3175 = vunpack.c.l.b16 %v3109
        %v3176 = vunpack.c.l.b16 %v3110
        %v3177 = vunpack.c.l.b16 %v3111
        %v3178 = vunpack.c.l.b16 %v3112
        %v3179 = vunpack.c.l.b16 %v3113
        %v3180 = vunpack.c.l.b16 %v3114
        %v3181 = vunpack.c.l.b16 %v3115
        %v3182 = vunpack.c.l.b16 %v3116
        %v3183 = vunpack.c.l.b16 %v3117
        %v3184 = vunpack.c.l.b16 %v3118
        %v3185 = vunpack.c.l.b16 %v3119
        %v3186 = vunpack.c.l.b16 %v3120
        %v3187 = vunpack.c.l.b16 %v3121
        %v3188 = vunpack.c.l.b16 %v3122
        %v3189 = vunpack.c.l.b16 %v3123
        %v3190 = vunpack.c.l.b16 %v3124
        %v3191 = vunpack.c.l.b16 %v3125
        %v3192 = vunpack.c.l.b16 %v3126
        %v3193 = vunpack.c.l.b16 %v3127
        %v3194 = vunpack.c.l.b16 %v3128
        %v3195 = vunpack.c.l.b16 %v3129
        %v3196 = vpack.c.b16 %v3165, %v3164
        %v3197 = vpack.c.b16 %v3167, %v3166
        %v3198 = vpack.c.b16 %v3169, %v3168
        %v3199 = vpack.c.b16 %v3171, %v3170
        %v3200 = vpack.c.b16 %v3173, %v3172
        %v3201 = vpack.c.b16 %v3175, %v3174
        %v3202 = vpack.c.b16 %v3177, %v3176
        %v3203 = vpack.c.b16 %v3179, %v3178
        %v3204 = vpack.c.b16 %v3181, %v3180
        %v3205 = vpack.c.b16 %v3183, %v3182
        %v3206 = vpack.c.b16 %v3185, %v3184
        %v3207 = vpack.c.b16 %v3187, %v3186
        %v3208 = vpack.c.b16 %v3189, %v3188
        %v3209 = vpack.c.b16 %v3191, %v3190
        %v3210 = vpack.c.b16 %v3193, %v3192
        %v3211 = vpack.c.b16 %v3195, %v3194
        %v3213 = vsel %vm2135, %v3196, 0
        %v3216 = vsel %vm2135, %v3197, 0
        %v3219 = vsel %vm2135, %v3198, 0
        %v3222 = vsel %vm2135, %v3199, 0
        %v3225 = vsel %vm2135, %v3200, 0
        %v3228 = vsel %vm2135, %v3201, 0
        %v3231 = vsel %vm2135, %v3202, 0
        %v3234 = vsel %vm2135, %v3203, 0
        %v3237 = vsel %vm2135, %v3204, 0
        %v3240 = vsel %vm2135, %v3205, 0
        %v3243 = vsel %vm2135, %v3206, 0
        %v3246 = vsel %vm2135, %v3207, 0
        %v3249 = vsel %vm2135, %v3208, 0
        %v3252 = vsel %vm2135, %v3209, 0
        %v3255 = vsel %vm2135, %v3210, 0
        %v3258 = vsel %vm2135, %v3211, 0
        %v3261 = vsel %vm2184, %v3131, 0
        %3263 = vmatprep.subr.bf16.mxu0 0
        %3264 = vmatpush1.bf16.msra.mxu0 %v3261
        %3265 = vmatprep.subr.bf16.mxu0 0
        %3266 = vmatpush1.bf16.msra.mxu0 0
        %3267 = vmatprep.subr.bf16.mxu0 0
        %3268 = vmatpush1.bf16.msra.mxu0 0
        %3269 = vmatprep.subr.bf16.mxu0 0
        %3270 = vmatpush1.bf16.msra.mxu0 0
        %3271 = vmatprep.subr.bf16.mxu0 0
        %3272 = vmatpush1.bf16.msra.mxu0 0
        %3273 = vmatprep.subr.bf16.mxu0 0
        %3274 = vmatpush1.bf16.msra.mxu0 0
        %3275 = vmatprep.subr.bf16.mxu0 0
        %3276 = vmatpush1.bf16.msra.mxu0 0
        %3277 = vmatprep.subr.bf16.mxu0 0
        %3278 = vmatpush1.bf16.msra.mxu0 0
        %3279 = vmatprep.subr.bf16.mxu0 0
        %3280 = vmatpush1.bf16.msra.mxu0 0
        %3281 = vmatprep.subr.bf16.mxu0 0
        %3282 = vmatpush1.bf16.msra.mxu0 0
        %3283 = vmatprep.subr.bf16.mxu0 0
        %3284 = vmatpush1.bf16.msra.mxu0 0
        %3285 = vmatprep.subr.bf16.mxu0 0
        %3286 = vmatpush1.bf16.msra.mxu0 0
        %3287 = vmatprep.subr.bf16.mxu0 0
        %3288 = vmatpush1.bf16.msra.mxu0 0
        %3289 = vmatprep.subr.bf16.mxu0 0
        %3290 = vmatpush1.bf16.msra.mxu0 0
        %3291 = vmatprep.subr.bf16.mxu0 0
        %3292 = vmatpush1.bf16.msra.mxu0 0
        %3293 = vmatprep.subr.bf16.mxu0 0
        %3294 = vmatpush1.bf16.msra.mxu0 0
        %3295 = vmatprep.mubr.bf16.mxu0 0
        %3296 = vmatmul.mubr.bf16.gmra.mrb[0].mxu0 %v3213
        %v3297 = vpop.f32.mrb[0].mxu0
        %v3298 = vadd.f32 0.0, %v3297
        %v3299 = vpop.f32.mrb[0].mxu0
        %v3300 = vpop.f32.mrb[0].mxu0
        %v3301 = vadd.f32 0.0, %v3300
        %v3302 = vpop.f32.mrb[0].mxu0
        %3303 = vmatprep.mubr.bf16.mxu0 0
        %3304 = vmatmul.mubr.bf16.gmra.mrb[0].mxu0 %v3216
        %v3305 = vpop.f32.mrb[0].mxu0
        %v3306 = vadd.f32 0.0, %v3305
        %v3307 = vpop.f32.mrb[0].mxu0
        %v3308 = vpop.f32.mrb[0].mxu0
        %v3309 = vadd.f32 0.0, %v3308
        %v3310 = vpop.f32.mrb[0].mxu0
        %3311 = vmatprep.mubr.bf16.mxu0 0
        %3312 = vmatmul.mubr.bf16.gmra.mrb[0].mxu0 %v3219
        %v3313 = vpop.f32.mrb[0].mxu0
        %v3314 = vadd.f32 0.0, %v3313
        %v3315 = vpop.f32.mrb[0].mxu0
        %v3316 = vpop.f32.mrb[0].mxu0
        %v3317 = vadd.f32 0.0, %v3316
        %v3318 = vpop.f32.mrb[0].mxu0
        %3319 = vmatprep.mubr.bf16.mxu0 0
        %3320 = vmatmul.mubr.bf16.gmra.mrb[0].mxu0 %v3222
        %v3321 = vpop.f32.mrb[0].mxu0
        %v3322 = vadd.f32 0.0, %v3321
        %v3323 = vpop.f32.mrb[0].mxu0
        %v3324 = vpop.f32.mrb[0].mxu0
        %v3325 = vadd.f32 0.0, %v3324
        %v3326 = vpop.f32.mrb[0].mxu0
        %3327 = vmatprep.mubr.bf16.mxu0 0
        %3328 = vmatmul.mubr.bf16.gmra.mrb[0].mxu0 %v3225
        %v3329 = vpop.f32.mrb[0].mxu0
        %v3330 = vadd.f32 0.0, %v3329
        %v3331 = vpop.f32.mrb[0].mxu0
        %v3332 = vpop.f32.mrb[0].mxu0
        %v3333 = vadd.f32 0.0, %v3332
        %v3334 = vpop.f32.mrb[0].mxu0
        %3335 = vmatprep.mubr.bf16.mxu0 0
        %3336 = vmatmul.mubr.bf16.gmra.mrb[0].mxu0 %v3228
        %v3337 = vpop.f32.mrb[0].mxu0
        %v3338 = vadd.f32 0.0, %v3337
        %v3339 = vpop.f32.mrb[0].mxu0
        %v3340 = vpop.f32.mrb[0].mxu0
        %v3341 = vadd.f32 0.0, %v3340
        %v3342 = vpop.f32.mrb[0].mxu0
        %3343 = vmatprep.mubr.bf16.mxu0 0
        %3344 = vmatmul.mubr.bf16.gmra.mrb[0].mxu0 %v3231
        %v3345 = vpop.f32.mrb[0].mxu0
        %v3346 = vadd.f32 0.0, %v3345
        %v3347 = vpop.f32.mrb[0].mxu0
        %v3348 = vpop.f32.mrb[0].mxu0
        %v3349 = vadd.f32 0.0, %v3348
        %v3350 = vpop.f32.mrb[0].mxu0
        %3351 = vmatprep.mubr.bf16.mxu0 0
        %3352 = vmatmul.mubr.bf16.gmra.mrb[0].mxu0 %v3234
        %v3353 = vpop.f32.mrb[0].mxu0
        %v3354 = vadd.f32 0.0, %v3353
        %v3355 = vpop.f32.mrb[0].mxu0
        %v3356 = vpop.f32.mrb[0].mxu0
        %v3357 = vadd.f32 0.0, %v3356
        %v3358 = vpop.f32.mrb[0].mxu0
        %3359 = vmatprep.mubr.bf16.mxu0 0
        %3360 = vmatmul.mubr.bf16.gmra.mrb[0].mxu0 %v3237
        %v3361 = vpop.f32.mrb[0].mxu0
        %v3362 = vadd.f32 0.0, %v3361
        %v3363 = vpop.f32.mrb[0].mxu0
        %v3364 = vpop.f32.mrb[0].mxu0
        %v3365 = vadd.f32 0.0, %v3364
        %v3366 = vpop.f32.mrb[0].mxu0
        %3367 = vmatprep.mubr.bf16.mxu0 0
        %3368 = vmatmul.mubr.bf16.gmra.mrb[0].mxu0 %v3240
        %v3369 = vpop.f32.mrb[0].mxu0
        %v3370 = vadd.f32 0.0, %v3369
        %v3371 = vpop.f32.mrb[0].mxu0
        %v3372 = vpop.f32.mrb[0].mxu0
        %v3373 = vadd.f32 0.0, %v3372
        %v3374 = vpop.f32.mrb[0].mxu0
        %3375 = vmatprep.mubr.bf16.mxu0 0
        %3376 = vmatmul.mubr.bf16.gmra.mrb[0].mxu0 %v3243
        %v3377 = vpop.f32.mrb[0].mxu0
        %v3378 = vadd.f32 0.0, %v3377
        %v3379 = vpop.f32.mrb[0].mxu0
        %v3380 = vpop.f32.mrb[0].mxu0
        %v3381 = vadd.f32 0.0, %v3380
        %v3382 = vpop.f32.mrb[0].mxu0
        %3383 = vmatprep.mubr.bf16.mxu0 0
        %3384 = vmatmul.mubr.bf16.gmra.mrb[0].mxu0 %v3246
        %v3385 = vpop.f32.mrb[0].mxu0
        %v3386 = vadd.f32 0.0, %v3385
        %v3387 = vpop.f32.mrb[0].mxu0
        %v3388 = vpop.f32.mrb[0].mxu0
        %v3389 = vadd.f32 0.0, %v3388
        %v3390 = vpop.f32.mrb[0].mxu0
        %3391 = vmatprep.mubr.bf16.mxu0 0
        %3392 = vmatmul.mubr.bf16.gmra.mrb[0].mxu0 %v3249
        %v3393 = vpop.f32.mrb[0].mxu0
        %v3394 = vadd.f32 0.0, %v3393
        %v3395 = vpop.f32.mrb[0].mxu0
        %v3396 = vpop.f32.mrb[0].mxu0
        %v3397 = vadd.f32 0.0, %v3396
        %v3398 = vpop.f32.mrb[0].mxu0
        %3399 = vmatprep.mubr.bf16.mxu0 0
        %3400 = vmatmul.mubr.bf16.gmra.mrb[0].mxu0 %v3252
        %v3401 = vpop.f32.mrb[0].mxu0
        %v3402 = vadd.f32 0.0, %v3401
        %v3403 = vpop.f32.mrb[0].mxu0
        %v3404 = vpop.f32.mrb[0].mxu0
        %v3405 = vadd.f32 0.0, %v3404
        %v3406 = vpop.f32.mrb[0].mxu0
        %3407 = vmatprep.mubr.bf16.mxu0 0
        %3408 = vmatmul.mubr.bf16.gmra.mrb[0].mxu0 %v3255
        %v3409 = vpop.f32.mrb[0].mxu0
        %v3410 = vadd.f32 0.0, %v3409
        %v3411 = vpop.f32.mrb[0].mxu0
        %v3412 = vpop.f32.mrb[0].mxu0
        %v3413 = vadd.f32 0.0, %v3412
        %v3414 = vpop.f32.mrb[0].mxu0
        %3415 = vmatprep.mubr.bf16.mxu0 0
        %3416 = vmatmul.mubr.bf16.gmra.mrb[0].mxu0 %v3258
        %v3417 = vpop.f32.mrb[0].mxu0
        %v3418 = vadd.f32 0.0, %v3417
        %v3419 = vpop.f32.mrb[0].mxu0
        %v3420 = vpop.f32.mrb[0].mxu0
        %v3421 = vadd.f32 0.0, %v3420
        %v3422 = vpop.f32.mrb[0].mxu0
        %3423 = vdwg.mxu0
        %v3424 = vadd.f32 %v3066, %v3298
        %v3425 = vadd.f32 %v3067, %v3301
        %v3426 = vadd.f32 %v3068, %v3306
        %v3427 = vadd.f32 %v3069, %v3309
        %v3428 = vadd.f32 %v3070, %v3314
        %v3429 = vadd.f32 %v3071, %v3317
        %v3430 = vadd.f32 %v3072, %v3322
        %v3431 = vadd.f32 %v3073, %v3325
        %v3432 = vadd.f32 %v3074, %v3330
        %v3433 = vadd.f32 %v3075, %v3333
        %v3434 = vadd.f32 %v3076, %v3338
        %v3435 = vadd.f32 %v3077, %v3341
        %v3436 = vadd.f32 %v3078, %v3346
        %v3437 = vadd.f32 %v3079, %v3349
        %v3438 = vadd.f32 %v3080, %v3354
        %v3439 = vadd.f32 %v3081, %v3357
        %v3440 = vadd.f32 %v3082, %v3362
        %v3441 = vadd.f32 %v3083, %v3365
        %v3442 = vadd.f32 %v3084, %v3370
        %v3443 = vadd.f32 %v3085, %v3373
        %v3444 = vadd.f32 %v3086, %v3378
        %v3445 = vadd.f32 %v3087, %v3381
        %v3446 = vadd.f32 %v3088, %v3386
        %v3447 = vadd.f32 %v3089, %v3389
        %v3448 = vadd.f32 %v3090, %v3394
        %v3449 = vadd.f32 %v3091, %v3397
        %v3450 = vadd.f32 %v3092, %v3402
        %v3451 = vadd.f32 %v3093, %v3405
        %v3452 = vadd.f32 %v3094, %v3410
        %v3453 = vadd.f32 %v3095, %v3413
        %v3454 = vadd.f32 %v3096, %v3418
        %v3455 = vadd.f32 %v3097, %v3421
        %v3456 = vld [vmem:[%s1531] sm:$0xf]
        %v3457 = vld [vmem:[%s1531 + $0x4] sm:$0xf]
        %v3458 = vld [vmem:[%s1531 + $0x8] sm:$0x1]
        %v3459 = vld [vmem:[%s1531 + $0xc] sm:$0xf]
        %v3460 = vld [vmem:[%s1531 + $0x10] sm:$0xf]
        %v3461 = vld [vmem:[%s1531 + $0x14] sm:$0x1]
        %v3462 = vld [vmem:[%s1531 + $0x18] sm:$0xf]
        %v3463 = vld [vmem:[%s1531 + $0x1c] sm:$0xf]
        %v3464 = vld [vmem:[%s1531 + $0x20] sm:$0x1]
        %v3465 = vld [vmem:[%s1531 + $0x24] sm:$0xf]
        %v3466 = vld [vmem:[%s1531 + $0x28] sm:$0xf]
        %v3467 = vld [vmem:[%s1531 + $0x2c] sm:$0x1]
        %v3468 = vld [vmem:[%s1531 + $0x30] sm:$0xf]
        %v3469 = vld [vmem:[%s1531 + $0x34] sm:$0xf]
        %v3470 = vld [vmem:[%s1531 + $0x38] sm:$0x1]
        %v3471 = vld [vmem:[%s1531 + $0x3c] sm:$0xf]
        %v3472 = vld [vmem:[%s1531 + $0x40] sm:$0xf]
        %v3473 = vld [vmem:[%s1531 + $0x44] sm:$0x1]
        %v3474 = vld [vmem:[%s1531 + $0x48] sm:$0xf]
        %v3475 = vld [vmem:[%s1531 + $0x4c] sm:$0xf]
        %v3476 = vld [vmem:[%s1531 + $0x50] sm:$0x1]
        %v3477 = vld [vmem:[%s1531 + $0x54] sm:$0xf]
        %v3478 = vld [vmem:[%s1531 + $0x58] sm:$0xf]
        %v3479 = vld [vmem:[%s1531 + $0x5c] sm:$0x1]
        %v3480 = vld [vmem:[%s1531 + $0x60] sm:$0xf]
        %v3481 = vld [vmem:[%s1531 + $0x64] sm:$0xf]
        %v3482 = vld [vmem:[%s1531 + $0x68] sm:$0x1]
        %v3483 = vld [vmem:[%s1531 + $0x6c] sm:$0xf]
        %v3484 = vld [vmem:[%s1531 + $0x70] sm:$0xf]
        %v3485 = vld [vmem:[%s1531 + $0x74] sm:$0x1]
        %v3486 = vld [vmem:[%s1531 + $0x78] sm:$0xf]
        %v3487 = vld [vmem:[%s1531 + $0x7c] sm:$0xf]
        %v3488 = vld [vmem:[%s1531 + $0x80] sm:$0x1]
        %v3489 = vld [vmem:[%s1531 + $0x84] sm:$0xf]
        %v3490 = vld [vmem:[%s1531 + $0x88] sm:$0xf]
        %v3491 = vld [vmem:[%s1531 + $0x8c] sm:$0x1]
        %v3492 = vld [vmem:[%s1531 + $0x90] sm:$0xf]
        %v3493 = vld [vmem:[%s1531 + $0x94] sm:$0xf]
        %v3494 = vld [vmem:[%s1531 + $0x98] sm:$0x1]
        %v3495 = vld [vmem:[%s1531 + $0x9c] sm:$0xf]
        %v3496 = vld [vmem:[%s1531 + $0xa0] sm:$0xf]
        %v3497 = vld [vmem:[%s1531 + $0xa4] sm:$0x1]
        %v3498 = vld [vmem:[%s1531 + $0xa8] sm:$0xf]
        %v3499 = vld [vmem:[%s1531 + $0xac] sm:$0xf]
        %v3500 = vld [vmem:[%s1531 + $0xb0] sm:$0x1]
        %v3501 = vld [vmem:[%s1531 + $0xb4] sm:$0xf]
        %v3502 = vld [vmem:[%s1531 + $0xb8] sm:$0xf]
        %v3503 = vld [vmem:[%s1531 + $0xbc] sm:$0x1]
        %v3505 = vshrl.u32 %v3456, 16
        %v3507 = vrot.slane %v3505, 4
        %v3508 = vshll.u32 %v3456, 16
        %v3510 = vrot.slane %v3508, 5
        %v3511 = vor.u32 %v3507, %v3510
        %v3512 = vrot.slane %v3511, 4
        %v3514 = vshll.u32 %v3457, 16
        %v3516 = vrot.slane %v3514, 5
        %v3517 = vsel %vm1700, %v3512, %v3516
        %v3518 = vshrl.u32 %v3457, 16
        %v3520 = vrot.slane %v3518, 4
        %v3521 = vor.u32 %v3520, %v3516
        %v3522 = vrot.slane %v3521, 4
        %v3524 = vshll.u32 %v3458, 16
        %v3526 = vrot.slane %v3524, 5
        %v3527 = vsel %vm1700, %v3522, %v3526
        %v3529 = vshrl.u32 %v3459, 16
        %v3531 = vrot.slane %v3529, 4
        %v3532 = vshll.u32 %v3459, 16
        %v3534 = vrot.slane %v3532, 5
        %v3535 = vor.u32 %v3531, %v3534
        %v3536 = vrot.slane %v3535, 4
        %v3538 = vshll.u32 %v3460, 16
        %v3540 = vrot.slane %v3538, 5
        %v3541 = vsel %vm1700, %v3536, %v3540
        %v3542 = vshrl.u32 %v3460, 16
        %v3544 = vrot.slane %v3542, 4
        %v3545 = vor.u32 %v3544, %v3540
        %v3546 = vrot.slane %v3545, 4
        %v3548 = vshll.u32 %v3461, 16
        %v3550 = vrot.slane %v3548, 5
        %v3551 = vsel %vm1700, %v3546, %v3550
        %v3553 = vshrl.u32 %v3462, 16
        %v3555 = vrot.slane %v3553, 4
        %v3556 = vshll.u32 %v3462, 16
        %v3558 = vrot.slane %v3556, 5
        %v3559 = vor.u32 %v3555, %v3558
        %v3560 = vrot.slane %v3559, 4
        %v3562 = vshll.u32 %v3463, 16
        %v3564 = vrot.slane %v3562, 5
        %v3565 = vsel %vm1700, %v3560, %v3564
        %v3566 = vshrl.u32 %v3463, 16
        %v3568 = vrot.slane %v3566, 4
        %v3569 = vor.u32 %v3568, %v3564
        %v3570 = vrot.slane %v3569, 4
        %v3572 = vshll.u32 %v3464, 16
        %v3574 = vrot.slane %v3572, 5
        %v3575 = vsel %vm1700, %v3570, %v3574
        %v3577 = vshrl.u32 %v3465, 16
        %v3579 = vrot.slane %v3577, 4
        %v3580 = vshll.u32 %v3465, 16
        %v3582 = vrot.slane %v3580, 5
        %v3583 = vor.u32 %v3579, %v3582
        %v3584 = vrot.slane %v3583, 4
        %v3586 = vshll.u32 %v3466, 16
        %v3588 = vrot.slane %v3586, 5
        %v3589 = vsel %vm1700, %v3584, %v3588
        %v3590 = vshrl.u32 %v3466, 16
        %v3592 = vrot.slane %v3590, 4
        %v3593 = vor.u32 %v3592, %v3588
        %v3594 = vrot.slane %v3593, 4
        %v3596 = vshll.u32 %v3467, 16
        %v3598 = vrot.slane %v3596, 5
        %v3599 = vsel %vm1700, %v3594, %v3598
        %v3601 = vshrl.u32 %v3468, 16
        %v3603 = vrot.slane %v3601, 4
        %v3604 = vshll.u32 %v3468, 16
        %v3606 = vrot.slane %v3604, 5
        %v3607 = vor.u32 %v3603, %v3606
        %v3608 = vrot.slane %v3607, 4
        %v3610 = vshll.u32 %v3469, 16
        %v3612 = vrot.slane %v3610, 5
        %v3613 = vsel %vm1700, %v3608, %v3612
        %v3614 = vshrl.u32 %v3469, 16
        %v3616 = vrot.slane %v3614, 4
        %v3617 = vor.u32 %v3616, %v3612
        %v3618 = vrot.slane %v3617, 4
        %v3620 = vshll.u32 %v3470, 16
        %v3622 = vrot.slane %v3620, 5
        %v3623 = vsel %vm1700, %v3618, %v3622
        %v3625 = vshrl.u32 %v3471, 16
        %v3627 = vrot.slane %v3625, 4
        %v3628 = vshll.u32 %v3471, 16
        %v3630 = vrot.slane %v3628, 5
        %v3631 = vor.u32 %v3627, %v3630
        %v3632 = vrot.slane %v3631, 4
        %v3634 = vshll.u32 %v3472, 16
        %v3636 = vrot.slane %v3634, 5
        %v3637 = vsel %vm1700, %v3632, %v3636
        %v3638 = vshrl.u32 %v3472, 16
        %v3640 = vrot.slane %v3638, 4
        %v3641 = vor.u32 %v3640, %v3636
        %v3642 = vrot.slane %v3641, 4
        %v3644 = vshll.u32 %v3473, 16
        %v3646 = vrot.slane %v3644, 5
        %v3647 = vsel %vm1700, %v3642, %v3646
        %v3649 = vshrl.u32 %v3474, 16
        %v3651 = vrot.slane %v3649, 4
        %v3652 = vshll.u32 %v3474, 16
        %v3654 = vrot.slane %v3652, 5
        %v3655 = vor.u32 %v3651, %v3654
        %v3656 = vrot.slane %v3655, 4
        %v3658 = vshll.u32 %v3475, 16
        %v3660 = vrot.slane %v3658, 5
        %v3661 = vsel %vm1700, %v3656, %v3660
        %v3662 = vshrl.u32 %v3475, 16
        %v3664 = vrot.slane %v3662, 4
        %v3665 = vor.u32 %v3664, %v3660
        %v3666 = vrot.slane %v3665, 4
        %v3668 = vshll.u32 %v3476, 16
        %v3670 = vrot.slane %v3668, 5
        %v3671 = vsel %vm1700, %v3666, %v3670
        %v3673 = vshrl.u32 %v3477, 16
        %v3675 = vrot.slane %v3673, 4
        %v3676 = vshll.u32 %v3477, 16
        %v3678 = vrot.slane %v3676, 5
        %v3679 = vor.u32 %v3675, %v3678
        %v3680 = vrot.slane %v3679, 4
        %v3682 = vshll.u32 %v3478, 16
        %v3684 = vrot.slane %v3682, 5
        %v3685 = vsel %vm1700, %v3680, %v3684
        %v3686 = vshrl.u32 %v3478, 16
        %v3688 = vrot.slane %v3686, 4
        %v3689 = vor.u32 %v3688, %v3684
        %v3690 = vrot.slane %v3689, 4
        %v3692 = vshll.u32 %v3479, 16
        %v3694 = vrot.slane %v3692, 5
        %v3695 = vsel %vm1700, %v3690, %v3694
        %v3697 = vshrl.u32 %v3480, 16
        %v3699 = vrot.slane %v3697, 4
        %v3700 = vshll.u32 %v3480, 16
        %v3702 = vrot.slane %v3700, 5
        %v3703 = vor.u32 %v3699, %v3702
        %v3704 = vrot.slane %v3703, 4
        %v3706 = vshll.u32 %v3481, 16
        %v3708 = vrot.slane %v3706, 5
        %v3709 = vsel %vm1700, %v3704, %v3708
        %v3710 = vshrl.u32 %v3481, 16
        %v3712 = vrot.slane %v3710, 4
        %v3713 = vor.u32 %v3712, %v3708
        %v3714 = vrot.slane %v3713, 4
        %v3716 = vshll.u32 %v3482, 16
        %v3718 = vrot.slane %v3716, 5
        %v3719 = vsel %vm1700, %v3714, %v3718
        %v3721 = vshrl.u32 %v3483, 16
        %v3723 = vrot.slane %v3721, 4
        %v3724 = vshll.u32 %v3483, 16
        %v3726 = vrot.slane %v3724, 5
        %v3727 = vor.u32 %v3723, %v3726
        %v3728 = vrot.slane %v3727, 4
        %v3730 = vshll.u32 %v3484, 16
        %v3732 = vrot.slane %v3730, 5
        %v3733 = vsel %vm1700, %v3728, %v3732
        %v3734 = vshrl.u32 %v3484, 16
        %v3736 = vrot.slane %v3734, 4
        %v3737 = vor.u32 %v3736, %v3732
        %v3738 = vrot.slane %v3737, 4
        %v3740 = vshll.u32 %v3485, 16
        %v3742 = vrot.slane %v3740, 5
        %v3743 = vsel %vm1700, %v3738, %v3742
        %v3745 = vshrl.u32 %v3486, 16
        %v3747 = vrot.slane %v3745, 4
        %v3748 = vshll.u32 %v3486, 16
        %v3750 = vrot.slane %v3748, 5
        %v3751 = vor.u32 %v3747, %v3750
        %v3752 = vrot.slane %v3751, 4
        %v3754 = vshll.u32 %v3487, 16
        %v3756 = vrot.slane %v3754, 5
        %v3757 = vsel %vm1700, %v3752, %v3756
        %v3758 = vshrl.u32 %v3487, 16
        %v3760 = vrot.slane %v3758, 4
        %v3761 = vor.u32 %v3760, %v3756
        %v3762 = vrot.slane %v3761, 4
        %v3764 = vshll.u32 %v3488, 16
        %v3766 = vrot.slane %v3764, 5
        %v3767 = vsel %vm1700, %v3762, %v3766
        %v3769 = vshrl.u32 %v3489, 16
        %v3771 = vrot.slane %v3769, 4
        %v3772 = vshll.u32 %v3489, 16
        %v3774 = vrot.slane %v3772, 5
        %v3775 = vor.u32 %v3771, %v3774
        %v3776 = vrot.slane %v3775, 4
        %v3778 = vshll.u32 %v3490, 16
        %v3780 = vrot.slane %v3778, 5
        %v3781 = vsel %vm1700, %v3776, %v3780
        %v3782 = vshrl.u32 %v3490, 16
        %v3784 = vrot.slane %v3782, 4
        %v3785 = vor.u32 %v3784, %v3780
        %v3786 = vrot.slane %v3785, 4
        %v3788 = vshll.u32 %v3491, 16
        %v3790 = vrot.slane %v3788, 5
        %v3791 = vsel %vm1700, %v3786, %v3790
        %v3793 = vshrl.u32 %v3492, 16
        %v3795 = vrot.slane %v3793, 4
        %v3796 = vshll.u32 %v3492, 16
        %v3798 = vrot.slane %v3796, 5
        %v3799 = vor.u32 %v3795, %v3798
        %v3800 = vrot.slane %v3799, 4
        %v3802 = vshll.u32 %v3493, 16
        %v3804 = vrot.slane %v3802, 5
        %v3805 = vsel %vm1700, %v3800, %v3804
        %v3806 = vshrl.u32 %v3493, 16
        %v3808 = vrot.slane %v3806, 4
        %v3809 = vor.u32 %v3808, %v3804
        %v3810 = vrot.slane %v3809, 4
        %v3812 = vshll.u32 %v3494, 16
        %v3814 = vrot.slane %v3812, 5
        %v3815 = vsel %vm1700, %v3810, %v3814
        %v3817 = vshrl.u32 %v3495, 16
        %v3819 = vrot.slane %v3817, 4
        %v3820 = vshll.u32 %v3495, 16
        %v3822 = vrot.slane %v3820, 5
        %v3823 = vor.u32 %v3819, %v3822
        %v3824 = vrot.slane %v3823, 4
        %v3826 = vshll.u32 %v3496, 16
        %v3828 = vrot.slane %v3826, 5
        %v3829 = vsel %vm1700, %v3824, %v3828
        %v3830 = vshrl.u32 %v3496, 16
        %v3832 = vrot.slane %v3830, 4
        %v3833 = vor.u32 %v3832, %v3828
        %v3834 = vrot.slane %v3833, 4
        %v3836 = vshll.u32 %v3497, 16
        %v3838 = vrot.slane %v3836, 5
        %v3839 = vsel %vm1700, %v3834, %v3838
        %v3841 = vshrl.u32 %v3498, 16
        %v3843 = vrot.slane %v3841, 4
        %v3844 = vshll.u32 %v3498, 16
        %v3846 = vrot.slane %v3844, 5
        %v3847 = vor.u32 %v3843, %v3846
        %v3848 = vrot.slane %v3847, 4
        %v3850 = vshll.u32 %v3499, 16
        %v3852 = vrot.slane %v3850, 5
        %v3853 = vsel %vm1700, %v3848, %v3852
        %v3854 = vshrl.u32 %v3499, 16
        %v3856 = vrot.slane %v3854, 4
        %v3857 = vor.u32 %v3856, %v3852
        %v3858 = vrot.slane %v3857, 4
        %v3860 = vshll.u32 %v3500, 16
        %v3862 = vrot.slane %v3860, 5
        %v3863 = vsel %vm1700, %v3858, %v3862
        %v3865 = vshrl.u32 %v3501, 16
        %v3867 = vrot.slane %v3865, 4
        %v3868 = vshll.u32 %v3501, 16
        %v3870 = vrot.slane %v3868, 5
        %v3871 = vor.u32 %v3867, %v3870
        %v3872 = vrot.slane %v3871, 4
        %v3874 = vshll.u32 %v3502, 16
        %v3876 = vrot.slane %v3874, 5
        %v3877 = vsel %vm1700, %v3872, %v3876
        %v3878 = vshrl.u32 %v3502, 16
        %v3880 = vrot.slane %v3878, 4
        %v3881 = vor.u32 %v3880, %v3876
        %v3882 = vrot.slane %v3881, 4
        %v3884 = vshll.u32 %v3503, 16
        %v3886 = vrot.slane %v3884, 5
        %v3887 = vsel %vm1700, %v3882, %v3886
        %s3888 = scalar_lea.vmem [#allocation11], 16
        %v3889 = vld [vmem:[%s3888] sm:$0xf]
        %v3890 = vunpack.c.l.b16 %v3517
        %v3891 = vunpack.c.l.b16 %v3527
        %v3892 = vunpack.c.l.b16 %v3541
        %v3893 = vunpack.c.l.b16 %v3551
        %v3894 = vunpack.c.l.b16 %v3565
        %v3895 = vunpack.c.l.b16 %v3575
        %v3896 = vunpack.c.l.b16 %v3589
        %v3897 = vunpack.c.l.b16 %v3599
        %v3898 = vunpack.c.l.b16 %v3613
        %v3899 = vunpack.c.l.b16 %v3623
        %v3900 = vunpack.c.l.b16 %v3637
        %v3901 = vunpack.c.l.b16 %v3647
        %v3902 = vunpack.c.l.b16 %v3661
        %v3903 = vunpack.c.l.b16 %v3671
        %v3904 = vunpack.c.l.b16 %v3685
        %v3905 = vunpack.c.l.b16 %v3695
        %v3906 = vunpack.c.l.b16 %v3709
        %v3907 = vunpack.c.l.b16 %v3719
        %v3908 = vunpack.c.l.b16 %v3733
        %v3909 = vunpack.c.l.b16 %v3743
        %v3910 = vunpack.c.l.b16 %v3757
        %v3911 = vunpack.c.l.b16 %v3767
        %v3912 = vunpack.c.l.b16 %v3781
        %v3913 = vunpack.c.l.b16 %v3791
        %v3914 = vunpack.c.l.b16 %v3805
        %v3915 = vunpack.c.l.b16 %v3815
        %v3916 = vunpack.c.l.b16 %v3829
        %v3917 = vunpack.c.l.b16 %v3839
        %v3918 = vunpack.c.l.b16 %v3853
        %v3919 = vunpack.c.l.b16 %v3863
        %v3920 = vunpack.c.l.b16 %v3877
        %v3921 = vunpack.c.l.b16 %v3887
        %v3922 = vpack.c.b16 %v3891, %v3890
        %v3923 = vpack.c.b16 %v3893, %v3892
        %v3924 = vpack.c.b16 %v3895, %v3894
        %v3925 = vpack.c.b16 %v3897, %v3896
        %v3926 = vpack.c.b16 %v3899, %v3898
        %v3927 = vpack.c.b16 %v3901, %v3900
        %v3928 = vpack.c.b16 %v3903, %v3902
        %v3929 = vpack.c.b16 %v3905, %v3904
        %v3930 = vpack.c.b16 %v3907, %v3906
        %v3931 = vpack.c.b16 %v3909, %v3908
        %v3932 = vpack.c.b16 %v3911, %v3910
        %v3933 = vpack.c.b16 %v3913, %v3912
        %v3934 = vpack.c.b16 %v3915, %v3914
        %v3935 = vpack.c.b16 %v3917, %v3916
        %v3936 = vpack.c.b16 %v3919, %v3918
        %v3937 = vpack.c.b16 %v3921, %v3920
        %v3939 = vsel %vm2135, %v3922, 0
        %v3942 = vsel %vm2135, %v3923, 0
        %v3945 = vsel %vm2135, %v3924, 0
        %v3948 = vsel %vm2135, %v3925, 0
        %v3951 = vsel %vm2135, %v3926, 0
        %v3954 = vsel %vm2135, %v3927, 0
        %v3957 = vsel %vm2135, %v3928, 0
        %v3960 = vsel %vm2135, %v3929, 0
        %v3963 = vsel %vm2135, %v3930, 0
        %v3966 = vsel %vm2135, %v3931, 0
        %v3969 = vsel %vm2135, %v3932, 0
        %v3972 = vsel %vm2135, %v3933, 0
        %v3975 = vsel %vm2135, %v3934, 0
        %v3978 = vsel %vm2135, %v3935, 0
        %v3981 = vsel %vm2135, %v3936, 0
        %v3984 = vsel %vm2135, %v3937, 0
        %v3987 = vsel %vm2184, %v3889, 0
        %3989 = vmatprep.subr.bf16.mxu0 0
        %3990 = vmatpush1.bf16.msra.mxu0 %v3987
        %3991 = vmatprep.subr.bf16.mxu0 0
        %3992 = vmatpush1.bf16.msra.mxu0 0
        %3993 = vmatprep.subr.bf16.mxu0 0
        %3994 = vmatpush1.bf16.msra.mxu0 0
        %3995 = vmatprep.subr.bf16.mxu0 0
        %3996 = vmatpush1.bf16.msra.mxu0 0
        %3997 = vmatprep.subr.bf16.mxu0 0
        %3998 = vmatpush1.bf16.msra.mxu0 0
        %3999 = vmatprep.subr.bf16.mxu0 0
        %4000 = vmatpush1.bf16.msra.mxu0 0
        %4001 = vmatprep.subr.bf16.mxu0 0
        %4002 = vmatpush1.bf16.msra.mxu0 0
        %4003 = vmatprep.subr.bf16.mxu0 0
        %4004 = vmatpush1.bf16.msra.mxu0 0
        %4005 = vmatprep.subr.bf16.mxu0 0
        %4006 = vmatpush1.bf16.msra.mxu0 0
        %4007 = vmatprep.subr.bf16.mxu0 0
        %4008 = vmatpush1.bf16.msra.mxu0 0
        %4009 = vmatprep.subr.bf16.mxu0 0
        %4010 = vmatpush1.bf16.msra.mxu0 0
        %4011 = vmatprep.subr.bf16.mxu0 0
        %4012 = vmatpush1.bf16.msra.mxu0 0
        %4013 = vmatprep.subr.bf16.mxu0 0
        %4014 = vmatpush1.bf16.msra.mxu0 0
        %4015 = vmatprep.subr.bf16.mxu0 0
        %4016 = vmatpush1.bf16.msra.mxu0 0
        %4017 = vmatprep.subr.bf16.mxu0 0
        %4018 = vmatpush1.bf16.msra.mxu0 0
        %4019 = vmatprep.subr.bf16.mxu0 0
        %4020 = vmatpush1.bf16.msra.mxu0 0
        %4021 = vmatprep.mubr.bf16.mxu0 0
        %4022 = vmatmul.mubr.bf16.gmra.mrb[0].mxu0 %v3939
        %v4023 = vpop.f32.mrb[0].mxu0
        %v4024 = vadd.f32 0.0, %v4023
        %v4025 = vpop.f32.mrb[0].mxu0
        %v4026 = vpop.f32.mrb[0].mxu0
        %v4027 = vadd.f32 0.0, %v4026
        %v4028 = vpop.f32.mrb[0].mxu0
        %4029 = vmatprep.mubr.bf16.mxu0 0
        %4030 = vmatmul.mubr.bf16.gmra.mrb[0].mxu0 %v3942
        %v4031 = vpop.f32.mrb[0].mxu0
        %v4032 = vadd.f32 0.0, %v4031
        %v4033 = vpop.f32.mrb[0].mxu0
        %v4034 = vpop.f32.mrb[0].mxu0
        %v4035 = vadd.f32 0.0, %v4034
        %v4036 = vpop.f32.mrb[0].mxu0
        %4037 = vmatprep.mubr.bf16.mxu0 0
        %4038 = vmatmul.mubr.bf16.gmra.mrb[0].mxu0 %v3945
        %v4039 = vpop.f32.mrb[0].mxu0
        %v4040 = vadd.f32 0.0, %v4039
        %v4041 = vpop.f32.mrb[0].mxu0
        %v4042 = vpop.f32.mrb[0].mxu0
        %v4043 = vadd.f32 0.0, %v4042
        %v4044 = vpop.f32.mrb[0].mxu0
        %4045 = vmatprep.mubr.bf16.mxu0 0
        %4046 = vmatmul.mubr.bf16.gmra.mrb[0].mxu0 %v3948
        %v4047 = vpop.f32.mrb[0].mxu0
        %v4048 = vadd.f32 0.0, %v4047
        %v4049 = vpop.f32.mrb[0].mxu0
        %v4050 = vpop.f32.mrb[0].mxu0
        %v4051 = vadd.f32 0.0, %v4050
        %v4052 = vpop.f32.mrb[0].mxu0
        %4053 = vmatprep.mubr.bf16.mxu0 0
        %4054 = vmatmul.mubr.bf16.gmra.mrb[0].mxu0 %v3951
        %v4055 = vpop.f32.mrb[0].mxu0
        %v4056 = vadd.f32 0.0, %v4055
        %v4057 = vpop.f32.mrb[0].mxu0
        %v4058 = vpop.f32.mrb[0].mxu0
        %v4059 = vadd.f32 0.0, %v4058
        %v4060 = vpop.f32.mrb[0].mxu0
        %4061 = vmatprep.mubr.bf16.mxu0 0
        %4062 = vmatmul.mubr.bf16.gmra.mrb[0].mxu0 %v3954
        %v4063 = vpop.f32.mrb[0].mxu0
        %v4064 = vadd.f32 0.0, %v4063
        %v4065 = vpop.f32.mrb[0].mxu0
        %v4066 = vpop.f32.mrb[0].mxu0
        %v4067 = vadd.f32 0.0, %v4066
        %v4068 = vpop.f32.mrb[0].mxu0
        %4069 = vmatprep.mubr.bf16.mxu0 0
        %4070 = vmatmul.mubr.bf16.gmra.mrb[0].mxu0 %v3957
        %v4071 = vpop.f32.mrb[0].mxu0
        %v4072 = vadd.f32 0.0, %v4071
        %v4073 = vpop.f32.mrb[0].mxu0
        %v4074 = vpop.f32.mrb[0].mxu0
        %v4075 = vadd.f32 0.0, %v4074
        %v4076 = vpop.f32.mrb[0].mxu0
        %4077 = vmatprep.mubr.bf16.mxu0 0
        %4078 = vmatmul.mubr.bf16.gmra.mrb[0].mxu0 %v3960
        %v4079 = vpop.f32.mrb[0].mxu0
        %v4080 = vadd.f32 0.0, %v4079
        %v4081 = vpop.f32.mrb[0].mxu0
        %v4082 = vpop.f32.mrb[0].mxu0
        %v4083 = vadd.f32 0.0, %v4082
        %v4084 = vpop.f32.mrb[0].mxu0
        %4085 = vmatprep.mubr.bf16.mxu0 0
        %4086 = vmatmul.mubr.bf16.gmra.mrb[0].mxu0 %v3963
        %v4087 = vpop.f32.mrb[0].mxu0
        %v4088 = vadd.f32 0.0, %v4087
        %v4089 = vpop.f32.mrb[0].mxu0
        %v4090 = vpop.f32.mrb[0].mxu0
        %v4091 = vadd.f32 0.0, %v4090
        %v4092 = vpop.f32.mrb[0].mxu0
        %4093 = vmatprep.mubr.bf16.mxu0 0
        %4094 = vmatmul.mubr.bf16.gmra.mrb[0].mxu0 %v3966
        %v4095 = vpop.f32.mrb[0].mxu0
        %v4096 = vadd.f32 0.0, %v4095
        %v4097 = vpop.f32.mrb[0].mxu0
        %v4098 = vpop.f32.mrb[0].mxu0
        %v4099 = vadd.f32 0.0, %v4098
        %v4100 = vpop.f32.mrb[0].mxu0
        %4101 = vmatprep.mubr.bf16.mxu0 0
        %4102 = vmatmul.mubr.bf16.gmra.mrb[0].mxu0 %v3969
        %v4103 = vpop.f32.mrb[0].mxu0
        %v4104 = vadd.f32 0.0, %v4103
        %v4105 = vpop.f32.mrb[0].mxu0
        %v4106 = vpop.f32.mrb[0].mxu0
        %v4107 = vadd.f32 0.0, %v4106
        %v4108 = vpop.f32.mrb[0].mxu0
        %4109 = vmatprep.mubr.bf16.mxu0 0
        %4110 = vmatmul.mubr.bf16.gmra.mrb[0].mxu0 %v3972
        %v4111 = vpop.f32.mrb[0].mxu0
        %v4112 = vadd.f32 0.0, %v4111
        %v4113 = vpop.f32.mrb[0].mxu0
        %v4114 = vpop.f32.mrb[0].mxu0
        %v4115 = vadd.f32 0.0, %v4114
        %v4116 = vpop.f32.mrb[0].mxu0
        %4117 = vmatprep.mubr.bf16.mxu0 0
        %4118 = vmatmul.mubr.bf16.gmra.mrb[0].mxu0 %v3975
        %v4119 = vpop.f32.mrb[0].mxu0
        %v4120 = vadd.f32 0.0, %v4119
        %v4121 = vpop.f32.mrb[0].mxu0
        %v4122 = vpop.f32.mrb[0].mxu0
        %v4123 = vadd.f32 0.0, %v4122
        %v4124 = vpop.f32.mrb[0].mxu0
        %4125 = vmatprep.mubr.bf16.mxu0 0
        %4126 = vmatmul.mubr.bf16.gmra.mrb[0].mxu0 %v3978
        %v4127 = vpop.f32.mrb[0].mxu0
        %v4128 = vadd.f32 0.0, %v4127
        %v4129 = vpop.f32.mrb[0].mxu0
        %v4130 = vpop.f32.mrb[0].mxu0
        %v4131 = vadd.f32 0.0, %v4130
        %v4132 = vpop.f32.mrb[0].mxu0
        %4133 = vmatprep.mubr.bf16.mxu0 0
        %4134 = vmatmul.mubr.bf16.gmra.mrb[0].mxu0 %v3981
        %v4135 = vpop.f32.mrb[0].mxu0
        %v4136 = vadd.f32 0.0, %v4135
        %v4137 = vpop.f32.mrb[0].mxu0
        %v4138 = vpop.f32.mrb[0].mxu0
        %v4139 = vadd.f32 0.0, %v4138
        %v4140 = vpop.f32.mrb[0].mxu0
        %4141 = vmatprep.mubr.bf16.mxu0 0
        %4142 = vmatmul.mubr.bf16.gmra.mrb[0].mxu0 %v3984
        %v4143 = vpop.f32.mrb[0].mxu0
        %v4144 = vadd.f32 0.0, %v4143
        %v4145 = vpop.f32.mrb[0].mxu0
        %v4146 = vpop.f32.mrb[0].mxu0
        %v4147 = vadd.f32 0.0, %v4146
        %v4148 = vpop.f32.mrb[0].mxu0
        %4149 = vdwg.mxu0
        %v4150 = vadd.f32 %v3424, %v4024
        %v4151 = vadd.f32 %v3425, %v4027
        %v4152 = vadd.f32 %v3426, %v4032
        %v4153 = vadd.f32 %v3427, %v4035
        %v4154 = vadd.f32 %v3428, %v4040
        %v4155 = vadd.f32 %v3429, %v4043
        %v4156 = vadd.f32 %v3430, %v4048
        %v4157 = vadd.f32 %v3431, %v4051
        %v4158 = vadd.f32 %v3432, %v4056
        %v4159 = vadd.f32 %v3433, %v4059
        %v4160 = vadd.f32 %v3434, %v4064
        %v4161 = vadd.f32 %v3435, %v4067
        %v4162 = vadd.f32 %v3436, %v4072
        %v4163 = vadd.f32 %v3437, %v4075
        %v4164 = vadd.f32 %v3438, %v4080
        %v4165 = vadd.f32 %v3439, %v4083
        %v4166 = vadd.f32 %v3440, %v4088
        %v4167 = vadd.f32 %v3441, %v4091
        %v4168 = vadd.f32 %v3442, %v4096
        %v4169 = vadd.f32 %v3443, %v4099
        %v4170 = vadd.f32 %v3444, %v4104
        %v4171 = vadd.f32 %v3445, %v4107
        %v4172 = vadd.f32 %v3446, %v4112
        %v4173 = vadd.f32 %v3447, %v4115
        %v4174 = vadd.f32 %v3448, %v4120
        %v4175 = vadd.f32 %v3449, %v4123
        %v4176 = vadd.f32 %v3450, %v4128
        %v4177 = vadd.f32 %v3451, %v4131
        %v4178 = vadd.f32 %v3452, %v4136
        %v4179 = vadd.f32 %v3453, %v4139
        %v4180 = vadd.f32 %v3454, %v4144
        %v4181 = vadd.f32 %v3455, %v4147
        %v4182 = vld [vmem:[%s1531] sm:$0xe]
        %v4183 = vld [vmem:[%s1531 + $0xc] sm:$0xe]
        %v4184 = vld [vmem:[%s1531 + $0x18] sm:$0xe]
        %v4185 = vld [vmem:[%s1531 + $0x24] sm:$0xe]
        %v4186 = vld [vmem:[%s1531 + $0x30] sm:$0xe]
        %v4187 = vld [vmem:[%s1531 + $0x3c] sm:$0xe]
        %v4188 = vld [vmem:[%s1531 + $0x48] sm:$0xe]
        %v4189 = vld [vmem:[%s1531 + $0x54] sm:$0xe]
        %v4190 = vld [vmem:[%s1531 + $0x60] sm:$0xe]
        %v4191 = vld [vmem:[%s1531 + $0x6c] sm:$0xe]
        %v4192 = vld [vmem:[%s1531 + $0x78] sm:$0xe]
        %v4193 = vld [vmem:[%s1531 + $0x84] sm:$0xe]
        %v4194 = vld [vmem:[%s1531 + $0x90] sm:$0xe]
        %v4195 = vld [vmem:[%s1531 + $0x9c] sm:$0xe]
        %v4196 = vld [vmem:[%s1531 + $0xa8] sm:$0xe]
        %v4197 = vld [vmem:[%s1531 + $0xb4] sm:$0xe]
        %v4246 = vrot.slane %v4182, 5
        %v4247 = vrot.slane %v4246, 4
        %v4248 = vrot.slane %v3457, 5
        %v4249 = vsel %vm2691, %v4247, %v4248
        %v4250 = vrot.slane %v4248, 4
        %v4251 = vrot.slane %v3458, 5
        %v4252 = vsel %vm2691, %v4250, %v4251
        %v4253 = vrot.slane %v4183, 5
        %v4254 = vrot.slane %v4253, 4
        %v4255 = vrot.slane %v3460, 5
        %v4256 = vsel %vm2691, %v4254, %v4255
        %v4257 = vrot.slane %v4255, 4
        %v4258 = vrot.slane %v3461, 5
        %v4259 = vsel %vm2691, %v4257, %v4258
        %v4260 = vrot.slane %v4184, 5
        %v4261 = vrot.slane %v4260, 4
        %v4262 = vrot.slane %v3463, 5
        %v4263 = vsel %vm2691, %v4261, %v4262
        %v4264 = vrot.slane %v4262, 4
        %v4265 = vrot.slane %v3464, 5
        %v4266 = vsel %vm2691, %v4264, %v4265
        %v4267 = vrot.slane %v4185, 5
        %v4268 = vrot.slane %v4267, 4
        %v4269 = vrot.slane %v3466, 5
        %v4270 = vsel %vm2691, %v4268, %v4269
        %v4271 = vrot.slane %v4269, 4
        %v4272 = vrot.slane %v3467, 5
        %v4273 = vsel %vm2691, %v4271, %v4272
        %v4274 = vrot.slane %v4186, 5
        %v4275 = vrot.slane %v4274, 4
        %v4276 = vrot.slane %v3469, 5
        %v4277 = vsel %vm2691, %v4275, %v4276
        %v4278 = vrot.slane %v4276, 4
        %v4279 = vrot.slane %v3470, 5
        %v4280 = vsel %vm2691, %v4278, %v4279
        %v4281 = vrot.slane %v4187, 5
        %v4282 = vrot.slane %v4281, 4
        %v4283 = vrot.slane %v3472, 5
        %v4284 = vsel %vm2691, %v4282, %v4283
        %v4285 = vrot.slane %v4283, 4
        %v4286 = vrot.slane %v3473, 5
        %v4287 = vsel %vm2691, %v4285, %v4286
        %v4288 = vrot.slane %v4188, 5
        %v4289 = vrot.slane %v4288, 4
        %v4290 = vrot.slane %v3475, 5
        %v4291 = vsel %vm2691, %v4289, %v4290
        %v4292 = vrot.slane %v4290, 4
        %v4293 = vrot.slane %v3476, 5
        %v4294 = vsel %vm2691, %v4292, %v4293
        %v4295 = vrot.slane %v4189, 5
        %v4296 = vrot.slane %v4295, 4
        %v4297 = vrot.slane %v3478, 5
        %v4298 = vsel %vm2691, %v4296, %v4297
        %v4299 = vrot.slane %v4297, 4
        %v4300 = vrot.slane %v3479, 5
        %v4301 = vsel %vm2691, %v4299, %v4300
        %v4302 = vrot.slane %v4190, 5
        %v4303 = vrot.slane %v4302, 4
        %v4304 = vrot.slane %v3481, 5
        %v4305 = vsel %vm2691, %v4303, %v4304
        %v4306 = vrot.slane %v4304, 4
        %v4307 = vrot.slane %v3482, 5
        %v4308 = vsel %vm2691, %v4306, %v4307
        %v4309 = vrot.slane %v4191, 5
        %v4310 = vrot.slane %v4309, 4
        %v4311 = vrot.slane %v3484, 5
        %v4312 = vsel %vm2691, %v4310, %v4311
        %v4313 = vrot.slane %v4311, 4
        %v4314 = vrot.slane %v3485, 5
        %v4315 = vsel %vm2691, %v4313, %v4314
        %v4316 = vrot.slane %v4192, 5
        %v4317 = vrot.slane %v4316, 4
        %v4318 = vrot.slane %v3487, 5
        %v4319 = vsel %vm2691, %v4317, %v4318
        %v4320 = vrot.slane %v4318, 4
        %v4321 = vrot.slane %v3488, 5
        %v4322 = vsel %vm2691, %v4320, %v4321
        %v4323 = vrot.slane %v4193, 5
        %v4324 = vrot.slane %v4323, 4
        %v4325 = vrot.slane %v3490, 5
        %v4326 = vsel %vm2691, %v4324, %v4325
        %v4327 = vrot.slane %v4325, 4
        %v4328 = vrot.slane %v3491, 5
        %v4329 = vsel %vm2691, %v4327, %v4328
        %v4330 = vrot.slane %v4194, 5
        %v4331 = vrot.slane %v4330, 4
        %v4332 = vrot.slane %v3493, 5
        %v4333 = vsel %vm2691, %v4331, %v4332
        %v4334 = vrot.slane %v4332, 4
        %v4335 = vrot.slane %v3494, 5
        %v4336 = vsel %vm2691, %v4334, %v4335
        %v4337 = vrot.slane %v4195, 5
        %v4338 = vrot.slane %v4337, 4
        %v4339 = vrot.slane %v3496, 5
        %v4340 = vsel %vm2691, %v4338, %v4339
        %v4341 = vrot.slane %v4339, 4
        %v4342 = vrot.slane %v3497, 5
        %v4343 = vsel %vm2691, %v4341, %v4342
        %v4344 = vrot.slane %v4196, 5
        %v4345 = vrot.slane %v4344, 4
        %v4346 = vrot.slane %v3499, 5
        %v4347 = vsel %vm2691, %v4345, %v4346
        %v4348 = vrot.slane %v4346, 4
        %v4349 = vrot.slane %v3500, 5
        %v4350 = vsel %vm2691, %v4348, %v4349
        %v4351 = vrot.slane %v4197, 5
        %v4352 = vrot.slane %v4351, 4
        %v4353 = vrot.slane %v3502, 5
        %v4354 = vsel %vm2691, %v4352, %v4353
        %v4355 = vrot.slane %v4353, 4
        %v4356 = vrot.slane %v3503, 5
        %v4357 = vsel %vm2691, %v4355, %v4356
        %s4358 = scalar_lea.vmem [#allocation11], 20
        %v4359 = vld [vmem:[%s4358] sm:$0xf]
        %v4360 = vunpack.c.l.b16 %v4249
        %v4361 = vunpack.c.l.b16 %v4252
        %v4362 = vunpack.c.l.b16 %v4256
        %v4363 = vunpack.c.l.b16 %v4259
        %v4364 = vunpack.c.l.b16 %v4263
        %v4365 = vunpack.c.l.b16 %v4266
        %v4366 = vunpack.c.l.b16 %v4270
        %v4367 = vunpack.c.l.b16 %v4273
        %v4368 = vunpack.c.l.b16 %v4277
        %v4369 = vunpack.c.l.b16 %v4280
        %v4370 = vunpack.c.l.b16 %v4284
        %v4371 = vunpack.c.l.b16 %v4287
        %v4372 = vunpack.c.l.b16 %v4291
        %v4373 = vunpack.c.l.b16 %v4294
        %v4374 = vunpack.c.l.b16 %v4298
        %v4375 = vunpack.c.l.b16 %v4301
        %v4376 = vunpack.c.l.b16 %v4305
        %v4377 = vunpack.c.l.b16 %v4308
        %v4378 = vunpack.c.l.b16 %v4312
        %v4379 = vunpack.c.l.b16 %v4315
        %v4380 = vunpack.c.l.b16 %v4319
        %v4381 = vunpack.c.l.b16 %v4322
        %v4382 = vunpack.c.l.b16 %v4326
        %v4383 = vunpack.c.l.b16 %v4329
        %v4384 = vunpack.c.l.b16 %v4333
        %v4385 = vunpack.c.l.b16 %v4336
        %v4386 = vunpack.c.l.b16 %v4340
        %v4387 = vunpack.c.l.b16 %v4343
        %v4388 = vunpack.c.l.b16 %v4347
        %v4389 = vunpack.c.l.b16 %v4350
        %v4390 = vunpack.c.l.b16 %v4354
        %v4391 = vunpack.c.l.b16 %v4357
        %v4392 = vpack.c.b16 %v4361, %v4360
        %v4393 = vpack.c.b16 %v4363, %v4362
        %v4394 = vpack.c.b16 %v4365, %v4364
        %v4395 = vpack.c.b16 %v4367, %v4366
        %v4396 = vpack.c.b16 %v4369, %v4368
        %v4397 = vpack.c.b16 %v4371, %v4370
        %v4398 = vpack.c.b16 %v4373, %v4372
        %v4399 = vpack.c.b16 %v4375, %v4374
        %v4400 = vpack.c.b16 %v4377, %v4376
        %v4401 = vpack.c.b16 %v4379, %v4378
        %v4402 = vpack.c.b16 %v4381, %v4380
        %v4403 = vpack.c.b16 %v4383, %v4382
        %v4404 = vpack.c.b16 %v4385, %v4384
        %v4405 = vpack.c.b16 %v4387, %v4386
        %v4406 = vpack.c.b16 %v4389, %v4388
        %v4407 = vpack.c.b16 %v4391, %v4390
        %v4409 = vsel %vm2135, %v4392, 0
        %v4412 = vsel %vm2135, %v4393, 0
        %v4415 = vsel %vm2135, %v4394, 0
        %v4418 = vsel %vm2135, %v4395, 0
        %v4421 = vsel %vm2135, %v4396, 0
        %v4424 = vsel %vm2135, %v4397, 0
        %v4427 = vsel %vm2135, %v4398, 0
        %v4430 = vsel %vm2135, %v4399, 0
        %v4433 = vsel %vm2135, %v4400, 0
        %v4436 = vsel %vm2135, %v4401, 0
        %v4439 = vsel %vm2135, %v4402, 0
        %v4442 = vsel %vm2135, %v4403, 0
        %v4445 = vsel %vm2135, %v4404, 0
        %v4448 = vsel %vm2135, %v4405, 0
        %v4451 = vsel %vm2135, %v4406, 0
        %v4454 = vsel %vm2135, %v4407, 0
        %v4457 = vsel %vm2184, %v4359, 0
        %4459 = vmatprep.subr.bf16.mxu0 0
        %4460 = vmatpush1.bf16.msra.mxu0 %v4457
        %4461 = vmatprep.subr.bf16.mxu0 0
        %4462 = vmatpush1.bf16.msra.mxu0 0
        %4463 = vmatprep.subr.bf16.mxu0 0
        %4464 = vmatpush1.bf16.msra.mxu0 0
        %4465 = vmatprep.subr.bf16.mxu0 0
        %4466 = vmatpush1.bf16.msra.mxu0 0
        %4467 = vmatprep.subr.bf16.mxu0 0
        %4468 = vmatpush1.bf16.msra.mxu0 0
        %4469 = vmatprep.subr.bf16.mxu0 0
        %4470 = vmatpush1.bf16.msra.mxu0 0
        %4471 = vmatprep.subr.bf16.mxu0 0
        %4472 = vmatpush1.bf16.msra.mxu0 0
        %4473 = vmatprep.subr.bf16.mxu0 0
        %4474 = vmatpush1.bf16.msra.mxu0 0
        %4475 = vmatprep.subr.bf16.mxu0 0
        %4476 = vmatpush1.bf16.msra.mxu0 0
        %4477 = vmatprep.subr.bf16.mxu0 0
        %4478 = vmatpush1.bf16.msra.mxu0 0
        %4479 = vmatprep.subr.bf16.mxu0 0
        %4480 = vmatpush1.bf16.msra.mxu0 0
        %4481 = vmatprep.subr.bf16.mxu0 0
        %4482 = vmatpush1.bf16.msra.mxu0 0
        %4483 = vmatprep.subr.bf16.mxu0 0
        %4484 = vmatpush1.bf16.msra.mxu0 0
        %4485 = vmatprep.subr.bf16.mxu0 0
        %4486 = vmatpush1.bf16.msra.mxu0 0
        %4487 = vmatprep.subr.bf16.mxu0 0
        %4488 = vmatpush1.bf16.msra.mxu0 0
        %4489 = vmatprep.subr.bf16.mxu0 0
        %4490 = vmatpush1.bf16.msra.mxu0 0
        %4491 = vmatprep.mubr.bf16.mxu0 0
        %4492 = vmatmul.mubr.bf16.gmra.mrb[0].mxu0 %v4409
        %v4493 = vpop.f32.mrb[0].mxu0
        %v4494 = vadd.f32 0.0, %v4493
        %v4495 = vpop.f32.mrb[0].mxu0
        %v4496 = vpop.f32.mrb[0].mxu0
        %v4497 = vadd.f32 0.0, %v4496
        %v4498 = vpop.f32.mrb[0].mxu0
        %4499 = vmatprep.mubr.bf16.mxu0 0
        %4500 = vmatmul.mubr.bf16.gmra.mrb[0].mxu0 %v4412
        %v4501 = vpop.f32.mrb[0].mxu0
        %v4502 = vadd.f32 0.0, %v4501
        %v4503 = vpop.f32.mrb[0].mxu0
        %v4504 = vpop.f32.mrb[0].mxu0
        %v4505 = vadd.f32 0.0, %v4504
        %v4506 = vpop.f32.mrb[0].mxu0
        %4507 = vmatprep.mubr.bf16.mxu0 0
        %4508 = vmatmul.mubr.bf16.gmra.mrb[0].mxu0 %v4415
        %v4509 = vpop.f32.mrb[0].mxu0
        %v4510 = vadd.f32 0.0, %v4509
        %v4511 = vpop.f32.mrb[0].mxu0
        %v4512 = vpop.f32.mrb[0].mxu0
        %v4513 = vadd.f32 0.0, %v4512
        %v4514 = vpop.f32.mrb[0].mxu0
        %4515 = vmatprep.mubr.bf16.mxu0 0
        %4516 = vmatmul.mubr.bf16.gmra.mrb[0].mxu0 %v4418
        %v4517 = vpop.f32.mrb[0].mxu0
        %v4518 = vadd.f32 0.0, %v4517
        %v4519 = vpop.f32.mrb[0].mxu0
        %v4520 = vpop.f32.mrb[0].mxu0
        %v4521 = vadd.f32 0.0, %v4520
        %v4522 = vpop.f32.mrb[0].mxu0
        %4523 = vmatprep.mubr.bf16.mxu0 0
        %4524 = vmatmul.mubr.bf16.gmra.mrb[0].mxu0 %v4421
        %v4525 = vpop.f32.mrb[0].mxu0
        %v4526 = vadd.f32 0.0, %v4525
        %v4527 = vpop.f32.mrb[0].mxu0
        %v4528 = vpop.f32.mrb[0].mxu0
        %v4529 = vadd.f32 0.0, %v4528
        %v4530 = vpop.f32.mrb[0].mxu0
        %4531 = vmatprep.mubr.bf16.mxu0 0
        %4532 = vmatmul.mubr.bf16.gmra.mrb[0].mxu0 %v4424
        %v4533 = vpop.f32.mrb[0].mxu0
        %v4534 = vadd.f32 0.0, %v4533
        %v4535 = vpop.f32.mrb[0].mxu0
        %v4536 = vpop.f32.mrb[0].mxu0
        %v4537 = vadd.f32 0.0, %v4536
        %v4538 = vpop.f32.mrb[0].mxu0
        %4539 = vmatprep.mubr.bf16.mxu0 0
        %4540 = vmatmul.mubr.bf16.gmra.mrb[0].mxu0 %v4427
        %v4541 = vpop.f32.mrb[0].mxu0
        %v4542 = vadd.f32 0.0, %v4541
        %v4543 = vpop.f32.mrb[0].mxu0
        %v4544 = vpop.f32.mrb[0].mxu0
        %v4545 = vadd.f32 0.0, %v4544
        %v4546 = vpop.f32.mrb[0].mxu0
        %4547 = vmatprep.mubr.bf16.mxu0 0
        %4548 = vmatmul.mubr.bf16.gmra.mrb[0].mxu0 %v4430
        %v4549 = vpop.f32.mrb[0].mxu0
        %v4550 = vadd.f32 0.0, %v4549
        %v4551 = vpop.f32.mrb[0].mxu0
        %v4552 = vpop.f32.mrb[0].mxu0
        %v4553 = vadd.f32 0.0, %v4552
        %v4554 = vpop.f32.mrb[0].mxu0
        %4555 = vmatprep.mubr.bf16.mxu0 0
        %4556 = vmatmul.mubr.bf16.gmra.mrb[0].mxu0 %v4433
        %v4557 = vpop.f32.mrb[0].mxu0
        %v4558 = vadd.f32 0.0, %v4557
        %v4559 = vpop.f32.mrb[0].mxu0
        %v4560 = vpop.f32.mrb[0].mxu0
        %v4561 = vadd.f32 0.0, %v4560
        %v4562 = vpop.f32.mrb[0].mxu0
        %4563 = vmatprep.mubr.bf16.mxu0 0
        %4564 = vmatmul.mubr.bf16.gmra.mrb[0].mxu0 %v4436
        %v4565 = vpop.f32.mrb[0].mxu0
        %v4566 = vadd.f32 0.0, %v4565
        %v4567 = vpop.f32.mrb[0].mxu0
        %v4568 = vpop.f32.mrb[0].mxu0
        %v4569 = vadd.f32 0.0, %v4568
        %v4570 = vpop.f32.mrb[0].mxu0
        %4571 = vmatprep.mubr.bf16.mxu0 0
        %4572 = vmatmul.mubr.bf16.gmra.mrb[0].mxu0 %v4439
        %v4573 = vpop.f32.mrb[0].mxu0
        %v4574 = vadd.f32 0.0, %v4573
        %v4575 = vpop.f32.mrb[0].mxu0
        %v4576 = vpop.f32.mrb[0].mxu0
        %v4577 = vadd.f32 0.0, %v4576
        %v4578 = vpop.f32.mrb[0].mxu0
        %4579 = vmatprep.mubr.bf16.mxu0 0
        %4580 = vmatmul.mubr.bf16.gmra.mrb[0].mxu0 %v4442
        %v4581 = vpop.f32.mrb[0].mxu0
        %v4582 = vadd.f32 0.0, %v4581
        %v4583 = vpop.f32.mrb[0].mxu0
        %v4584 = vpop.f32.mrb[0].mxu0
        %v4585 = vadd.f32 0.0, %v4584
        %v4586 = vpop.f32.mrb[0].mxu0
        %4587 = vmatprep.mubr.bf16.mxu0 0
        %4588 = vmatmul.mubr.bf16.gmra.mrb[0].mxu0 %v4445
        %v4589 = vpop.f32.mrb[0].mxu0
        %v4590 = vadd.f32 0.0, %v4589
        %v4591 = vpop.f32.mrb[0].mxu0
        %v4592 = vpop.f32.mrb[0].mxu0
        %v4593 = vadd.f32 0.0, %v4592
        %v4594 = vpop.f32.mrb[0].mxu0
        %4595 = vmatprep.mubr.bf16.mxu0 0
        %4596 = vmatmul.mubr.bf16.gmra.mrb[0].mxu0 %v4448
        %v4597 = vpop.f32.mrb[0].mxu0
        %v4598 = vadd.f32 0.0, %v4597
        %v4599 = vpop.f32.mrb[0].mxu0
        %v4600 = vpop.f32.mrb[0].mxu0
        %v4601 = vadd.f32 0.0, %v4600
        %v4602 = vpop.f32.mrb[0].mxu0
        %4603 = vmatprep.mubr.bf16.mxu0 0
        %4604 = vmatmul.mubr.bf16.gmra.mrb[0].mxu0 %v4451
        %v4605 = vpop.f32.mrb[0].mxu0
        %v4606 = vadd.f32 0.0, %v4605
        %v4607 = vpop.f32.mrb[0].mxu0
        %v4608 = vpop.f32.mrb[0].mxu0
        %v4609 = vadd.f32 0.0, %v4608
        %v4610 = vpop.f32.mrb[0].mxu0
        %4611 = vmatprep.mubr.bf16.mxu0 0
        %4612 = vmatmul.mubr.bf16.gmra.mrb[0].mxu0 %v4454
        %v4613 = vpop.f32.mrb[0].mxu0
        %v4614 = vadd.f32 0.0, %v4613
        %v4615 = vpop.f32.mrb[0].mxu0
        %v4616 = vpop.f32.mrb[0].mxu0
        %v4617 = vadd.f32 0.0, %v4616
        %v4618 = vpop.f32.mrb[0].mxu0
        %4619 = vdwg.mxu0
        %v4620 = vadd.f32 %v4150, %v4494
        %v4621 = vadd.f32 %v4151, %v4497
        %v4622 = vadd.f32 %v4152, %v4502
        %v4623 = vadd.f32 %v4153, %v4505
        %v4624 = vadd.f32 %v4154, %v4510
        %v4625 = vadd.f32 %v4155, %v4513
        %v4626 = vadd.f32 %v4156, %v4518
        %v4627 = vadd.f32 %v4157, %v4521
        %v4628 = vadd.f32 %v4158, %v4526
        %v4629 = vadd.f32 %v4159, %v4529
        %v4630 = vadd.f32 %v4160, %v4534
        %v4631 = vadd.f32 %v4161, %v4537
        %v4632 = vadd.f32 %v4162, %v4542
        %v4633 = vadd.f32 %v4163, %v4545
        %v4634 = vadd.f32 %v4164, %v4550
        %v4635 = vadd.f32 %v4165, %v4553
        %v4636 = vadd.f32 %v4166, %v4558
        %v4637 = vadd.f32 %v4167, %v4561
        %v4638 = vadd.f32 %v4168, %v4566
        %v4639 = vadd.f32 %v4169, %v4569
        %v4640 = vadd.f32 %v4170, %v4574
        %v4641 = vadd.f32 %v4171, %v4577
        %v4642 = vadd.f32 %v4172, %v4582
        %v4643 = vadd.f32 %v4173, %v4585
        %v4644 = vadd.f32 %v4174, %v4590
        %v4645 = vadd.f32 %v4175, %v4593
        %v4646 = vadd.f32 %v4176, %v4598
        %v4647 = vadd.f32 %v4177, %v4601
        %v4648 = vadd.f32 %v4178, %v4606
        %v4649 = vadd.f32 %v4179, %v4609
        %v4650 = vadd.f32 %v4180, %v4614
        %v4651 = vadd.f32 %v4181, %v4617
        %s4652 = scalar_lea.vmem [#allocation2], 24
        %v4653 = vld [vmem:[%s4652] sm:$0xf]
        %v4654 = vld [vmem:[%s4652 + $0x4] sm:$0xf]
        %v4655 = vld [vmem:[%s4652 + $0xc] sm:$0xf]
        %v4656 = vld [vmem:[%s4652 + $0x10] sm:$0xf]
        %v4657 = vld [vmem:[%s4652 + $0x18] sm:$0xf]
        %v4658 = vld [vmem:[%s4652 + $0x1c] sm:$0xf]
        %v4659 = vld [vmem:[%s4652 + $0x24] sm:$0xf]
        %v4660 = vld [vmem:[%s4652 + $0x28] sm:$0xf]
        %v4661 = vld [vmem:[%s4652 + $0x30] sm:$0xf]
        %v4662 = vld [vmem:[%s4652 + $0x34] sm:$0xf]
        %v4663 = vld [vmem:[%s4652 + $0x3c] sm:$0xf]
        %v4664 = vld [vmem:[%s4652 + $0x40] sm:$0xf]
        %v4665 = vld [vmem:[%s4652 + $0x48] sm:$0xf]
        %v4666 = vld [vmem:[%s4652 + $0x4c] sm:$0xf]
        %v4667 = vld [vmem:[%s4652 + $0x54] sm:$0xf]
        %v4668 = vld [vmem:[%s4652 + $0x58] sm:$0xf]
        %v4669 = vld [vmem:[%s4652 + $0x60] sm:$0xf]
        %v4670 = vld [vmem:[%s4652 + $0x64] sm:$0xf]
        %v4671 = vld [vmem:[%s4652 + $0x6c] sm:$0xf]
        %v4672 = vld [vmem:[%s4652 + $0x70] sm:$0xf]
        %v4673 = vld [vmem:[%s4652 + $0x78] sm:$0xf]
        %v4674 = vld [vmem:[%s4652 + $0x7c] sm:$0xf]
        %v4675 = vld [vmem:[%s4652 + $0x84] sm:$0xf]
        %v4676 = vld [vmem:[%s4652 + $0x88] sm:$0xf]
        %v4677 = vld [vmem:[%s4652 + $0x90] sm:$0xf]
        %v4678 = vld [vmem:[%s4652 + $0x94] sm:$0xf]
        %v4679 = vld [vmem:[%s4652 + $0x9c] sm:$0xf]
        %v4680 = vld [vmem:[%s4652 + $0xa0] sm:$0xf]
        %v4681 = vld [vmem:[%s4652 + $0xa8] sm:$0xf]
        %v4682 = vld [vmem:[%s4652 + $0xac] sm:$0xf]
        %v4683 = vld [vmem:[%s4652 + $0xb4] sm:$0xf]
        %v4684 = vld [vmem:[%s4652 + $0xb8] sm:$0xf]
        %s4685 = scalar_lea.vmem [#allocation11], 24
        %v4686 = vld [vmem:[%s4685] sm:$0xf]
        %v4719 = vunpack.c.l.b16 %v4653
        %v4720 = vunpack.c.l.b16 %v4654
        %v4721 = vunpack.c.l.b16 %v4655
        %v4722 = vunpack.c.l.b16 %v4656
        %v4723 = vunpack.c.l.b16 %v4657
        %v4724 = vunpack.c.l.b16 %v4658
        %v4725 = vunpack.c.l.b16 %v4659
        %v4726 = vunpack.c.l.b16 %v4660
        %v4727 = vunpack.c.l.b16 %v4661
        %v4728 = vunpack.c.l.b16 %v4662
        %v4729 = vunpack.c.l.b16 %v4663
        %v4730 = vunpack.c.l.b16 %v4664
        %v4731 = vunpack.c.l.b16 %v4665
        %v4732 = vunpack.c.l.b16 %v4666
        %v4733 = vunpack.c.l.b16 %v4667
        %v4734 = vunpack.c.l.b16 %v4668
        %v4735 = vunpack.c.l.b16 %v4669
        %v4736 = vunpack.c.l.b16 %v4670
        %v4737 = vunpack.c.l.b16 %v4671
        %v4738 = vunpack.c.l.b16 %v4672
        %v4739 = vunpack.c.l.b16 %v4673
        %v4740 = vunpack.c.l.b16 %v4674
        %v4741 = vunpack.c.l.b16 %v4675
        %v4742 = vunpack.c.l.b16 %v4676
        %v4743 = vunpack.c.l.b16 %v4677
        %v4744 = vunpack.c.l.b16 %v4678
        %v4745 = vunpack.c.l.b16 %v4679
        %v4746 = vunpack.c.l.b16 %v4680
        %v4747 = vunpack.c.l.b16 %v4681
        %v4748 = vunpack.c.l.b16 %v4682
        %v4749 = vunpack.c.l.b16 %v4683
        %v4750 = vunpack.c.l.b16 %v4684
        %v4751 = vpack.c.b16 %v4720, %v4719
        %v4752 = vpack.c.b16 %v4722, %v4721
        %v4753 = vpack.c.b16 %v4724, %v4723
        %v4754 = vpack.c.b16 %v4726, %v4725
        %v4755 = vpack.c.b16 %v4728, %v4727
        %v4756 = vpack.c.b16 %v4730, %v4729
        %v4757 = vpack.c.b16 %v4732, %v4731
        %v4758 = vpack.c.b16 %v4734, %v4733
        %v4759 = vpack.c.b16 %v4736, %v4735
        %v4760 = vpack.c.b16 %v4738, %v4737
        %v4761 = vpack.c.b16 %v4740, %v4739
        %v4762 = vpack.c.b16 %v4742, %v4741
        %v4763 = vpack.c.b16 %v4744, %v4743
        %v4764 = vpack.c.b16 %v4746, %v4745
        %v4765 = vpack.c.b16 %v4748, %v4747
        %v4766 = vpack.c.b16 %v4750, %v4749
        %v4768 = vsel %vm2135, %v4751, 0
        %v4771 = vsel %vm2135, %v4752, 0
        %v4774 = vsel %vm2135, %v4753, 0
        %v4777 = vsel %vm2135, %v4754, 0
        %v4780 = vsel %vm2135, %v4755, 0
        %v4783 = vsel %vm2135, %v4756, 0
        %v4786 = vsel %vm2135, %v4757, 0
        %v4789 = vsel %vm2135, %v4758, 0
        %v4792 = vsel %vm2135, %v4759, 0
        %v4795 = vsel %vm2135, %v4760, 0
        %v4798 = vsel %vm2135, %v4761, 0
        %v4801 = vsel %vm2135, %v4762, 0
        %v4804 = vsel %vm2135, %v4763, 0
        %v4807 = vsel %vm2135, %v4764, 0
        %v4810 = vsel %vm2135, %v4765, 0
        %v4813 = vsel %vm2135, %v4766, 0
        %v4816 = vsel %vm2184, %v4686, 0
        %4818 = vmatprep.subr.bf16.mxu0 0
        %4819 = vmatpush1.bf16.msra.mxu0 %v4816
        %4820 = vmatprep.subr.bf16.mxu0 0
        %4821 = vmatpush1.bf16.msra.mxu0 0
        %4822 = vmatprep.subr.bf16.mxu0 0
        %4823 = vmatpush1.bf16.msra.mxu0 0
        %4824 = vmatprep.subr.bf16.mxu0 0
        %4825 = vmatpush1.bf16.msra.mxu0 0
        %4826 = vmatprep.subr.bf16.mxu0 0
        %4827 = vmatpush1.bf16.msra.mxu0 0
        %4828 = vmatprep.subr.bf16.mxu0 0
        %4829 = vmatpush1.bf16.msra.mxu0 0
        %4830 = vmatprep.subr.bf16.mxu0 0
        %4831 = vmatpush1.bf16.msra.mxu0 0
        %4832 = vmatprep.subr.bf16.mxu0 0
        %4833 = vmatpush1.bf16.msra.mxu0 0
        %4834 = vmatprep.subr.bf16.mxu0 0
        %4835 = vmatpush1.bf16.msra.mxu0 0
        %4836 = vmatprep.subr.bf16.mxu0 0
        %4837 = vmatpush1.bf16.msra.mxu0 0
        %4838 = vmatprep.subr.bf16.mxu0 0
        %4839 = vmatpush1.bf16.msra.mxu0 0
        %4840 = vmatprep.subr.bf16.mxu0 0
        %4841 = vmatpush1.bf16.msra.mxu0 0
        %4842 = vmatprep.subr.bf16.mxu0 0
        %4843 = vmatpush1.bf16.msra.mxu0 0
        %4844 = vmatprep.subr.bf16.mxu0 0
        %4845 = vmatpush1.bf16.msra.mxu0 0
        %4846 = vmatprep.subr.bf16.mxu0 0
        %4847 = vmatpush1.bf16.msra.mxu0 0
        %4848 = vmatprep.subr.bf16.mxu0 0
        %4849 = vmatpush1.bf16.msra.mxu0 0
        %4850 = vmatprep.mubr.bf16.mxu0 0
        %4851 = vmatmul.mubr.bf16.gmra.mrb[0].mxu0 %v4768
        %v4852 = vpop.f32.mrb[0].mxu0
        %v4853 = vadd.f32 0.0, %v4852
        %v4854 = vpop.f32.mrb[0].mxu0
        %v4855 = vpop.f32.mrb[0].mxu0
        %v4856 = vadd.f32 0.0, %v4855
        %v4857 = vpop.f32.mrb[0].mxu0
        %4858 = vmatprep.mubr.bf16.mxu0 0
        %4859 = vmatmul.mubr.bf16.gmra.mrb[0].mxu0 %v4771
        %v4860 = vpop.f32.mrb[0].mxu0
        %v4861 = vadd.f32 0.0, %v4860
        %v4862 = vpop.f32.mrb[0].mxu0
        %v4863 = vpop.f32.mrb[0].mxu0
        %v4864 = vadd.f32 0.0, %v4863
        %v4865 = vpop.f32.mrb[0].mxu0
        %4866 = vmatprep.mubr.bf16.mxu0 0
        %4867 = vmatmul.mubr.bf16.gmra.mrb[0].mxu0 %v4774
        %v4868 = vpop.f32.mrb[0].mxu0
        %v4869 = vadd.f32 0.0, %v4868
        %v4870 = vpop.f32.mrb[0].mxu0
        %v4871 = vpop.f32.mrb[0].mxu0
        %v4872 = vadd.f32 0.0, %v4871
        %v4873 = vpop.f32.mrb[0].mxu0
        %4874 = vmatprep.mubr.bf16.mxu0 0
        %4875 = vmatmul.mubr.bf16.gmra.mrb[0].mxu0 %v4777
        %v4876 = vpop.f32.mrb[0].mxu0
        %v4877 = vadd.f32 0.0, %v4876
        %v4878 = vpop.f32.mrb[0].mxu0
        %v4879 = vpop.f32.mrb[0].mxu0
        %v4880 = vadd.f32 0.0, %v4879
        %v4881 = vpop.f32.mrb[0].mxu0
        %4882 = vmatprep.mubr.bf16.mxu0 0
        %4883 = vmatmul.mubr.bf16.gmra.mrb[0].mxu0 %v4780
        %v4884 = vpop.f32.mrb[0].mxu0
        %v4885 = vadd.f32 0.0, %v4884
        %v4886 = vpop.f32.mrb[0].mxu0
        %v4887 = vpop.f32.mrb[0].mxu0
        %v4888 = vadd.f32 0.0, %v4887
        %v4889 = vpop.f32.mrb[0].mxu0
        %4890 = vmatprep.mubr.bf16.mxu0 0
        %4891 = vmatmul.mubr.bf16.gmra.mrb[0].mxu0 %v4783
        %v4892 = vpop.f32.mrb[0].mxu0
        %v4893 = vadd.f32 0.0, %v4892
        %v4894 = vpop.f32.mrb[0].mxu0
        %v4895 = vpop.f32.mrb[0].mxu0
        %v4896 = vadd.f32 0.0, %v4895
        %v4897 = vpop.f32.mrb[0].mxu0
        %4898 = vmatprep.mubr.bf16.mxu0 0
        %4899 = vmatmul.mubr.bf16.gmra.mrb[0].mxu0 %v4786
        %v4900 = vpop.f32.mrb[0].mxu0
        %v4901 = vadd.f32 0.0, %v4900
        %v4902 = vpop.f32.mrb[0].mxu0
        %v4903 = vpop.f32.mrb[0].mxu0
        %v4904 = vadd.f32 0.0, %v4903
        %v4905 = vpop.f32.mrb[0].mxu0
        %4906 = vmatprep.mubr.bf16.mxu0 0
        %4907 = vmatmul.mubr.bf16.gmra.mrb[0].mxu0 %v4789
        %v4908 = vpop.f32.mrb[0].mxu0
        %v4909 = vadd.f32 0.0, %v4908
        %v4910 = vpop.f32.mrb[0].mxu0
        %v4911 = vpop.f32.mrb[0].mxu0
        %v4912 = vadd.f32 0.0, %v4911
        %v4913 = vpop.f32.mrb[0].mxu0
        %4914 = vmatprep.mubr.bf16.mxu0 0
        %4915 = vmatmul.mubr.bf16.gmra.mrb[0].mxu0 %v4792
        %v4916 = vpop.f32.mrb[0].mxu0
        %v4917 = vadd.f32 0.0, %v4916
        %v4918 = vpop.f32.mrb[0].mxu0
        %v4919 = vpop.f32.mrb[0].mxu0
        %v4920 = vadd.f32 0.0, %v4919
        %v4921 = vpop.f32.mrb[0].mxu0
        %4922 = vmatprep.mubr.bf16.mxu0 0
        %4923 = vmatmul.mubr.bf16.gmra.mrb[0].mxu0 %v4795
        %v4924 = vpop.f32.mrb[0].mxu0
        %v4925 = vadd.f32 0.0, %v4924
        %v4926 = vpop.f32.mrb[0].mxu0
        %v4927 = vpop.f32.mrb[0].mxu0
        %v4928 = vadd.f32 0.0, %v4927
        %v4929 = vpop.f32.mrb[0].mxu0
        %4930 = vmatprep.mubr.bf16.mxu0 0
        %4931 = vmatmul.mubr.bf16.gmra.mrb[0].mxu0 %v4798
        %v4932 = vpop.f32.mrb[0].mxu0
        %v4933 = vadd.f32 0.0, %v4932
        %v4934 = vpop.f32.mrb[0].mxu0
        %v4935 = vpop.f32.mrb[0].mxu0
        %v4936 = vadd.f32 0.0, %v4935
        %v4937 = vpop.f32.mrb[0].mxu0
        %4938 = vmatprep.mubr.bf16.mxu0 0
        %4939 = vmatmul.mubr.bf16.gmra.mrb[0].mxu0 %v4801
        %v4940 = vpop.f32.mrb[0].mxu0
        %v4941 = vadd.f32 0.0, %v4940
        %v4942 = vpop.f32.mrb[0].mxu0
        %v4943 = vpop.f32.mrb[0].mxu0
        %v4944 = vadd.f32 0.0, %v4943
        %v4945 = vpop.f32.mrb[0].mxu0
        %4946 = vmatprep.mubr.bf16.mxu0 0
        %4947 = vmatmul.mubr.bf16.gmra.mrb[0].mxu0 %v4804
        %v4948 = vpop.f32.mrb[0].mxu0
        %v4949 = vadd.f32 0.0, %v4948
        %v4950 = vpop.f32.mrb[0].mxu0
        %v4951 = vpop.f32.mrb[0].mxu0
        %v4952 = vadd.f32 0.0, %v4951
        %v4953 = vpop.f32.mrb[0].mxu0
        %4954 = vmatprep.mubr.bf16.mxu0 0
        %4955 = vmatmul.mubr.bf16.gmra.mrb[0].mxu0 %v4807
        %v4956 = vpop.f32.mrb[0].mxu0
        %v4957 = vadd.f32 0.0, %v4956
        %v4958 = vpop.f32.mrb[0].mxu0
        %v4959 = vpop.f32.mrb[0].mxu0
        %v4960 = vadd.f32 0.0, %v4959
        %v4961 = vpop.f32.mrb[0].mxu0
        %4962 = vmatprep.mubr.bf16.mxu0 0
        %4963 = vmatmul.mubr.bf16.gmra.mrb[0].mxu0 %v4810
        %v4964 = vpop.f32.mrb[0].mxu0
        %v4965 = vadd.f32 0.0, %v4964
        %v4966 = vpop.f32.mrb[0].mxu0
        %v4967 = vpop.f32.mrb[0].mxu0
        %v4968 = vadd.f32 0.0, %v4967
        %v4969 = vpop.f32.mrb[0].mxu0
        %4970 = vmatprep.mubr.bf16.mxu0 0
        %4971 = vmatmul.mubr.bf16.gmra.mrb[0].mxu0 %v4813
        %v4972 = vpop.f32.mrb[0].mxu0
        %v4973 = vadd.f32 0.0, %v4972
        %v4974 = vpop.f32.mrb[0].mxu0
        %v4975 = vpop.f32.mrb[0].mxu0
        %v4976 = vadd.f32 0.0, %v4975
        %v4977 = vpop.f32.mrb[0].mxu0
        %4978 = vdwg.mxu0
        %v4979 = vadd.f32 %v4620, %v4853
        %v4980 = vadd.f32 %v4621, %v4856
        %v4981 = vadd.f32 %v4622, %v4861
        %v4982 = vadd.f32 %v4623, %v4864
        %v4983 = vadd.f32 %v4624, %v4869
        %v4984 = vadd.f32 %v4625, %v4872
        %v4985 = vadd.f32 %v4626, %v4877
        %v4986 = vadd.f32 %v4627, %v4880
        %v4987 = vadd.f32 %v4628, %v4885
        %v4988 = vadd.f32 %v4629, %v4888
        %v4989 = vadd.f32 %v4630, %v4893
        %v4990 = vadd.f32 %v4631, %v4896
        %v4991 = vadd.f32 %v4632, %v4901
        %v4992 = vadd.f32 %v4633, %v4904
        %v4993 = vadd.f32 %v4634, %v4909
        %v4994 = vadd.f32 %v4635, %v4912
        %v4995 = vadd.f32 %v4636, %v4917
        %v4996 = vadd.f32 %v4637, %v4920
        %v4997 = vadd.f32 %v4638, %v4925
        %v4998 = vadd.f32 %v4639, %v4928
        %v4999 = vadd.f32 %v4640, %v4933
        %v5000 = vadd.f32 %v4641, %v4936
        %v5001 = vadd.f32 %v4642, %v4941
        %v5002 = vadd.f32 %v4643, %v4944
        %v5003 = vadd.f32 %v4644, %v4949
        %v5004 = vadd.f32 %v4645, %v4952
        %v5005 = vadd.f32 %v4646, %v4957
        %v5006 = vadd.f32 %v4647, %v4960
        %v5007 = vadd.f32 %v4648, %v4965
        %v5008 = vadd.f32 %v4649, %v4968
        %v5009 = vadd.f32 %v4650, %v4973
        %v5010 = vadd.f32 %v4651, %v4976
        %v5011 = vld [vmem:[%s4652] sm:$0xf]
        %v5012 = vld [vmem:[%s4652 + $0x4] sm:$0xf]
        %v5013 = vld [vmem:[%s4652 + $0x8] sm:$0x1]
        %v5014 = vld [vmem:[%s4652 + $0xc] sm:$0xf]
        %v5015 = vld [vmem:[%s4652 + $0x10] sm:$0xf]
        %v5016 = vld [vmem:[%s4652 + $0x14] sm:$0x1]
        %v5017 = vld [vmem:[%s4652 + $0x18] sm:$0xf]
        %v5018 = vld [vmem:[%s4652 + $0x1c] sm:$0xf]
        %v5019 = vld [vmem:[%s4652 + $0x20] sm:$0x1]
        %v5020 = vld [vmem:[%s4652 + $0x24] sm:$0xf]
        %v5021 = vld [vmem:[%s4652 + $0x28] sm:$0xf]
        %v5022 = vld [vmem:[%s4652 + $0x2c] sm:$0x1]
        %v5023 = vld [vmem:[%s4652 + $0x30] sm:$0xf]
        %v5024 = vld [vmem:[%s4652 + $0x34] sm:$0xf]
        %v5025 = vld [vmem:[%s4652 + $0x38] sm:$0x1]
        %v5026 = vld [vmem:[%s4652 + $0x3c] sm:$0xf]
        %v5027 = vld [vmem:[%s4652 + $0x40] sm:$0xf]
        %v5028 = vld [vmem:[%s4652 + $0x44] sm:$0x1]
        %v5029 = vld [vmem:[%s4652 + $0x48] sm:$0xf]
        %v5030 = vld [vmem:[%s4652 + $0x4c] sm:$0xf]
        %v5031 = vld [vmem:[%s4652 + $0x50] sm:$0x1]
        %v5032 = vld [vmem:[%s4652 + $0x54] sm:$0xf]
        %v5033 = vld [vmem:[%s4652 + $0x58] sm:$0xf]
        %v5034 = vld [vmem:[%s4652 + $0x5c] sm:$0x1]
        %v5035 = vld [vmem:[%s4652 + $0x60] sm:$0xf]
        %v5036 = vld [vmem:[%s4652 + $0x64] sm:$0xf]
        %v5037 = vld [vmem:[%s4652 + $0x68] sm:$0x1]
        %v5038 = vld [vmem:[%s4652 + $0x6c] sm:$0xf]
        %v5039 = vld [vmem:[%s4652 + $0x70] sm:$0xf]
        %v5040 = vld [vmem:[%s4652 + $0x74] sm:$0x1]
        %v5041 = vld [vmem:[%s4652 + $0x78] sm:$0xf]
        %v5042 = vld [vmem:[%s4652 + $0x7c] sm:$0xf]
        %v5043 = vld [vmem:[%s4652 + $0x80] sm:$0x1]
        %v5044 = vld [vmem:[%s4652 + $0x84] sm:$0xf]
        %v5045 = vld [vmem:[%s4652 + $0x88] sm:$0xf]
        %v5046 = vld [vmem:[%s4652 + $0x8c] sm:$0x1]
        %v5047 = vld [vmem:[%s4652 + $0x90] sm:$0xf]
        %v5048 = vld [vmem:[%s4652 + $0x94] sm:$0xf]
        %v5049 = vld [vmem:[%s4652 + $0x98] sm:$0x1]
        %v5050 = vld [vmem:[%s4652 + $0x9c] sm:$0xf]
        %v5051 = vld [vmem:[%s4652 + $0xa0] sm:$0xf]
        %v5052 = vld [vmem:[%s4652 + $0xa4] sm:$0x1]
        %v5053 = vld [vmem:[%s4652 + $0xa8] sm:$0xf]
        %v5054 = vld [vmem:[%s4652 + $0xac] sm:$0xf]
        %v5055 = vld [vmem:[%s4652 + $0xb0] sm:$0x1]
        %v5056 = vld [vmem:[%s4652 + $0xb4] sm:$0xf]
        %v5057 = vld [vmem:[%s4652 + $0xb8] sm:$0xf]
        %v5058 = vld [vmem:[%s4652 + $0xbc] sm:$0x1]
        %v5060 = vshrl.u32 %v5011, 16
        %v5062 = vrot.slane %v5060, 4
        %v5063 = vshll.u32 %v5011, 16
        %v5065 = vrot.slane %v5063, 5
        %v5066 = vor.u32 %v5062, %v5065
        %v5067 = vrot.slane %v5066, 4
        %v5069 = vshll.u32 %v5012, 16
        %v5071 = vrot.slane %v5069, 5
        %v5072 = vsel %vm1700, %v5067, %v5071
        %v5073 = vshrl.u32 %v5012, 16
        %v5075 = vrot.slane %v5073, 4
        %v5076 = vor.u32 %v5075, %v5071
        %v5077 = vrot.slane %v5076, 4
        %v5079 = vshll.u32 %v5013, 16
        %v5081 = vrot.slane %v5079, 5
        %v5082 = vsel %vm1700, %v5077, %v5081
        %v5084 = vshrl.u32 %v5014, 16
        %v5086 = vrot.slane %v5084, 4
        %v5087 = vshll.u32 %v5014, 16
        %v5089 = vrot.slane %v5087, 5
        %v5090 = vor.u32 %v5086, %v5089
        %v5091 = vrot.slane %v5090, 4
        %v5093 = vshll.u32 %v5015, 16
        %v5095 = vrot.slane %v5093, 5
        %v5096 = vsel %vm1700, %v5091, %v5095
        %v5097 = vshrl.u32 %v5015, 16
        %v5099 = vrot.slane %v5097, 4
        %v5100 = vor.u32 %v5099, %v5095
        %v5101 = vrot.slane %v5100, 4
        %v5103 = vshll.u32 %v5016, 16
        %v5105 = vrot.slane %v5103, 5
        %v5106 = vsel %vm1700, %v5101, %v5105
        %v5108 = vshrl.u32 %v5017, 16
        %v5110 = vrot.slane %v5108, 4
        %v5111 = vshll.u32 %v5017, 16
        %v5113 = vrot.slane %v5111, 5
        %v5114 = vor.u32 %v5110, %v5113
        %v5115 = vrot.slane %v5114, 4
        %v5117 = vshll.u32 %v5018, 16
        %v5119 = vrot.slane %v5117, 5
        %v5120 = vsel %vm1700, %v5115, %v5119
        %v5121 = vshrl.u32 %v5018, 16
        %v5123 = vrot.slane %v5121, 4
        %v5124 = vor.u32 %v5123, %v5119
        %v5125 = vrot.slane %v5124, 4
        %v5127 = vshll.u32 %v5019, 16
        %v5129 = vrot.slane %v5127, 5
        %v5130 = vsel %vm1700, %v5125, %v5129
        %v5132 = vshrl.u32 %v5020, 16
        %v5134 = vrot.slane %v5132, 4
        %v5135 = vshll.u32 %v5020, 16
        %v5137 = vrot.slane %v5135, 5
        %v5138 = vor.u32 %v5134, %v5137
        %v5139 = vrot.slane %v5138, 4
        %v5141 = vshll.u32 %v5021, 16
        %v5143 = vrot.slane %v5141, 5
        %v5144 = vsel %vm1700, %v5139, %v5143
        %v5145 = vshrl.u32 %v5021, 16
        %v5147 = vrot.slane %v5145, 4
        %v5148 = vor.u32 %v5147, %v5143
        %v5149 = vrot.slane %v5148, 4
        %v5151 = vshll.u32 %v5022, 16
        %v5153 = vrot.slane %v5151, 5
        %v5154 = vsel %vm1700, %v5149, %v5153
        %v5156 = vshrl.u32 %v5023, 16
        %v5158 = vrot.slane %v5156, 4
        %v5159 = vshll.u32 %v5023, 16
        %v5161 = vrot.slane %v5159, 5
        %v5162 = vor.u32 %v5158, %v5161
        %v5163 = vrot.slane %v5162, 4
        %v5165 = vshll.u32 %v5024, 16
        %v5167 = vrot.slane %v5165, 5
        %v5168 = vsel %vm1700, %v5163, %v5167
        %v5169 = vshrl.u32 %v5024, 16
        %v5171 = vrot.slane %v5169, 4
        %v5172 = vor.u32 %v5171, %v5167
        %v5173 = vrot.slane %v5172, 4
        %v5175 = vshll.u32 %v5025, 16
        %v5177 = vrot.slane %v5175, 5
        %v5178 = vsel %vm1700, %v5173, %v5177
        %v5180 = vshrl.u32 %v5026, 16
        %v5182 = vrot.slane %v5180, 4
        %v5183 = vshll.u32 %v5026, 16
        %v5185 = vrot.slane %v5183, 5
        %v5186 = vor.u32 %v5182, %v5185
        %v5187 = vrot.slane %v5186, 4
        %v5189 = vshll.u32 %v5027, 16
        %v5191 = vrot.slane %v5189, 5
        %v5192 = vsel %vm1700, %v5187, %v5191
        %v5193 = vshrl.u32 %v5027, 16
        %v5195 = vrot.slane %v5193, 4
        %v5196 = vor.u32 %v5195, %v5191
        %v5197 = vrot.slane %v5196, 4
        %v5199 = vshll.u32 %v5028, 16
        %v5201 = vrot.slane %v5199, 5
        %v5202 = vsel %vm1700, %v5197, %v5201
        %v5204 = vshrl.u32 %v5029, 16
        %v5206 = vrot.slane %v5204, 4
        %v5207 = vshll.u32 %v5029, 16
        %v5209 = vrot.slane %v5207, 5
        %v5210 = vor.u32 %v5206, %v5209
        %v5211 = vrot.slane %v5210, 4
        %v5213 = vshll.u32 %v5030, 16
        %v5215 = vrot.slane %v5213, 5
        %v5216 = vsel %vm1700, %v5211, %v5215
        %v5217 = vshrl.u32 %v5030, 16
        %v5219 = vrot.slane %v5217, 4
        %v5220 = vor.u32 %v5219, %v5215
        %v5221 = vrot.slane %v5220, 4
        %v5223 = vshll.u32 %v5031, 16
        %v5225 = vrot.slane %v5223, 5
        %v5226 = vsel %vm1700, %v5221, %v5225
        %v5228 = vshrl.u32 %v5032, 16
        %v5230 = vrot.slane %v5228, 4
        %v5231 = vshll.u32 %v5032, 16
        %v5233 = vrot.slane %v5231, 5
        %v5234 = vor.u32 %v5230, %v5233
        %v5235 = vrot.slane %v5234, 4
        %v5237 = vshll.u32 %v5033, 16
        %v5239 = vrot.slane %v5237, 5
        %v5240 = vsel %vm1700, %v5235, %v5239
        %v5241 = vshrl.u32 %v5033, 16
        %v5243 = vrot.slane %v5241, 4
        %v5244 = vor.u32 %v5243, %v5239
        %v5245 = vrot.slane %v5244, 4
        %v5247 = vshll.u32 %v5034, 16
        %v5249 = vrot.slane %v5247, 5
        %v5250 = vsel %vm1700, %v5245, %v5249
        %v5252 = vshrl.u32 %v5035, 16
        %v5254 = vrot.slane %v5252, 4
        %v5255 = vshll.u32 %v5035, 16
        %v5257 = vrot.slane %v5255, 5
        %v5258 = vor.u32 %v5254, %v5257
        %v5259 = vrot.slane %v5258, 4
        %v5261 = vshll.u32 %v5036, 16
        %v5263 = vrot.slane %v5261, 5
        %v5264 = vsel %vm1700, %v5259, %v5263
        %v5265 = vshrl.u32 %v5036, 16
        %v5267 = vrot.slane %v5265, 4
        %v5268 = vor.u32 %v5267, %v5263
        %v5269 = vrot.slane %v5268, 4
        %v5271 = vshll.u32 %v5037, 16
        %v5273 = vrot.slane %v5271, 5
        %v5274 = vsel %vm1700, %v5269, %v5273
        %v5276 = vshrl.u32 %v5038, 16
        %v5278 = vrot.slane %v5276, 4
        %v5279 = vshll.u32 %v5038, 16
        %v5281 = vrot.slane %v5279, 5
        %v5282 = vor.u32 %v5278, %v5281
        %v5283 = vrot.slane %v5282, 4
        %v5285 = vshll.u32 %v5039, 16
        %v5287 = vrot.slane %v5285, 5
        %v5288 = vsel %vm1700, %v5283, %v5287
        %v5289 = vshrl.u32 %v5039, 16
        %v5291 = vrot.slane %v5289, 4
        %v5292 = vor.u32 %v5291, %v5287
        %v5293 = vrot.slane %v5292, 4
        %v5295 = vshll.u32 %v5040, 16
        %v5297 = vrot.slane %v5295, 5
        %v5298 = vsel %vm1700, %v5293, %v5297
        %v5300 = vshrl.u32 %v5041, 16
        %v5302 = vrot.slane %v5300, 4
        %v5303 = vshll.u32 %v5041, 16
        %v5305 = vrot.slane %v5303, 5
        %v5306 = vor.u32 %v5302, %v5305
        %v5307 = vrot.slane %v5306, 4
        %v5309 = vshll.u32 %v5042, 16
        %v5311 = vrot.slane %v5309, 5
        %v5312 = vsel %vm1700, %v5307, %v5311
        %v5313 = vshrl.u32 %v5042, 16
        %v5315 = vrot.slane %v5313, 4
        %v5316 = vor.u32 %v5315, %v5311
        %v5317 = vrot.slane %v5316, 4
        %v5319 = vshll.u32 %v5043, 16
        %v5321 = vrot.slane %v5319, 5
        %v5322 = vsel %vm1700, %v5317, %v5321
        %v5324 = vshrl.u32 %v5044, 16
        %v5326 = vrot.slane %v5324, 4
        %v5327 = vshll.u32 %v5044, 16
        %v5329 = vrot.slane %v5327, 5
        %v5330 = vor.u32 %v5326, %v5329
        %v5331 = vrot.slane %v5330, 4
        %v5333 = vshll.u32 %v5045, 16
        %v5335 = vrot.slane %v5333, 5
        %v5336 = vsel %vm1700, %v5331, %v5335
        %v5337 = vshrl.u32 %v5045, 16
        %v5339 = vrot.slane %v5337, 4
        %v5340 = vor.u32 %v5339, %v5335
        %v5341 = vrot.slane %v5340, 4
        %v5343 = vshll.u32 %v5046, 16
        %v5345 = vrot.slane %v5343, 5
        %v5346 = vsel %vm1700, %v5341, %v5345
        %v5348 = vshrl.u32 %v5047, 16
        %v5350 = vrot.slane %v5348, 4
        %v5351 = vshll.u32 %v5047, 16
        %v5353 = vrot.slane %v5351, 5
        %v5354 = vor.u32 %v5350, %v5353
        %v5355 = vrot.slane %v5354, 4
        %v5357 = vshll.u32 %v5048, 16
        %v5359 = vrot.slane %v5357, 5
        %v5360 = vsel %vm1700, %v5355, %v5359
        %v5361 = vshrl.u32 %v5048, 16
        %v5363 = vrot.slane %v5361, 4
        %v5364 = vor.u32 %v5363, %v5359
        %v5365 = vrot.slane %v5364, 4
        %v5367 = vshll.u32 %v5049, 16
        %v5369 = vrot.slane %v5367, 5
        %v5370 = vsel %vm1700, %v5365, %v5369
        %v5372 = vshrl.u32 %v5050, 16
        %v5374 = vrot.slane %v5372, 4
        %v5375 = vshll.u32 %v5050, 16
        %v5377 = vrot.slane %v5375, 5
        %v5378 = vor.u32 %v5374, %v5377
        %v5379 = vrot.slane %v5378, 4
        %v5381 = vshll.u32 %v5051, 16
        %v5383 = vrot.slane %v5381, 5
        %v5384 = vsel %vm1700, %v5379, %v5383
        %v5385 = vshrl.u32 %v5051, 16
        %v5387 = vrot.slane %v5385, 4
        %v5388 = vor.u32 %v5387, %v5383
        %v5389 = vrot.slane %v5388, 4
        %v5391 = vshll.u32 %v5052, 16
        %v5393 = vrot.slane %v5391, 5
        %v5394 = vsel %vm1700, %v5389, %v5393
        %v5396 = vshrl.u32 %v5053, 16
        %v5398 = vrot.slane %v5396, 4
        %v5399 = vshll.u32 %v5053, 16
        %v5401 = vrot.slane %v5399, 5
        %v5402 = vor.u32 %v5398, %v5401
        %v5403 = vrot.slane %v5402, 4
        %v5405 = vshll.u32 %v5054, 16
        %v5407 = vrot.slane %v5405, 5
        %v5408 = vsel %vm1700, %v5403, %v5407
        %v5409 = vshrl.u32 %v5054, 16
        %v5411 = vrot.slane %v5409, 4
        %v5412 = vor.u32 %v5411, %v5407
        %v5413 = vrot.slane %v5412, 4
        %v5415 = vshll.u32 %v5055, 16
        %v5417 = vrot.slane %v5415, 5
        %v5418 = vsel %vm1700, %v5413, %v5417
        %v5420 = vshrl.u32 %v5056, 16
        %v5422 = vrot.slane %v5420, 4
        %v5423 = vshll.u32 %v5056, 16
        %v5425 = vrot.slane %v5423, 5
        %v5426 = vor.u32 %v5422, %v5425
        %v5427 = vrot.slane %v5426, 4
        %v5429 = vshll.u32 %v5057, 16
        %v5431 = vrot.slane %v5429, 5
        %v5432 = vsel %vm1700, %v5427, %v5431
        %v5433 = vshrl.u32 %v5057, 16
        %v5435 = vrot.slane %v5433, 4
        %v5436 = vor.u32 %v5435, %v5431
        %v5437 = vrot.slane %v5436, 4
        %v5439 = vshll.u32 %v5058, 16
        %v5441 = vrot.slane %v5439, 5
        %v5442 = vsel %vm1700, %v5437, %v5441
        %s5443 = scalar_lea.vmem [#allocation11], 28
        %v5444 = vld [vmem:[%s5443] sm:$0xf]
        %v5445 = vunpack.c.l.b16 %v5072
        %v5446 = vunpack.c.l.b16 %v5082
        %v5447 = vunpack.c.l.b16 %v5096
        %v5448 = vunpack.c.l.b16 %v5106
        %v5449 = vunpack.c.l.b16 %v5120
        %v5450 = vunpack.c.l.b16 %v5130
        %v5451 = vunpack.c.l.b16 %v5144
        %v5452 = vunpack.c.l.b16 %v5154
        %v5453 = vunpack.c.l.b16 %v5168
        %v5454 = vunpack.c.l.b16 %v5178
        %v5455 = vunpack.c.l.b16 %v5192
        %v5456 = vunpack.c.l.b16 %v5202
        %v5457 = vunpack.c.l.b16 %v5216
        %v5458 = vunpack.c.l.b16 %v5226
        %v5459 = vunpack.c.l.b16 %v5240
        %v5460 = vunpack.c.l.b16 %v5250
        %v5461 = vunpack.c.l.b16 %v5264
        %v5462 = vunpack.c.l.b16 %v5274
        %v5463 = vunpack.c.l.b16 %v5288
        %v5464 = vunpack.c.l.b16 %v5298
        %v5465 = vunpack.c.l.b16 %v5312
        %v5466 = vunpack.c.l.b16 %v5322
        %v5467 = vunpack.c.l.b16 %v5336
        %v5468 = vunpack.c.l.b16 %v5346
        %v5469 = vunpack.c.l.b16 %v5360
        %v5470 = vunpack.c.l.b16 %v5370
        %v5471 = vunpack.c.l.b16 %v5384
        %v5472 = vunpack.c.l.b16 %v5394
        %v5473 = vunpack.c.l.b16 %v5408
        %v5474 = vunpack.c.l.b16 %v5418
        %v5475 = vunpack.c.l.b16 %v5432
        %v5476 = vunpack.c.l.b16 %v5442
        %v5477 = vpack.c.b16 %v5446, %v5445
        %v5478 = vpack.c.b16 %v5448, %v5447
        %v5479 = vpack.c.b16 %v5450, %v5449
        %v5480 = vpack.c.b16 %v5452, %v5451
        %v5481 = vpack.c.b16 %v5454, %v5453
        %v5482 = vpack.c.b16 %v5456, %v5455
        %v5483 = vpack.c.b16 %v5458, %v5457
        %v5484 = vpack.c.b16 %v5460, %v5459
        %v5485 = vpack.c.b16 %v5462, %v5461
        %v5486 = vpack.c.b16 %v5464, %v5463
        %v5487 = vpack.c.b16 %v5466, %v5465
        %v5488 = vpack.c.b16 %v5468, %v5467
        %v5489 = vpack.c.b16 %v5470, %v5469
        %v5490 = vpack.c.b16 %v5472, %v5471
        %v5491 = vpack.c.b16 %v5474, %v5473
        %v5492 = vpack.c.b16 %v5476, %v5475
        %v5494 = vsel %vm2135, %v5477, 0
        %v5497 = vsel %vm2135, %v5478, 0
        %v5500 = vsel %vm2135, %v5479, 0
        %v5503 = vsel %vm2135, %v5480, 0
        %v5506 = vsel %vm2135, %v5481, 0
        %v5509 = vsel %vm2135, %v5482, 0
        %v5512 = vsel %vm2135, %v5483, 0
        %v5515 = vsel %vm2135, %v5484, 0
        %v5518 = vsel %vm2135, %v5485, 0
        %v5521 = vsel %vm2135, %v5486, 0
        %v5524 = vsel %vm2135, %v5487, 0
        %v5527 = vsel %vm2135, %v5488, 0
        %v5530 = vsel %vm2135, %v5489, 0
        %v5533 = vsel %vm2135, %v5490, 0
        %v5536 = vsel %vm2135, %v5491, 0
        %v5539 = vsel %vm2135, %v5492, 0
        %v5542 = vsel %vm2184, %v5444, 0
        %5544 = vmatprep.subr.bf16.mxu0 0
        %5545 = vmatpush1.bf16.msra.mxu0 %v5542
        %5546 = vmatprep.subr.bf16.mxu0 0
        %5547 = vmatpush1.bf16.msra.mxu0 0
        %5548 = vmatprep.subr.bf16.mxu0 0
        %5549 = vmatpush1.bf16.msra.mxu0 0
        %5550 = vmatprep.subr.bf16.mxu0 0
        %5551 = vmatpush1.bf16.msra.mxu0 0
        %5552 = vmatprep.subr.bf16.mxu0 0
        %5553 = vmatpush1.bf16.msra.mxu0 0
        %5554 = vmatprep.subr.bf16.mxu0 0
        %5555 = vmatpush1.bf16.msra.mxu0 0
        %5556 = vmatprep.subr.bf16.mxu0 0
        %5557 = vmatpush1.bf16.msra.mxu0 0
        %5558 = vmatprep.subr.bf16.mxu0 0
        %5559 = vmatpush1.bf16.msra.mxu0 0
        %5560 = vmatprep.subr.bf16.mxu0 0
        %5561 = vmatpush1.bf16.msra.mxu0 0
        %5562 = vmatprep.subr.bf16.mxu0 0
        %5563 = vmatpush1.bf16.msra.mxu0 0
        %5564 = vmatprep.subr.bf16.mxu0 0
        %5565 = vmatpush1.bf16.msra.mxu0 0
        %5566 = vmatprep.subr.bf16.mxu0 0
        %5567 = vmatpush1.bf16.msra.mxu0 0
        %5568 = vmatprep.subr.bf16.mxu0 0
        %5569 = vmatpush1.bf16.msra.mxu0 0
        %5570 = vmatprep.subr.bf16.mxu0 0
        %5571 = vmatpush1.bf16.msra.mxu0 0
        %5572 = vmatprep.subr.bf16.mxu0 0
        %5573 = vmatpush1.bf16.msra.mxu0 0
        %5574 = vmatprep.subr.bf16.mxu0 0
        %5575 = vmatpush1.bf16.msra.mxu0 0
        %5576 = vmatprep.mubr.bf16.mxu0 0
        %5577 = vmatmul.mubr.bf16.gmra.mrb[0].mxu0 %v5494
        %v5578 = vpop.f32.mrb[0].mxu0
        %v5579 = vadd.f32 0.0, %v5578
        %v5580 = vpop.f32.mrb[0].mxu0
        %v5581 = vpop.f32.mrb[0].mxu0
        %v5582 = vadd.f32 0.0, %v5581
        %v5583 = vpop.f32.mrb[0].mxu0
        %5584 = vmatprep.mubr.bf16.mxu0 0
        %5585 = vmatmul.mubr.bf16.gmra.mrb[0].mxu0 %v5497
        %v5586 = vpop.f32.mrb[0].mxu0
        %v5587 = vadd.f32 0.0, %v5586
        %v5588 = vpop.f32.mrb[0].mxu0
        %v5589 = vpop.f32.mrb[0].mxu0
        %v5590 = vadd.f32 0.0, %v5589
        %v5591 = vpop.f32.mrb[0].mxu0
        %5592 = vmatprep.mubr.bf16.mxu0 0
        %5593 = vmatmul.mubr.bf16.gmra.mrb[0].mxu0 %v5500
        %v5594 = vpop.f32.mrb[0].mxu0
        %v5595 = vadd.f32 0.0, %v5594
        %v5596 = vpop.f32.mrb[0].mxu0
        %v5597 = vpop.f32.mrb[0].mxu0
        %v5598 = vadd.f32 0.0, %v5597
        %v5599 = vpop.f32.mrb[0].mxu0
        %5600 = vmatprep.mubr.bf16.mxu0 0
        %5601 = vmatmul.mubr.bf16.gmra.mrb[0].mxu0 %v5503
        %v5602 = vpop.f32.mrb[0].mxu0
        %v5603 = vadd.f32 0.0, %v5602
        %v5604 = vpop.f32.mrb[0].mxu0
        %v5605 = vpop.f32.mrb[0].mxu0
        %v5606 = vadd.f32 0.0, %v5605
        %v5607 = vpop.f32.mrb[0].mxu0
        %5608 = vmatprep.mubr.bf16.mxu0 0
        %5609 = vmatmul.mubr.bf16.gmra.mrb[0].mxu0 %v5506
        %v5610 = vpop.f32.mrb[0].mxu0
        %v5611 = vadd.f32 0.0, %v5610
        %v5612 = vpop.f32.mrb[0].mxu0
        %v5613 = vpop.f32.mrb[0].mxu0
        %v5614 = vadd.f32 0.0, %v5613
        %v5615 = vpop.f32.mrb[0].mxu0
        %5616 = vmatprep.mubr.bf16.mxu0 0
        %5617 = vmatmul.mubr.bf16.gmra.mrb[0].mxu0 %v5509
        %v5618 = vpop.f32.mrb[0].mxu0
        %v5619 = vadd.f32 0.0, %v5618
        %v5620 = vpop.f32.mrb[0].mxu0
        %v5621 = vpop.f32.mrb[0].mxu0
        %v5622 = vadd.f32 0.0, %v5621
        %v5623 = vpop.f32.mrb[0].mxu0
        %5624 = vmatprep.mubr.bf16.mxu0 0
        %5625 = vmatmul.mubr.bf16.gmra.mrb[0].mxu0 %v5512
        %v5626 = vpop.f32.mrb[0].mxu0
        %v5627 = vadd.f32 0.0, %v5626
        %v5628 = vpop.f32.mrb[0].mxu0
        %v5629 = vpop.f32.mrb[0].mxu0
        %v5630 = vadd.f32 0.0, %v5629
        %v5631 = vpop.f32.mrb[0].mxu0
        %5632 = vmatprep.mubr.bf16.mxu0 0
        %5633 = vmatmul.mubr.bf16.gmra.mrb[0].mxu0 %v5515
        %v5634 = vpop.f32.mrb[0].mxu0
        %v5635 = vadd.f32 0.0, %v5634
        %v5636 = vpop.f32.mrb[0].mxu0
        %v5637 = vpop.f32.mrb[0].mxu0
        %v5638 = vadd.f32 0.0, %v5637
        %v5639 = vpop.f32.mrb[0].mxu0
        %5640 = vmatprep.mubr.bf16.mxu0 0
        %5641 = vmatmul.mubr.bf16.gmra.mrb[0].mxu0 %v5518
        %v5642 = vpop.f32.mrb[0].mxu0
        %v5643 = vadd.f32 0.0, %v5642
        %v5644 = vpop.f32.mrb[0].mxu0
        %v5645 = vpop.f32.mrb[0].mxu0
        %v5646 = vadd.f32 0.0, %v5645
        %v5647 = vpop.f32.mrb[0].mxu0
        %5648 = vmatprep.mubr.bf16.mxu0 0
        %5649 = vmatmul.mubr.bf16.gmra.mrb[0].mxu0 %v5521
        %v5650 = vpop.f32.mrb[0].mxu0
        %v5651 = vadd.f32 0.0, %v5650
        %v5652 = vpop.f32.mrb[0].mxu0
        %v5653 = vpop.f32.mrb[0].mxu0
        %v5654 = vadd.f32 0.0, %v5653
        %v5655 = vpop.f32.mrb[0].mxu0
        %5656 = vmatprep.mubr.bf16.mxu0 0
        %5657 = vmatmul.mubr.bf16.gmra.mrb[0].mxu0 %v5524
        %v5658 = vpop.f32.mrb[0].mxu0
        %v5659 = vadd.f32 0.0, %v5658
        %v5660 = vpop.f32.mrb[0].mxu0
        %v5661 = vpop.f32.mrb[0].mxu0
        %v5662 = vadd.f32 0.0, %v5661
        %v5663 = vpop.f32.mrb[0].mxu0
        %5664 = vmatprep.mubr.bf16.mxu0 0
        %5665 = vmatmul.mubr.bf16.gmra.mrb[0].mxu0 %v5527
        %v5666 = vpop.f32.mrb[0].mxu0
        %v5667 = vadd.f32 0.0, %v5666
        %v5668 = vpop.f32.mrb[0].mxu0
        %v5669 = vpop.f32.mrb[0].mxu0
        %v5670 = vadd.f32 0.0, %v5669
        %v5671 = vpop.f32.mrb[0].mxu0
        %5672 = vmatprep.mubr.bf16.mxu0 0
        %5673 = vmatmul.mubr.bf16.gmra.mrb[0].mxu0 %v5530
        %v5674 = vpop.f32.mrb[0].mxu0
        %v5675 = vadd.f32 0.0, %v5674
        %v5676 = vpop.f32.mrb[0].mxu0
        %v5677 = vpop.f32.mrb[0].mxu0
        %v5678 = vadd.f32 0.0, %v5677
        %v5679 = vpop.f32.mrb[0].mxu0
        %5680 = vmatprep.mubr.bf16.mxu0 0
        %5681 = vmatmul.mubr.bf16.gmra.mrb[0].mxu0 %v5533
        %v5682 = vpop.f32.mrb[0].mxu0
        %v5683 = vadd.f32 0.0, %v5682
        %v5684 = vpop.f32.mrb[0].mxu0
        %v5685 = vpop.f32.mrb[0].mxu0
        %v5686 = vadd.f32 0.0, %v5685
        %v5687 = vpop.f32.mrb[0].mxu0
        %5688 = vmatprep.mubr.bf16.mxu0 0
        %5689 = vmatmul.mubr.bf16.gmra.mrb[0].mxu0 %v5536
        %v5690 = vpop.f32.mrb[0].mxu0
        %v5691 = vadd.f32 0.0, %v5690
        %v5692 = vpop.f32.mrb[0].mxu0
        %v5693 = vpop.f32.mrb[0].mxu0
        %v5694 = vadd.f32 0.0, %v5693
        %v5695 = vpop.f32.mrb[0].mxu0
        %5696 = vmatprep.mubr.bf16.mxu0 0
        %5697 = vmatmul.mubr.bf16.gmra.mrb[0].mxu0 %v5539
        %v5698 = vpop.f32.mrb[0].mxu0
        %v5699 = vadd.f32 0.0, %v5698
        %v5700 = vpop.f32.mrb[0].mxu0
        %v5701 = vpop.f32.mrb[0].mxu0
        %v5702 = vadd.f32 0.0, %v5701
        %v5703 = vpop.f32.mrb[0].mxu0
        %5704 = vdwg.mxu0
        %v5705 = vadd.f32 %v4979, %v5579
        %v5706 = vadd.f32 %v4980, %v5582
        %v5707 = vadd.f32 %v4981, %v5587
        %v5708 = vadd.f32 %v4982, %v5590
        %v5709 = vadd.f32 %v4983, %v5595
        %v5710 = vadd.f32 %v4984, %v5598
        %v5711 = vadd.f32 %v4985, %v5603
        %v5712 = vadd.f32 %v4986, %v5606
        %v5713 = vadd.f32 %v4987, %v5611
        %v5714 = vadd.f32 %v4988, %v5614
        %v5715 = vadd.f32 %v4989, %v5619
        %v5716 = vadd.f32 %v4990, %v5622
        %v5717 = vadd.f32 %v4991, %v5627
        %v5718 = vadd.f32 %v4992, %v5630
        %v5719 = vadd.f32 %v4993, %v5635
        %v5720 = vadd.f32 %v4994, %v5638
        %v5721 = vadd.f32 %v4995, %v5643
        %v5722 = vadd.f32 %v4996, %v5646
        %v5723 = vadd.f32 %v4997, %v5651
        %v5724 = vadd.f32 %v4998, %v5654
        %v5725 = vadd.f32 %v4999, %v5659
        %v5726 = vadd.f32 %v5000, %v5662
        %v5727 = vadd.f32 %v5001, %v5667
        %v5728 = vadd.f32 %v5002, %v5670
        %v5729 = vadd.f32 %v5003, %v5675
        %v5730 = vadd.f32 %v5004, %v5678
        %v5731 = vadd.f32 %v5005, %v5683
        %v5732 = vadd.f32 %v5006, %v5686
        %v5733 = vadd.f32 %v5007, %v5691
        %v5734 = vadd.f32 %v5008, %v5694
        %v5735 = vadd.f32 %v5009, %v5699
        %v5736 = vadd.f32 %v5010, %v5702
        %v5737 = vld [vmem:[%s4652] sm:$0xe]
        %v5738 = vld [vmem:[%s4652 + $0xc] sm:$0xe]
        %v5739 = vld [vmem:[%s4652 + $0x18] sm:$0xe]
        %v5740 = vld [vmem:[%s4652 + $0x24] sm:$0xe]
        %v5741 = vld [vmem:[%s4652 + $0x30] sm:$0xe]
        %v5742 = vld [vmem:[%s4652 + $0x3c] sm:$0xe]
        %v5743 = vld [vmem:[%s4652 + $0x48] sm:$0xe]
        %v5744 = vld [vmem:[%s4652 + $0x54] sm:$0xe]
        %v5745 = vld [vmem:[%s4652 + $0x60] sm:$0xe]
        %v5746 = vld [vmem:[%s4652 + $0x6c] sm:$0xe]
        %v5747 = vld [vmem:[%s4652 + $0x78] sm:$0xe]
        %v5748 = vld [vmem:[%s4652 + $0x84] sm:$0xe]
        %v5749 = vld [vmem:[%s4652 + $0x90] sm:$0xe]
        %v5750 = vld [vmem:[%s4652 + $0x9c] sm:$0xe]
        %v5751 = vld [vmem:[%s4652 + $0xa8] sm:$0xe]
        %v5752 = vld [vmem:[%s4652 + $0xb4] sm:$0xe]
        %v5801 = vrot.slane %v5737, 5
        %v5802 = vrot.slane %v5801, 4
        %v5803 = vrot.slane %v5012, 5
        %v5804 = vsel %vm2691, %v5802, %v5803
        %v5805 = vrot.slane %v5803, 4
        %v5806 = vrot.slane %v5013, 5
        %v5807 = vsel %vm2691, %v5805, %v5806
        %v5808 = vrot.slane %v5738, 5
        %v5809 = vrot.slane %v5808, 4
        %v5810 = vrot.slane %v5015, 5
        %v5811 = vsel %vm2691, %v5809, %v5810
        %v5812 = vrot.slane %v5810, 4
        %v5813 = vrot.slane %v5016, 5
        %v5814 = vsel %vm2691, %v5812, %v5813
        %v5815 = vrot.slane %v5739, 5
        %v5816 = vrot.slane %v5815, 4
        %v5817 = vrot.slane %v5018, 5
        %v5818 = vsel %vm2691, %v5816, %v5817
        %v5819 = vrot.slane %v5817, 4
        %v5820 = vrot.slane %v5019, 5
        %v5821 = vsel %vm2691, %v5819, %v5820
        %v5822 = vrot.slane %v5740, 5
        %v5823 = vrot.slane %v5822, 4
        %v5824 = vrot.slane %v5021, 5
        %v5825 = vsel %vm2691, %v5823, %v5824
        %v5826 = vrot.slane %v5824, 4
        %v5827 = vrot.slane %v5022, 5
        %v5828 = vsel %vm2691, %v5826, %v5827
        %v5829 = vrot.slane %v5741, 5
        %v5830 = vrot.slane %v5829, 4
        %v5831 = vrot.slane %v5024, 5
        %v5832 = vsel %vm2691, %v5830, %v5831
        %v5833 = vrot.slane %v5831, 4
        %v5834 = vrot.slane %v5025, 5
        %v5835 = vsel %vm2691, %v5833, %v5834
        %v5836 = vrot.slane %v5742, 5
        %v5837 = vrot.slane %v5836, 4
        %v5838 = vrot.slane %v5027, 5
        %v5839 = vsel %vm2691, %v5837, %v5838
        %v5840 = vrot.slane %v5838, 4
        %v5841 = vrot.slane %v5028, 5
        %v5842 = vsel %vm2691, %v5840, %v5841
        %v5843 = vrot.slane %v5743, 5
        %v5844 = vrot.slane %v5843, 4
        %v5845 = vrot.slane %v5030, 5
        %v5846 = vsel %vm2691, %v5844, %v5845
        %v5847 = vrot.slane %v5845, 4
        %v5848 = vrot.slane %v5031, 5
        %v5849 = vsel %vm2691, %v5847, %v5848
        %v5850 = vrot.slane %v5744, 5
        %v5851 = vrot.slane %v5850, 4
        %v5852 = vrot.slane %v5033, 5
        %v5853 = vsel %vm2691, %v5851, %v5852
        %v5854 = vrot.slane %v5852, 4
        %v5855 = vrot.slane %v5034, 5
        %v5856 = vsel %vm2691, %v5854, %v5855
        %v5857 = vrot.slane %v5745, 5
        %v5858 = vrot.slane %v5857, 4
        %v5859 = vrot.slane %v5036, 5
        %v5860 = vsel %vm2691, %v5858, %v5859
        %v5861 = vrot.slane %v5859, 4
        %v5862 = vrot.slane %v5037, 5
        %v5863 = vsel %vm2691, %v5861, %v5862
        %v5864 = vrot.slane %v5746, 5
        %v5865 = vrot.slane %v5864, 4
        %v5866 = vrot.slane %v5039, 5
        %v5867 = vsel %vm2691, %v5865, %v5866
        %v5868 = vrot.slane %v5866, 4
        %v5869 = vrot.slane %v5040, 5
        %v5870 = vsel %vm2691, %v5868, %v5869
        %v5871 = vrot.slane %v5747, 5
        %v5872 = vrot.slane %v5871, 4
        %v5873 = vrot.slane %v5042, 5
        %v5874 = vsel %vm2691, %v5872, %v5873
        %v5875 = vrot.slane %v5873, 4
        %v5876 = vrot.slane %v5043, 5
        %v5877 = vsel %vm2691, %v5875, %v5876
        %v5878 = vrot.slane %v5748, 5
        %v5879 = vrot.slane %v5878, 4
        %v5880 = vrot.slane %v5045, 5
        %v5881 = vsel %vm2691, %v5879, %v5880
        %v5882 = vrot.slane %v5880, 4
        %v5883 = vrot.slane %v5046, 5
        %v5884 = vsel %vm2691, %v5882, %v5883
        %v5885 = vrot.slane %v5749, 5
        %v5886 = vrot.slane %v5885, 4
        %v5887 = vrot.slane %v5048, 5
        %v5888 = vsel %vm2691, %v5886, %v5887
        %v5889 = vrot.slane %v5887, 4
        %v5890 = vrot.slane %v5049, 5
        %v5891 = vsel %vm2691, %v5889, %v5890
        %v5892 = vrot.slane %v5750, 5
        %v5893 = vrot.slane %v5892, 4
        %v5894 = vrot.slane %v5051, 5
        %v5895 = vsel %vm2691, %v5893, %v5894
        %v5896 = vrot.slane %v5894, 4
        %v5897 = vrot.slane %v5052, 5
        %v5898 = vsel %vm2691, %v5896, %v5897
        %v5899 = vrot.slane %v5751, 5
        %v5900 = vrot.slane %v5899, 4
        %v5901 = vrot.slane %v5054, 5
        %v5902 = vsel %vm2691, %v5900, %v5901
        %v5903 = vrot.slane %v5901, 4
        %v5904 = vrot.slane %v5055, 5
        %v5905 = vsel %vm2691, %v5903, %v5904
        %v5906 = vrot.slane %v5752, 5
        %v5907 = vrot.slane %v5906, 4
        %v5908 = vrot.slane %v5057, 5
        %v5909 = vsel %vm2691, %v5907, %v5908
        %v5910 = vrot.slane %v5908, 4
        %v5911 = vrot.slane %v5058, 5
        %v5912 = vsel %vm2691, %v5910, %v5911
        %s5913 = scalar_lea.vmem [#allocation11], 32
        %v5914 = vld [vmem:[%s5913] sm:$0xf]
        %v5915 = vunpack.c.l.b16 %v5804
        %v5916 = vunpack.c.l.b16 %v5807
        %v5917 = vunpack.c.l.b16 %v5811
        %v5918 = vunpack.c.l.b16 %v5814
        %v5919 = vunpack.c.l.b16 %v5818
        %v5920 = vunpack.c.l.b16 %v5821
        %v5921 = vunpack.c.l.b16 %v5825
        %v5922 = vunpack.c.l.b16 %v5828
        %v5923 = vunpack.c.l.b16 %v5832
        %v5924 = vunpack.c.l.b16 %v5835
        %v5925 = vunpack.c.l.b16 %v5839
        %v5926 = vunpack.c.l.b16 %v5842
        %v5927 = vunpack.c.l.b16 %v5846
        %v5928 = vunpack.c.l.b16 %v5849
        %v5929 = vunpack.c.l.b16 %v5853
        %v5930 = vunpack.c.l.b16 %v5856
        %v5931 = vunpack.c.l.b16 %v5860
        %v5932 = vunpack.c.l.b16 %v5863
        %v5933 = vunpack.c.l.b16 %v5867
        %v5934 = vunpack.c.l.b16 %v5870
        %v5935 = vunpack.c.l.b16 %v5874
        %v5936 = vunpack.c.l.b16 %v5877
        %v5937 = vunpack.c.l.b16 %v5881
        %v5938 = vunpack.c.l.b16 %v5884
        %v5939 = vunpack.c.l.b16 %v5888
        %v5940 = vunpack.c.l.b16 %v5891
        %v5941 = vunpack.c.l.b16 %v5895
        %v5942 = vunpack.c.l.b16 %v5898
        %v5943 = vunpack.c.l.b16 %v5902
        %v5944 = vunpack.c.l.b16 %v5905
        %v5945 = vunpack.c.l.b16 %v5909
        %v5946 = vunpack.c.l.b16 %v5912
        %v5947 = vpack.c.b16 %v5916, %v5915
        %v5948 = vpack.c.b16 %v5918, %v5917
        %v5949 = vpack.c.b16 %v5920, %v5919
        %v5950 = vpack.c.b16 %v5922, %v5921
        %v5951 = vpack.c.b16 %v5924, %v5923
        %v5952 = vpack.c.b16 %v5926, %v5925
        %v5953 = vpack.c.b16 %v5928, %v5927
        %v5954 = vpack.c.b16 %v5930, %v5929
        %v5955 = vpack.c.b16 %v5932, %v5931
        %v5956 = vpack.c.b16 %v5934, %v5933
        %v5957 = vpack.c.b16 %v5936, %v5935
        %v5958 = vpack.c.b16 %v5938, %v5937
        %v5959 = vpack.c.b16 %v5940, %v5939
        %v5960 = vpack.c.b16 %v5942, %v5941
        %v5961 = vpack.c.b16 %v5944, %v5943
        %v5962 = vpack.c.b16 %v5946, %v5945
        %v5964 = vsel %vm2135, %v5947, 0
        %v5967 = vsel %vm2135, %v5948, 0
        %v5970 = vsel %vm2135, %v5949, 0
        %v5973 = vsel %vm2135, %v5950, 0
        %v5976 = vsel %vm2135, %v5951, 0
        %v5979 = vsel %vm2135, %v5952, 0
        %v5982 = vsel %vm2135, %v5953, 0
        %v5985 = vsel %vm2135, %v5954, 0
        %v5988 = vsel %vm2135, %v5955, 0
        %v5991 = vsel %vm2135, %v5956, 0
        %v5994 = vsel %vm2135, %v5957, 0
        %v5997 = vsel %vm2135, %v5958, 0
        %v6000 = vsel %vm2135, %v5959, 0
        %v6003 = vsel %vm2135, %v5960, 0
        %v6006 = vsel %vm2135, %v5961, 0
        %v6009 = vsel %vm2135, %v5962, 0
        %v6012 = vsel %vm2184, %v5914, 0
        %6014 = vmatprep.subr.bf16.mxu0 0
        %6015 = vmatpush1.bf16.msra.mxu0 %v6012
        %6016 = vmatprep.subr.bf16.mxu0 0
        %6017 = vmatpush1.bf16.msra.mxu0 0
        %6018 = vmatprep.subr.bf16.mxu0 0
        %6019 = vmatpush1.bf16.msra.mxu0 0
        %6020 = vmatprep.subr.bf16.mxu0 0
        %6021 = vmatpush1.bf16.msra.mxu0 0
        %6022 = vmatprep.subr.bf16.mxu0 0
        %6023 = vmatpush1.bf16.msra.mxu0 0
        %6024 = vmatprep.subr.bf16.mxu0 0
        %6025 = vmatpush1.bf16.msra.mxu0 0
        %6026 = vmatprep.subr.bf16.mxu0 0
        %6027 = vmatpush1.bf16.msra.mxu0 0
        %6028 = vmatprep.subr.bf16.mxu0 0
        %6029 = vmatpush1.bf16.msra.mxu0 0
        %6030 = vmatprep.subr.bf16.mxu0 0
        %6031 = vmatpush1.bf16.msra.mxu0 0
        %6032 = vmatprep.subr.bf16.mxu0 0
        %6033 = vmatpush1.bf16.msra.mxu0 0
        %6034 = vmatprep.subr.bf16.mxu0 0
        %6035 = vmatpush1.bf16.msra.mxu0 0
        %6036 = vmatprep.subr.bf16.mxu0 0
        %6037 = vmatpush1.bf16.msra.mxu0 0
        %6038 = vmatprep.subr.bf16.mxu0 0
        %6039 = vmatpush1.bf16.msra.mxu0 0
        %6040 = vmatprep.subr.bf16.mxu0 0
        %6041 = vmatpush1.bf16.msra.mxu0 0
        %6042 = vmatprep.subr.bf16.mxu0 0
        %6043 = vmatpush1.bf16.msra.mxu0 0
        %6044 = vmatprep.subr.bf16.mxu0 0
        %6045 = vmatpush1.bf16.msra.mxu0 0
        %6046 = vmatprep.mubr.bf16.mxu0 0
        %6047 = vmatmul.mubr.bf16.gmra.mrb[0].mxu0 %v5964
        %v6048 = vpop.f32.mrb[0].mxu0
        %v6049 = vadd.f32 0.0, %v6048
        %v6050 = vpop.f32.mrb[0].mxu0
        %v6051 = vpop.f32.mrb[0].mxu0
        %v6052 = vadd.f32 0.0, %v6051
        %v6053 = vpop.f32.mrb[0].mxu0
        %6054 = vmatprep.mubr.bf16.mxu0 0
        %6055 = vmatmul.mubr.bf16.gmra.mrb[0].mxu0 %v5967
        %v6056 = vpop.f32.mrb[0].mxu0
        %v6057 = vadd.f32 0.0, %v6056
        %v6058 = vpop.f32.mrb[0].mxu0
        %v6059 = vpop.f32.mrb[0].mxu0
        %v6060 = vadd.f32 0.0, %v6059
        %v6061 = vpop.f32.mrb[0].mxu0
        %6062 = vmatprep.mubr.bf16.mxu0 0
        %6063 = vmatmul.mubr.bf16.gmra.mrb[0].mxu0 %v5970
        %v6064 = vpop.f32.mrb[0].mxu0
        %v6065 = vadd.f32 0.0, %v6064
        %v6066 = vpop.f32.mrb[0].mxu0
        %v6067 = vpop.f32.mrb[0].mxu0
        %v6068 = vadd.f32 0.0, %v6067
        %v6069 = vpop.f32.mrb[0].mxu0
        %6070 = vmatprep.mubr.bf16.mxu0 0
        %6071 = vmatmul.mubr.bf16.gmra.mrb[0].mxu0 %v5973
        %v6072 = vpop.f32.mrb[0].mxu0
        %v6073 = vadd.f32 0.0, %v6072
        %v6074 = vpop.f32.mrb[0].mxu0
        %v6075 = vpop.f32.mrb[0].mxu0
        %v6076 = vadd.f32 0.0, %v6075
        %v6077 = vpop.f32.mrb[0].mxu0
        %6078 = vmatprep.mubr.bf16.mxu0 0
        %6079 = vmatmul.mubr.bf16.gmra.mrb[0].mxu0 %v5976
        %v6080 = vpop.f32.mrb[0].mxu0
        %v6081 = vadd.f32 0.0, %v6080
        %v6082 = vpop.f32.mrb[0].mxu0
        %v6083 = vpop.f32.mrb[0].mxu0
        %v6084 = vadd.f32 0.0, %v6083
        %v6085 = vpop.f32.mrb[0].mxu0
        %6086 = vmatprep.mubr.bf16.mxu0 0
        %6087 = vmatmul.mubr.bf16.gmra.mrb[0].mxu0 %v5979
        %v6088 = vpop.f32.mrb[0].mxu0
        %v6089 = vadd.f32 0.0, %v6088
        %v6090 = vpop.f32.mrb[0].mxu0
        %v6091 = vpop.f32.mrb[0].mxu0
        %v6092 = vadd.f32 0.0, %v6091
        %v6093 = vpop.f32.mrb[0].mxu0
        %6094 = vmatprep.mubr.bf16.mxu0 0
        %6095 = vmatmul.mubr.bf16.gmra.mrb[0].mxu0 %v5982
        %v6096 = vpop.f32.mrb[0].mxu0
        %v6097 = vadd.f32 0.0, %v6096
        %v6098 = vpop.f32.mrb[0].mxu0
        %v6099 = vpop.f32.mrb[0].mxu0
        %v6100 = vadd.f32 0.0, %v6099
        %v6101 = vpop.f32.mrb[0].mxu0
        %6102 = vmatprep.mubr.bf16.mxu0 0
        %6103 = vmatmul.mubr.bf16.gmra.mrb[0].mxu0 %v5985
        %v6104 = vpop.f32.mrb[0].mxu0
        %v6105 = vadd.f32 0.0, %v6104
        %v6106 = vpop.f32.mrb[0].mxu0
        %v6107 = vpop.f32.mrb[0].mxu0
        %v6108 = vadd.f32 0.0, %v6107
        %v6109 = vpop.f32.mrb[0].mxu0
        %6110 = vmatprep.mubr.bf16.mxu0 0
        %6111 = vmatmul.mubr.bf16.gmra.mrb[0].mxu0 %v5988
        %v6112 = vpop.f32.mrb[0].mxu0
        %v6113 = vadd.f32 0.0, %v6112
        %v6114 = vpop.f32.mrb[0].mxu0
        %v6115 = vpop.f32.mrb[0].mxu0
        %v6116 = vadd.f32 0.0, %v6115
        %v6117 = vpop.f32.mrb[0].mxu0
        %6118 = vmatprep.mubr.bf16.mxu0 0
        %6119 = vmatmul.mubr.bf16.gmra.mrb[0].mxu0 %v5991
        %v6120 = vpop.f32.mrb[0].mxu0
        %v6121 = vadd.f32 0.0, %v6120
        %v6122 = vpop.f32.mrb[0].mxu0
        %v6123 = vpop.f32.mrb[0].mxu0
        %v6124 = vadd.f32 0.0, %v6123
        %v6125 = vpop.f32.mrb[0].mxu0
        %6126 = vmatprep.mubr.bf16.mxu0 0
        %6127 = vmatmul.mubr.bf16.gmra.mrb[0].mxu0 %v5994
        %v6128 = vpop.f32.mrb[0].mxu0
        %v6129 = vadd.f32 0.0, %v6128
        %v6130 = vpop.f32.mrb[0].mxu0
        %v6131 = vpop.f32.mrb[0].mxu0
        %v6132 = vadd.f32 0.0, %v6131
        %v6133 = vpop.f32.mrb[0].mxu0
        %6134 = vmatprep.mubr.bf16.mxu0 0
        %6135 = vmatmul.mubr.bf16.gmra.mrb[0].mxu0 %v5997
        %v6136 = vpop.f32.mrb[0].mxu0
        %v6137 = vadd.f32 0.0, %v6136
        %v6138 = vpop.f32.mrb[0].mxu0
        %v6139 = vpop.f32.mrb[0].mxu0
        %v6140 = vadd.f32 0.0, %v6139
        %v6141 = vpop.f32.mrb[0].mxu0
        %6142 = vmatprep.mubr.bf16.mxu0 0
        %6143 = vmatmul.mubr.bf16.gmra.mrb[0].mxu0 %v6000
        %v6144 = vpop.f32.mrb[0].mxu0
        %v6145 = vadd.f32 0.0, %v6144
        %v6146 = vpop.f32.mrb[0].mxu0
        %v6147 = vpop.f32.mrb[0].mxu0
        %v6148 = vadd.f32 0.0, %v6147
        %v6149 = vpop.f32.mrb[0].mxu0
        %6150 = vmatprep.mubr.bf16.mxu0 0
        %6151 = vmatmul.mubr.bf16.gmra.mrb[0].mxu0 %v6003
        %v6152 = vpop.f32.mrb[0].mxu0
        %v6153 = vadd.f32 0.0, %v6152
        %v6154 = vpop.f32.mrb[0].mxu0
        %v6155 = vpop.f32.mrb[0].mxu0
        %v6156 = vadd.f32 0.0, %v6155
        %v6157 = vpop.f32.mrb[0].mxu0
        %6158 = vmatprep.mubr.bf16.mxu0 0
        %6159 = vmatmul.mubr.bf16.gmra.mrb[0].mxu0 %v6006
        %v6160 = vpop.f32.mrb[0].mxu0
        %v6161 = vadd.f32 0.0, %v6160
        %v6162 = vpop.f32.mrb[0].mxu0
        %v6163 = vpop.f32.mrb[0].mxu0
        %v6164 = vadd.f32 0.0, %v6163
        %v6165 = vpop.f32.mrb[0].mxu0
        %6166 = vmatprep.mubr.bf16.mxu0 0
        %6167 = vmatmul.mubr.bf16.gmra.mrb[0].mxu0 %v6009
        %v6168 = vpop.f32.mrb[0].mxu0
        %v6169 = vadd.f32 0.0, %v6168
        %v6170 = vpop.f32.mrb[0].mxu0
        %v6171 = vpop.f32.mrb[0].mxu0
        %v6172 = vadd.f32 0.0, %v6171
        %v6173 = vpop.f32.mrb[0].mxu0
        %6174 = vdwg.mxu0
        %v6175 = vadd.f32 %v5705, %v6049
        %v6176 = vadd.f32 %v5706, %v6052
        %v6177 = vadd.f32 %v5707, %v6057
        %v6178 = vadd.f32 %v5708, %v6060
        %v6179 = vadd.f32 %v5709, %v6065
        %v6180 = vadd.f32 %v5710, %v6068
        %v6181 = vadd.f32 %v5711, %v6073
        %v6182 = vadd.f32 %v5712, %v6076
        %v6183 = vadd.f32 %v5713, %v6081
        %v6184 = vadd.f32 %v5714, %v6084
        %v6185 = vadd.f32 %v5715, %v6089
        %v6186 = vadd.f32 %v5716, %v6092
        %v6187 = vadd.f32 %v5717, %v6097
        %v6188 = vadd.f32 %v5718, %v6100
        %v6189 = vadd.f32 %v5719, %v6105
        %v6190 = vadd.f32 %v5720, %v6108
        %v6191 = vadd.f32 %v5721, %v6113
        %v6192 = vadd.f32 %v5722, %v6116
        %v6193 = vadd.f32 %v5723, %v6121
        %v6194 = vadd.f32 %v5724, %v6124
        %v6195 = vadd.f32 %v5725, %v6129
        %v6196 = vadd.f32 %v5726, %v6132
        %v6197 = vadd.f32 %v5727, %v6137
        %v6198 = vadd.f32 %v5728, %v6140
        %v6199 = vadd.f32 %v5729, %v6145
        %v6200 = vadd.f32 %v5730, %v6148
        %v6201 = vadd.f32 %v5731, %v6153
        %v6202 = vadd.f32 %v5732, %v6156
        %v6203 = vadd.f32 %v5733, %v6161
        %v6204 = vadd.f32 %v5734, %v6164
        %v6205 = vadd.f32 %v5735, %v6169
        %v6206 = vadd.f32 %v5736, %v6172
        %v6207 = vld [vmem:[#allocation12] sm:$0x1]
        %v6209 = vlaneseq
        %v6210 = vshrl.u32 %v6209, 7
        %v6211 = vsub.s32 0, %v6210
        %v6212 = vrot.slane %v6207, %v6211
        %v6214 = vmul.f32 %v6175, %v6212
        %v6215 = vmul.f32 %v6176, %v6212
        %v6216 = vmul.f32 %v6177, %v6212
        %v6217 = vmul.f32 %v6178, %v6212
        %v6218 = vmul.f32 %v6179, %v6212
        %v6219 = vmul.f32 %v6180, %v6212
        %v6220 = vmul.f32 %v6181, %v6212
        %v6221 = vmul.f32 %v6182, %v6212
        %v6222 = vmul.f32 %v6183, %v6212
        %v6223 = vmul.f32 %v6184, %v6212
        %v6224 = vmul.f32 %v6185, %v6212
        %v6225 = vmul.f32 %v6186, %v6212
        %v6226 = vmul.f32 %v6187, %v6212
        %v6227 = vmul.f32 %v6188, %v6212
        %v6228 = vmul.f32 %v6189, %v6212
        %v6229 = vmul.f32 %v6190, %v6212
        %v6230 = vmul.f32 %v6191, %v6212
        %v6231 = vmul.f32 %v6192, %v6212
        %v6232 = vmul.f32 %v6193, %v6212
        %v6233 = vmul.f32 %v6194, %v6212
        %v6234 = vmul.f32 %v6195, %v6212
        %v6235 = vmul.f32 %v6196, %v6212
        %v6236 = vmul.f32 %v6197, %v6212
        %v6237 = vmul.f32 %v6198, %v6212
        %v6238 = vmul.f32 %v6199, %v6212
        %v6239 = vmul.f32 %v6200, %v6212
        %v6240 = vmul.f32 %v6201, %v6212
        %v6241 = vmul.f32 %v6202, %v6212
        %v6242 = vmul.f32 %v6203, %v6212
        %v6243 = vmul.f32 %v6204, %v6212
        %v6244 = vmul.f32 %v6205, %v6212
        %v6245 = vmul.f32 %v6206, %v6212
        %v6246 = vld [vmem:[#allocation14] sm:$0x1]
        %v6248 = vlaneseq
        %v6249 = vshrl.u32 %v6248, 7
        %v6250 = vsub.s32 0, %v6249
        %v6251 = vrot.slane %v6246, %v6250
        %v6253 = vadd.f32 %v6214, %v6251
        %v6254 = vadd.f32 %v6215, %v6251
        %v6255 = vadd.f32 %v6216, %v6251
        %v6256 = vadd.f32 %v6217, %v6251
        %v6257 = vadd.f32 %v6218, %v6251
        %v6258 = vadd.f32 %v6219, %v6251
        %v6259 = vadd.f32 %v6220, %v6251
        %v6260 = vadd.f32 %v6221, %v6251
        %v6261 = vadd.f32 %v6222, %v6251
        %v6262 = vadd.f32 %v6223, %v6251
        %v6263 = vadd.f32 %v6224, %v6251
        %v6264 = vadd.f32 %v6225, %v6251
        %v6265 = vadd.f32 %v6226, %v6251
        %v6266 = vadd.f32 %v6227, %v6251
        %v6267 = vadd.f32 %v6228, %v6251
        %v6268 = vadd.f32 %v6229, %v6251
        %v6269 = vadd.f32 %v6230, %v6251
        %v6270 = vadd.f32 %v6231, %v6251
        %v6271 = vadd.f32 %v6232, %v6251
        %v6272 = vadd.f32 %v6233, %v6251
        %v6273 = vadd.f32 %v6234, %v6251
        %v6274 = vadd.f32 %v6235, %v6251
        %v6275 = vadd.f32 %v6236, %v6251
        %v6276 = vadd.f32 %v6237, %v6251
        %v6277 = vadd.f32 %v6238, %v6251
        %v6278 = vadd.f32 %v6239, %v6251
        %v6279 = vadd.f32 %v6240, %v6251
        %v6280 = vadd.f32 %v6241, %v6251
        %v6281 = vadd.f32 %v6242, %v6251
        %v6282 = vadd.f32 %v6243, %v6251
        %v6283 = vadd.f32 %v6244, %v6251
        %v6284 = vadd.f32 %v6245, %v6251
        %v6285 = vmax.f32 %v6253, 0.0
        %v6286 = vmax.f32 %v6254, 0.0
        %v6287 = vmax.f32 %v6255, 0.0
        %v6288 = vmax.f32 %v6256, 0.0
        %v6289 = vmax.f32 %v6257, 0.0
        %v6290 = vmax.f32 %v6258, 0.0
        %v6291 = vmax.f32 %v6259, 0.0
        %v6292 = vmax.f32 %v6260, 0.0
        %v6293 = vmax.f32 %v6261, 0.0
        %v6294 = vmax.f32 %v6262, 0.0
        %v6295 = vmax.f32 %v6263, 0.0
        %v6296 = vmax.f32 %v6264, 0.0
        %v6297 = vmax.f32 %v6265, 0.0
        %v6298 = vmax.f32 %v6266, 0.0
        %v6299 = vmax.f32 %v6267, 0.0
        %v6300 = vmax.f32 %v6268, 0.0
        %v6301 = vmax.f32 %v6269, 0.0
        %v6302 = vmax.f32 %v6270, 0.0
        %v6303 = vmax.f32 %v6271, 0.0
        %v6304 = vmax.f32 %v6272, 0.0
        %v6305 = vmax.f32 %v6273, 0.0
        %v6306 = vmax.f32 %v6274, 0.0
        %v6307 = vmax.f32 %v6275, 0.0
        %v6308 = vmax.f32 %v6276, 0.0
        %v6309 = vmax.f32 %v6277, 0.0
        %v6310 = vmax.f32 %v6278, 0.0
        %v6311 = vmax.f32 %v6279, 0.0
        %v6312 = vmax.f32 %v6280, 0.0
        %v6313 = vmax.f32 %v6281, 0.0
        %v6314 = vmax.f32 %v6282, 0.0
        %v6315 = vmax.f32 %v6283, 0.0
        %v6316 = vmax.f32 %v6284, 0.0
        %v6317 = vpack.c.bf16 %v6286, %v6285
        %v6318 = vpack.c.bf16 %v6288, %v6287
        %v6319 = vpack.c.bf16 %v6290, %v6289
        %v6320 = vpack.c.bf16 %v6292, %v6291
        %v6321 = vpack.c.bf16 %v6294, %v6293
        %v6322 = vpack.c.bf16 %v6296, %v6295
        %v6323 = vpack.c.bf16 %v6298, %v6297
        %v6324 = vpack.c.bf16 %v6300, %v6299
        %v6325 = vpack.c.bf16 %v6302, %v6301
        %v6326 = vpack.c.bf16 %v6304, %v6303
        %v6327 = vpack.c.bf16 %v6306, %v6305
        %v6328 = vpack.c.bf16 %v6308, %v6307
        %v6329 = vpack.c.bf16 %v6310, %v6309
        %v6330 = vpack.c.bf16 %v6312, %v6311
        %v6331 = vpack.c.bf16 %v6314, %v6313
        %v6332 = vpack.c.bf16 %v6316, %v6315
        %v6333 = vld [vmem:[#allocation15] sm:$0xf]
        %v6335 = vsel %vm2135, %v6317, 0
        %v6338 = vsel %vm2135, %v6318, 0
        %v6341 = vsel %vm2135, %v6319, 0
        %v6344 = vsel %vm2135, %v6320, 0
        %v6347 = vsel %vm2135, %v6321, 0
        %v6350 = vsel %vm2135, %v6322, 0
        %v6353 = vsel %vm2135, %v6323, 0
        %v6356 = vsel %vm2135, %v6324, 0
        %v6359 = vsel %vm2135, %v6325, 0
        %v6362 = vsel %vm2135, %v6326, 0
        %v6365 = vsel %vm2135, %v6327, 0
        %v6368 = vsel %vm2135, %v6328, 0
        %v6371 = vsel %vm2135, %v6329, 0
        %v6374 = vsel %vm2135, %v6330, 0
        %v6377 = vsel %vm2135, %v6331, 0
        %v6380 = vsel %vm2135, %v6332, 0
        %v6383 = vsel %vm2184, %v6333, 0
        %6385 = vmatprep.subr.bf16.mxu0 0
        %6386 = vmatpush1.bf16.msra.mxu0 %v6383
        %6387 = vmatprep.subr.bf16.mxu0 0
        %6388 = vmatpush1.bf16.msra.mxu0 0
        %6389 = vmatprep.subr.bf16.mxu0 0
        %6390 = vmatpush1.bf16.msra.mxu0 0
        %6391 = vmatprep.subr.bf16.mxu0 0
        %6392 = vmatpush1.bf16.msra.mxu0 0
        %6393 = vmatprep.subr.bf16.mxu0 0
        %6394 = vmatpush1.bf16.msra.mxu0 0
        %6395 = vmatprep.subr.bf16.mxu0 0
        %6396 = vmatpush1.bf16.msra.mxu0 0
        %6397 = vmatprep.subr.bf16.mxu0 0
        %6398 = vmatpush1.bf16.msra.mxu0 0
        %6399 = vmatprep.subr.bf16.mxu0 0
        %6400 = vmatpush1.bf16.msra.mxu0 0
        %6401 = vmatprep.subr.bf16.mxu0 0
        %6402 = vmatpush1.bf16.msra.mxu0 0
        %6403 = vmatprep.subr.bf16.mxu0 0
        %6404 = vmatpush1.bf16.msra.mxu0 0
        %6405 = vmatprep.subr.bf16.mxu0 0
        %6406 = vmatpush1.bf16.msra.mxu0 0
        %6407 = vmatprep.subr.bf16.mxu0 0
        %6408 = vmatpush1.bf16.msra.mxu0 0
        %6409 = vmatprep.subr.bf16.mxu0 0
        %6410 = vmatpush1.bf16.msra.mxu0 0
        %6411 = vmatprep.subr.bf16.mxu0 0
        %6412 = vmatpush1.bf16.msra.mxu0 0
        %6413 = vmatprep.subr.bf16.mxu0 0
        %6414 = vmatpush1.bf16.msra.mxu0 0
        %6415 = vmatprep.subr.bf16.mxu0 0
        %6416 = vmatpush1.bf16.msra.mxu0 0
        %6417 = vmatprep.mubr.bf16.mxu0 0
        %6418 = vmatmul.mubr.bf16.gmra.mrb[0].mxu0 %v6335
        %v6419 = vpop.f32.mrb[0].mxu0
        %v6420 = vadd.f32 0.0, %v6419
        %v6421 = vpop.f32.mrb[0].mxu0
        %v6422 = vpop.f32.mrb[0].mxu0
        %v6423 = vadd.f32 0.0, %v6422
        %v6424 = vpop.f32.mrb[0].mxu0
        %6425 = vmatprep.mubr.bf16.mxu0 0
        %6426 = vmatmul.mubr.bf16.gmra.mrb[0].mxu0 %v6338
        %v6427 = vpop.f32.mrb[0].mxu0
        %v6428 = vadd.f32 0.0, %v6427
        %v6429 = vpop.f32.mrb[0].mxu0
        %v6430 = vpop.f32.mrb[0].mxu0
        %v6431 = vadd.f32 0.0, %v6430
        %v6432 = vpop.f32.mrb[0].mxu0
        %6433 = vmatprep.mubr.bf16.mxu0 0
        %6434 = vmatmul.mubr.bf16.gmra.mrb[0].mxu0 %v6341
        %v6435 = vpop.f32.mrb[0].mxu0
        %v6436 = vadd.f32 0.0, %v6435
        %v6437 = vpop.f32.mrb[0].mxu0
        %v6438 = vpop.f32.mrb[0].mxu0
        %v6439 = vadd.f32 0.0, %v6438
        %v6440 = vpop.f32.mrb[0].mxu0
        %6441 = vmatprep.mubr.bf16.mxu0 0
        %6442 = vmatmul.mubr.bf16.gmra.mrb[0].mxu0 %v6344
        %v6443 = vpop.f32.mrb[0].mxu0
        %v6444 = vadd.f32 0.0, %v6443
        %v6445 = vpop.f32.mrb[0].mxu0
        %v6446 = vpop.f32.mrb[0].mxu0
        %v6447 = vadd.f32 0.0, %v6446
        %v6448 = vpop.f32.mrb[0].mxu0
        %6449 = vmatprep.mubr.bf16.mxu0 0
        %6450 = vmatmul.mubr.bf16.gmra.mrb[0].mxu0 %v6347
        %v6451 = vpop.f32.mrb[0].mxu0
        %v6452 = vadd.f32 0.0, %v6451
        %v6453 = vpop.f32.mrb[0].mxu0
        %v6454 = vpop.f32.mrb[0].mxu0
        %v6455 = vadd.f32 0.0, %v6454
        %v6456 = vpop.f32.mrb[0].mxu0
        %6457 = vmatprep.mubr.bf16.mxu0 0
        %6458 = vmatmul.mubr.bf16.gmra.mrb[0].mxu0 %v6350
        %v6459 = vpop.f32.mrb[0].mxu0
        %v6460 = vadd.f32 0.0, %v6459
        %v6461 = vpop.f32.mrb[0].mxu0
        %v6462 = vpop.f32.mrb[0].mxu0
        %v6463 = vadd.f32 0.0, %v6462
        %v6464 = vpop.f32.mrb[0].mxu0
        %6465 = vmatprep.mubr.bf16.mxu0 0
        %6466 = vmatmul.mubr.bf16.gmra.mrb[0].mxu0 %v6353
        %v6467 = vpop.f32.mrb[0].mxu0
        %v6468 = vadd.f32 0.0, %v6467
        %v6469 = vpop.f32.mrb[0].mxu0
        %v6470 = vpop.f32.mrb[0].mxu0
        %v6471 = vadd.f32 0.0, %v6470
        %v6472 = vpop.f32.mrb[0].mxu0
        %6473 = vmatprep.mubr.bf16.mxu0 0
        %6474 = vmatmul.mubr.bf16.gmra.mrb[0].mxu0 %v6356
        %v6475 = vpop.f32.mrb[0].mxu0
        %v6476 = vadd.f32 0.0, %v6475
        %v6477 = vpop.f32.mrb[0].mxu0
        %v6478 = vpop.f32.mrb[0].mxu0
        %v6479 = vadd.f32 0.0, %v6478
        %v6480 = vpop.f32.mrb[0].mxu0
        %6481 = vmatprep.mubr.bf16.mxu0 0
        %6482 = vmatmul.mubr.bf16.gmra.mrb[0].mxu0 %v6359
        %v6483 = vpop.f32.mrb[0].mxu0
        %v6484 = vadd.f32 0.0, %v6483
        %v6485 = vpop.f32.mrb[0].mxu0
        %v6486 = vpop.f32.mrb[0].mxu0
        %v6487 = vadd.f32 0.0, %v6486
        %v6488 = vpop.f32.mrb[0].mxu0
        %6489 = vmatprep.mubr.bf16.mxu0 0
        %6490 = vmatmul.mubr.bf16.gmra.mrb[0].mxu0 %v6362
        %v6491 = vpop.f32.mrb[0].mxu0
        %v6492 = vadd.f32 0.0, %v6491
        %v6493 = vpop.f32.mrb[0].mxu0
        %v6494 = vpop.f32.mrb[0].mxu0
        %v6495 = vadd.f32 0.0, %v6494
        %v6496 = vpop.f32.mrb[0].mxu0
        %6497 = vmatprep.mubr.bf16.mxu0 0
        %6498 = vmatmul.mubr.bf16.gmra.mrb[0].mxu0 %v6365
        %v6499 = vpop.f32.mrb[0].mxu0
        %v6500 = vadd.f32 0.0, %v6499
        %v6501 = vpop.f32.mrb[0].mxu0
        %v6502 = vpop.f32.mrb[0].mxu0
        %v6503 = vadd.f32 0.0, %v6502
        %v6504 = vpop.f32.mrb[0].mxu0
        %6505 = vmatprep.mubr.bf16.mxu0 0
        %6506 = vmatmul.mubr.bf16.gmra.mrb[0].mxu0 %v6368
        %v6507 = vpop.f32.mrb[0].mxu0
        %v6508 = vadd.f32 0.0, %v6507
        %v6509 = vpop.f32.mrb[0].mxu0
        %v6510 = vpop.f32.mrb[0].mxu0
        %v6511 = vadd.f32 0.0, %v6510
        %v6512 = vpop.f32.mrb[0].mxu0
        %6513 = vmatprep.mubr.bf16.mxu0 0
        %6514 = vmatmul.mubr.bf16.gmra.mrb[0].mxu0 %v6371
        %v6515 = vpop.f32.mrb[0].mxu0
        %v6516 = vadd.f32 0.0, %v6515
        %v6517 = vpop.f32.mrb[0].mxu0
        %v6518 = vpop.f32.mrb[0].mxu0
        %v6519 = vadd.f32 0.0, %v6518
        %v6520 = vpop.f32.mrb[0].mxu0
        %6521 = vmatprep.mubr.bf16.mxu0 0
        %6522 = vmatmul.mubr.bf16.gmra.mrb[0].mxu0 %v6374
        %v6523 = vpop.f32.mrb[0].mxu0
        %v6524 = vadd.f32 0.0, %v6523
        %v6525 = vpop.f32.mrb[0].mxu0
        %v6526 = vpop.f32.mrb[0].mxu0
        %v6527 = vadd.f32 0.0, %v6526
        %v6528 = vpop.f32.mrb[0].mxu0
        %6529 = vmatprep.mubr.bf16.mxu0 0
        %6530 = vmatmul.mubr.bf16.gmra.mrb[0].mxu0 %v6377
        %v6531 = vpop.f32.mrb[0].mxu0
        %v6532 = vadd.f32 0.0, %v6531
        %v6533 = vpop.f32.mrb[0].mxu0
        %v6534 = vpop.f32.mrb[0].mxu0
        %v6535 = vadd.f32 0.0, %v6534
        %v6536 = vpop.f32.mrb[0].mxu0
        %6537 = vmatprep.mubr.bf16.mxu0 0
        %6538 = vmatmul.mubr.bf16.gmra.mrb[0].mxu0 %v6380
        %v6539 = vpop.f32.mrb[0].mxu0
        %v6540 = vadd.f32 0.0, %v6539
        %v6541 = vpop.f32.mrb[0].mxu0
        %v6542 = vpop.f32.mrb[0].mxu0
        %v6543 = vadd.f32 0.0, %v6542
        %v6544 = vpop.f32.mrb[0].mxu0
        %6545 = vdwg.mxu0
        %v6546 = vld [vmem:[#allocation17] sm:$0x1]
        %v6548 = vlaneseq
        %v6549 = vshrl.u32 %v6548, 7
        %v6550 = vsub.s32 0, %v6549
        %v6551 = vrot.slane %v6546, %v6550
        %v6553 = vmul.f32 %v6420, %v6551
        %v6554 = vmul.f32 %v6423, %v6551
        %v6555 = vmul.f32 %v6428, %v6551
        %v6556 = vmul.f32 %v6431, %v6551
        %v6557 = vmul.f32 %v6436, %v6551
        %v6558 = vmul.f32 %v6439, %v6551
        %v6559 = vmul.f32 %v6444, %v6551
        %v6560 = vmul.f32 %v6447, %v6551
        %v6561 = vmul.f32 %v6452, %v6551
        %v6562 = vmul.f32 %v6455, %v6551
        %v6563 = vmul.f32 %v6460, %v6551
        %v6564 = vmul.f32 %v6463, %v6551
        %v6565 = vmul.f32 %v6468, %v6551
        %v6566 = vmul.f32 %v6471, %v6551
        %v6567 = vmul.f32 %v6476, %v6551
        %v6568 = vmul.f32 %v6479, %v6551
        %v6569 = vmul.f32 %v6484, %v6551
        %v6570 = vmul.f32 %v6487, %v6551
        %v6571 = vmul.f32 %v6492, %v6551
        %v6572 = vmul.f32 %v6495, %v6551
        %v6573 = vmul.f32 %v6500, %v6551
        %v6574 = vmul.f32 %v6503, %v6551
        %v6575 = vmul.f32 %v6508, %v6551
        %v6576 = vmul.f32 %v6511, %v6551
        %v6577 = vmul.f32 %v6516, %v6551
        %v6578 = vmul.f32 %v6519, %v6551
        %v6579 = vmul.f32 %v6524, %v6551
        %v6580 = vmul.f32 %v6527, %v6551
        %v6581 = vmul.f32 %v6532, %v6551
        %v6582 = vmul.f32 %v6535, %v6551
        %v6583 = vmul.f32 %v6540, %v6551
        %v6584 = vmul.f32 %v6543, %v6551
        %v6585 = vld [vmem:[#allocation18] sm:$0x1]
        %v6587 = vlaneseq
        %v6588 = vshrl.u32 %v6587, 7
        %v6589 = vsub.s32 0, %v6588
        %v6590 = vrot.slane %v6585, %v6589
        %v6592 = vadd.f32 %v6553, %v6590
        %v6593 = vadd.f32 %v6554, %v6590
        %v6594 = vadd.f32 %v6555, %v6590
        %v6595 = vadd.f32 %v6556, %v6590
        %v6596 = vadd.f32 %v6557, %v6590
        %v6597 = vadd.f32 %v6558, %v6590
        %v6598 = vadd.f32 %v6559, %v6590
        %v6599 = vadd.f32 %v6560, %v6590
        %v6600 = vadd.f32 %v6561, %v6590
        %v6601 = vadd.f32 %v6562, %v6590
        %v6602 = vadd.f32 %v6563, %v6590
        %v6603 = vadd.f32 %v6564, %v6590
        %v6604 = vadd.f32 %v6565, %v6590
        %v6605 = vadd.f32 %v6566, %v6590
        %v6606 = vadd.f32 %v6567, %v6590
        %v6607 = vadd.f32 %v6568, %v6590
        %v6608 = vadd.f32 %v6569, %v6590
        %v6609 = vadd.f32 %v6570, %v6590
        %v6610 = vadd.f32 %v6571, %v6590
        %v6611 = vadd.f32 %v6572, %v6590
        %v6612 = vadd.f32 %v6573, %v6590
        %v6613 = vadd.f32 %v6574, %v6590
        %v6614 = vadd.f32 %v6575, %v6590
        %v6615 = vadd.f32 %v6576, %v6590
        %v6616 = vadd.f32 %v6577, %v6590
        %v6617 = vadd.f32 %v6578, %v6590
        %v6618 = vadd.f32 %v6579, %v6590
        %v6619 = vadd.f32 %v6580, %v6590
        %v6620 = vadd.f32 %v6581, %v6590
        %v6621 = vadd.f32 %v6582, %v6590
        %v6622 = vadd.f32 %v6583, %v6590
        %v6623 = vadd.f32 %v6584, %v6590
        %v6624 = vld [vmem:[#allocation20] sm:$0xf]
        %v6625 = vld [vmem:[#allocation20 + $0x4] sm:$0xf]
        %v6628 = vunpack.c.l.b16 %v6624
        %v6629 = vunpack.c.l.b16 %v6625
        %v6630 = vpack.c.b16 %v6629, %v6628
        %6632 = vmatprep.subr.bf16.mxu0 0
        %6633 = vmatpush1.bf16.msra.mxu0 %v6630
        %6634 = vmatprep.subr.bf16.mxu0 0
        %6635 = vmatpush1.bf16.msra.mxu0 0
        %6636 = vmatprep.subr.bf16.mxu0 0
        %6637 = vmatpush1.bf16.msra.mxu0 0
        %6638 = vmatprep.subr.bf16.mxu0 0
        %6639 = vmatpush1.bf16.msra.mxu0 0
        %6640 = vmatprep.subr.bf16.mxu0 0
        %6641 = vmatpush1.bf16.msra.mxu0 0
        %6642 = vmatprep.subr.bf16.mxu0 0
        %6643 = vmatpush1.bf16.msra.mxu0 0
        %6644 = vmatprep.subr.bf16.mxu0 0
        %6645 = vmatpush1.bf16.msra.mxu0 0
        %6646 = vmatprep.subr.bf16.mxu0 0
        %6647 = vmatpush1.bf16.msra.mxu0 0
        %6648 = vmatprep.subr.bf16.mxu0 0
        %6649 = vmatpush1.bf16.msra.mxu0 0
        %6650 = vmatprep.subr.bf16.mxu0 0
        %6651 = vmatpush1.bf16.msra.mxu0 0
        %6652 = vmatprep.subr.bf16.mxu0 0
        %6653 = vmatpush1.bf16.msra.mxu0 0
        %6654 = vmatprep.subr.bf16.mxu0 0
        %6655 = vmatpush1.bf16.msra.mxu0 0
        %6656 = vmatprep.subr.bf16.mxu0 0
        %6657 = vmatpush1.bf16.msra.mxu0 0
        %6658 = vmatprep.subr.bf16.mxu0 0
        %6659 = vmatpush1.bf16.msra.mxu0 0
        %6660 = vmatprep.subr.bf16.mxu0 0
        %6661 = vmatpush1.bf16.msra.mxu0 0
        %6662 = vmatprep.subr.bf16.mxu0 0
        %6663 = vmatpush1.bf16.msra.mxu0 0
        %6664 = vmatprep.mubr.bf16.mxu0 0
        %6665 = vmatmul.mubr.bf16.gmra.mrb[0].mxu0 %v738
        %v6666 = vpop.f32.mrb[0].mxu0
        %v6667 = vadd.f32 0.0, %v6666
        %v6668 = vpop.f32.mrb[0].mxu0
        %v6669 = vpop.f32.mrb[0].mxu0
        %v6670 = vadd.f32 0.0, %v6669
        %v6671 = vpop.f32.mrb[0].mxu0
        %6672 = vmatprep.mubr.bf16.mxu0 0
        %6673 = vmatmul.mubr.bf16.gmra.mrb[0].mxu0 %v741
        %v6674 = vpop.f32.mrb[0].mxu0
        %v6675 = vadd.f32 0.0, %v6674
        %v6676 = vpop.f32.mrb[0].mxu0
        %v6677 = vpop.f32.mrb[0].mxu0
        %v6678 = vadd.f32 0.0, %v6677
        %v6679 = vpop.f32.mrb[0].mxu0
        %6680 = vmatprep.mubr.bf16.mxu0 0
        %6681 = vmatmul.mubr.bf16.gmra.mrb[0].mxu0 %v744
        %v6682 = vpop.f32.mrb[0].mxu0
        %v6683 = vadd.f32 0.0, %v6682
        %v6684 = vpop.f32.mrb[0].mxu0
        %v6685 = vpop.f32.mrb[0].mxu0
        %v6686 = vadd.f32 0.0, %v6685
        %v6687 = vpop.f32.mrb[0].mxu0
        %6688 = vmatprep.mubr.bf16.mxu0 0
        %6689 = vmatmul.mubr.bf16.gmra.mrb[0].mxu0 %v747
        %v6690 = vpop.f32.mrb[0].mxu0
        %v6691 = vadd.f32 0.0, %v6690
        %v6692 = vpop.f32.mrb[0].mxu0
        %v6693 = vpop.f32.mrb[0].mxu0
        %v6694 = vadd.f32 0.0, %v6693
        %v6695 = vpop.f32.mrb[0].mxu0
        %6696 = vmatprep.mubr.bf16.mxu0 0
        %6697 = vmatmul.mubr.bf16.gmra.mrb[0].mxu0 %v750
        %v6698 = vpop.f32.mrb[0].mxu0
        %v6699 = vadd.f32 0.0, %v6698
        %v6700 = vpop.f32.mrb[0].mxu0
        %v6701 = vpop.f32.mrb[0].mxu0
        %v6702 = vadd.f32 0.0, %v6701
        %v6703 = vpop.f32.mrb[0].mxu0
        %6704 = vmatprep.mubr.bf16.mxu0 0
        %6705 = vmatmul.mubr.bf16.gmra.mrb[0].mxu0 %v753
        %v6706 = vpop.f32.mrb[0].mxu0
        %v6707 = vadd.f32 0.0, %v6706
        %v6708 = vpop.f32.mrb[0].mxu0
        %v6709 = vpop.f32.mrb[0].mxu0
        %v6710 = vadd.f32 0.0, %v6709
        %v6711 = vpop.f32.mrb[0].mxu0
        %6712 = vmatprep.mubr.bf16.mxu0 0
        %6713 = vmatmul.mubr.bf16.gmra.mrb[0].mxu0 %v756
        %v6714 = vpop.f32.mrb[0].mxu0
        %v6715 = vadd.f32 0.0, %v6714
        %v6716 = vpop.f32.mrb[0].mxu0
        %v6717 = vpop.f32.mrb[0].mxu0
        %v6718 = vadd.f32 0.0, %v6717
        %v6719 = vpop.f32.mrb[0].mxu0
        %6720 = vmatprep.mubr.bf16.mxu0 0
        %6721 = vmatmul.mubr.bf16.gmra.mrb[0].mxu0 %v759
        %v6722 = vpop.f32.mrb[0].mxu0
        %v6723 = vadd.f32 0.0, %v6722
        %v6724 = vpop.f32.mrb[0].mxu0
        %v6725 = vpop.f32.mrb[0].mxu0
        %v6726 = vadd.f32 0.0, %v6725
        %v6727 = vpop.f32.mrb[0].mxu0
        %6728 = vmatprep.mubr.bf16.mxu0 0
        %6729 = vmatmul.mubr.bf16.gmra.mrb[0].mxu0 %v762
        %v6730 = vpop.f32.mrb[0].mxu0
        %v6731 = vadd.f32 0.0, %v6730
        %v6732 = vpop.f32.mrb[0].mxu0
        %v6733 = vpop.f32.mrb[0].mxu0
        %v6734 = vadd.f32 0.0, %v6733
        %v6735 = vpop.f32.mrb[0].mxu0
        %6736 = vmatprep.mubr.bf16.mxu0 0
        %6737 = vmatmul.mubr.bf16.gmra.mrb[0].mxu0 %v765
        %v6738 = vpop.f32.mrb[0].mxu0
        %v6739 = vadd.f32 0.0, %v6738
        %v6740 = vpop.f32.mrb[0].mxu0
        %v6741 = vpop.f32.mrb[0].mxu0
        %v6742 = vadd.f32 0.0, %v6741
        %v6743 = vpop.f32.mrb[0].mxu0
        %6744 = vmatprep.mubr.bf16.mxu0 0
        %6745 = vmatmul.mubr.bf16.gmra.mrb[0].mxu0 %v768
        %v6746 = vpop.f32.mrb[0].mxu0
        %v6747 = vadd.f32 0.0, %v6746
        %v6748 = vpop.f32.mrb[0].mxu0
        %v6749 = vpop.f32.mrb[0].mxu0
        %v6750 = vadd.f32 0.0, %v6749
        %v6751 = vpop.f32.mrb[0].mxu0
        %6752 = vmatprep.mubr.bf16.mxu0 0
        %6753 = vmatmul.mubr.bf16.gmra.mrb[0].mxu0 %v771
        %v6754 = vpop.f32.mrb[0].mxu0
        %v6755 = vadd.f32 0.0, %v6754
        %v6756 = vpop.f32.mrb[0].mxu0
        %v6757 = vpop.f32.mrb[0].mxu0
        %v6758 = vadd.f32 0.0, %v6757
        %v6759 = vpop.f32.mrb[0].mxu0
        %6760 = vmatprep.mubr.bf16.mxu0 0
        %6761 = vmatmul.mubr.bf16.gmra.mrb[0].mxu0 %v774
        %v6762 = vpop.f32.mrb[0].mxu0
        %v6763 = vadd.f32 0.0, %v6762
        %v6764 = vpop.f32.mrb[0].mxu0
        %v6765 = vpop.f32.mrb[0].mxu0
        %v6766 = vadd.f32 0.0, %v6765
        %v6767 = vpop.f32.mrb[0].mxu0
        %6768 = vmatprep.mubr.bf16.mxu0 0
        %6769 = vmatmul.mubr.bf16.gmra.mrb[0].mxu0 %v777
        %v6770 = vpop.f32.mrb[0].mxu0
        %v6771 = vadd.f32 0.0, %v6770
        %v6772 = vpop.f32.mrb[0].mxu0
        %v6773 = vpop.f32.mrb[0].mxu0
        %v6774 = vadd.f32 0.0, %v6773
        %v6775 = vpop.f32.mrb[0].mxu0
        %6776 = vmatprep.mubr.bf16.mxu0 0
        %6777 = vmatmul.mubr.bf16.gmra.mrb[0].mxu0 %v780
        %v6778 = vpop.f32.mrb[0].mxu0
        %v6779 = vadd.f32 0.0, %v6778
        %v6780 = vpop.f32.mrb[0].mxu0
        %v6781 = vpop.f32.mrb[0].mxu0
        %v6782 = vadd.f32 0.0, %v6781
        %v6783 = vpop.f32.mrb[0].mxu0
        %6784 = vmatprep.mubr.bf16.mxu0 0
        %6785 = vmatmul.mubr.bf16.gmra.mrb[0].mxu0 %v783
        %v6786 = vpop.f32.mrb[0].mxu0
        %v6787 = vadd.f32 0.0, %v6786
        %v6788 = vpop.f32.mrb[0].mxu0
        %v6789 = vpop.f32.mrb[0].mxu0
        %v6790 = vadd.f32 0.0, %v6789
        %v6791 = vpop.f32.mrb[0].mxu0
        %6792 = vdwg.mxu0
        %v6793 = vld [vmem:[#allocation21] sm:$0x1]
        %v6795 = vlaneseq
        %v6796 = vshrl.u32 %v6795, 7
        %v6797 = vsub.s32 0, %v6796
        %v6798 = vrot.slane %v6793, %v6797
        %v6800 = vmul.f32 %v6667, %v6798
        %v6801 = vmul.f32 %v6670, %v6798
        %v6802 = vmul.f32 %v6675, %v6798
        %v6803 = vmul.f32 %v6678, %v6798
        %v6804 = vmul.f32 %v6683, %v6798
        %v6805 = vmul.f32 %v6686, %v6798
        %v6806 = vmul.f32 %v6691, %v6798
        %v6807 = vmul.f32 %v6694, %v6798
        %v6808 = vmul.f32 %v6699, %v6798
        %v6809 = vmul.f32 %v6702, %v6798
        %v6810 = vmul.f32 %v6707, %v6798
        %v6811 = vmul.f32 %v6710, %v6798
        %v6812 = vmul.f32 %v6715, %v6798
        %v6813 = vmul.f32 %v6718, %v6798
        %v6814 = vmul.f32 %v6723, %v6798
        %v6815 = vmul.f32 %v6726, %v6798
        %v6816 = vmul.f32 %v6731, %v6798
        %v6817 = vmul.f32 %v6734, %v6798
        %v6818 = vmul.f32 %v6739, %v6798
        %v6819 = vmul.f32 %v6742, %v6798
        %v6820 = vmul.f32 %v6747, %v6798
        %v6821 = vmul.f32 %v6750, %v6798
        %v6822 = vmul.f32 %v6755, %v6798
        %v6823 = vmul.f32 %v6758, %v6798
        %v6824 = vmul.f32 %v6763, %v6798
        %v6825 = vmul.f32 %v6766, %v6798
        %v6826 = vmul.f32 %v6771, %v6798
        %v6827 = vmul.f32 %v6774, %v6798
        %v6828 = vmul.f32 %v6779, %v6798
        %v6829 = vmul.f32 %v6782, %v6798
        %v6830 = vmul.f32 %v6787, %v6798
        %v6831 = vmul.f32 %v6790, %v6798
        %v6832 = vld [vmem:[#allocation23] sm:$0x1]
        %v6834 = vlaneseq
        %v6835 = vshrl.u32 %v6834, 7
        %v6836 = vsub.s32 0, %v6835
        %v6837 = vrot.slane %v6832, %v6836
        %v6839 = vadd.f32 %v6800, %v6837
        %v6840 = vadd.f32 %v6801, %v6837
        %v6841 = vadd.f32 %v6802, %v6837
        %v6842 = vadd.f32 %v6803, %v6837
        %v6843 = vadd.f32 %v6804, %v6837
        %v6844 = vadd.f32 %v6805, %v6837
        %v6845 = vadd.f32 %v6806, %v6837
        %v6846 = vadd.f32 %v6807, %v6837
        %v6847 = vadd.f32 %v6808, %v6837
        %v6848 = vadd.f32 %v6809, %v6837
        %v6849 = vadd.f32 %v6810, %v6837
        %v6850 = vadd.f32 %v6811, %v6837
        %v6851 = vadd.f32 %v6812, %v6837
        %v6852 = vadd.f32 %v6813, %v6837
        %v6853 = vadd.f32 %v6814, %v6837
        %v6854 = vadd.f32 %v6815, %v6837
        %v6855 = vadd.f32 %v6816, %v6837
        %v6856 = vadd.f32 %v6817, %v6837
        %v6857 = vadd.f32 %v6818, %v6837
        %v6858 = vadd.f32 %v6819, %v6837
        %v6859 = vadd.f32 %v6820, %v6837
        %v6860 = vadd.f32 %v6821, %v6837
        %v6861 = vadd.f32 %v6822, %v6837
        %v6862 = vadd.f32 %v6823, %v6837
        %v6863 = vadd.f32 %v6824, %v6837
        %v6864 = vadd.f32 %v6825, %v6837
        %v6865 = vadd.f32 %v6826, %v6837
        %v6866 = vadd.f32 %v6827, %v6837
        %v6867 = vadd.f32 %v6828, %v6837
        %v6868 = vadd.f32 %v6829, %v6837
        %v6869 = vadd.f32 %v6830, %v6837
        %v6870 = vadd.f32 %v6831, %v6837
        %v6871 = vadd.f32 %v6592, %v6839
        %v6872 = vadd.f32 %v6593, %v6840
        %v6873 = vadd.f32 %v6594, %v6841
        %v6874 = vadd.f32 %v6595, %v6842
        %v6875 = vadd.f32 %v6596, %v6843
        %v6876 = vadd.f32 %v6597, %v6844
        %v6877 = vadd.f32 %v6598, %v6845
        %v6878 = vadd.f32 %v6599, %v6846
        %v6879 = vadd.f32 %v6600, %v6847
        %v6880 = vadd.f32 %v6601, %v6848
        %v6881 = vadd.f32 %v6602, %v6849
        %v6882 = vadd.f32 %v6603, %v6850
        %v6883 = vadd.f32 %v6604, %v6851
        %v6884 = vadd.f32 %v6605, %v6852
        %v6885 = vadd.f32 %v6606, %v6853
        %v6886 = vadd.f32 %v6607, %v6854
        %v6887 = vadd.f32 %v6608, %v6855
        %v6888 = vadd.f32 %v6609, %v6856
        %v6889 = vadd.f32 %v6610, %v6857
        %v6890 = vadd.f32 %v6611, %v6858
        %v6891 = vadd.f32 %v6612, %v6859
        %v6892 = vadd.f32 %v6613, %v6860
        %v6893 = vadd.f32 %v6614, %v6861
        %v6894 = vadd.f32 %v6615, %v6862
        %v6895 = vadd.f32 %v6616, %v6863
        %v6896 = vadd.f32 %v6617, %v6864
        %v6897 = vadd.f32 %v6618, %v6865
        %v6898 = vadd.f32 %v6619, %v6866
        %v6899 = vadd.f32 %v6620, %v6867
        %v6900 = vadd.f32 %v6621, %v6868
        %v6901 = vadd.f32 %v6622, %v6869
        %v6902 = vadd.f32 %v6623, %v6870
        %v6903 = vmax.f32 %v6871, 0.0
        %v6904 = vmax.f32 %v6872, 0.0
        %v6905 = vmax.f32 %v6873, 0.0
        %v6906 = vmax.f32 %v6874, 0.0
        %v6907 = vmax.f32 %v6875, 0.0
        %v6908 = vmax.f32 %v6876, 0.0
        %v6909 = vmax.f32 %v6877, 0.0
        %v6910 = vmax.f32 %v6878, 0.0
        %v6911 = vmax.f32 %v6879, 0.0
        %v6912 = vmax.f32 %v6880, 0.0
        %v6913 = vmax.f32 %v6881, 0.0
        %v6914 = vmax.f32 %v6882, 0.0
        %v6915 = vmax.f32 %v6883, 0.0
        %v6916 = vmax.f32 %v6884, 0.0
        %v6917 = vmax.f32 %v6885, 0.0
        %v6918 = vmax.f32 %v6886, 0.0
        %v6919 = vmax.f32 %v6887, 0.0
        %v6920 = vmax.f32 %v6888, 0.0
        %v6921 = vmax.f32 %v6889, 0.0
        %v6922 = vmax.f32 %v6890, 0.0
        %v6923 = vmax.f32 %v6891, 0.0
        %v6924 = vmax.f32 %v6892, 0.0
        %v6925 = vmax.f32 %v6893, 0.0
        %v6926 = vmax.f32 %v6894, 0.0
        %v6927 = vmax.f32 %v6895, 0.0
        %v6928 = vmax.f32 %v6896, 0.0
        %v6929 = vmax.f32 %v6897, 0.0
        %v6930 = vmax.f32 %v6898, 0.0
        %v6931 = vmax.f32 %v6899, 0.0
        %v6932 = vmax.f32 %v6900, 0.0
        %v6933 = vmax.f32 %v6901, 0.0
        %v6934 = vmax.f32 %v6902, 0.0
        %vm6935 = vcmask 261120
        %6936 = vst.msk [vmem:[%s614] sm:$0xff] %vm6935, %v6903
        %6937 = vst.msk [vmem:[%s614 + $0x8] sm:$0xff] %vm6935, %v6904
        %6938 = vst.msk [vmem:[%s614 + $0x10] sm:$0xff] %vm6935, %v6905
        %6939 = vst.msk [vmem:[%s614 + $0x18] sm:$0xff] %vm6935, %v6906
        %6940 = vst.msk [vmem:[%s614 + $0x20] sm:$0xff] %vm6935, %v6907
        %6941 = vst.msk [vmem:[%s614 + $0x28] sm:$0xff] %vm6935, %v6908
        %6942 = vst.msk [vmem:[%s614 + $0x30] sm:$0xff] %vm6935, %v6909
        %6943 = vst.msk [vmem:[%s614 + $0x38] sm:$0xff] %vm6935, %v6910
        %6944 = vst.msk [vmem:[%s614 + $0x40] sm:$0xff] %vm6935, %v6911
        %6945 = vst.msk [vmem:[%s614 + $0x48] sm:$0xff] %vm6935, %v6912
        %6946 = vst.msk [vmem:[%s614 + $0x50] sm:$0xff] %vm6935, %v6913
        %6947 = vst.msk [vmem:[%s614 + $0x58] sm:$0xff] %vm6935, %v6914
        %6948 = vst.msk [vmem:[%s614 + $0x60] sm:$0xff] %vm6935, %v6915
        %6949 = vst.msk [vmem:[%s614 + $0x68] sm:$0xff] %vm6935, %v6916
        %6950 = vst.msk [vmem:[%s614 + $0x70] sm:$0xff] %vm6935, %v6917
        %6951 = vst.msk [vmem:[%s614 + $0x78] sm:$0xff] %vm6935, %v6918
        %6952 = vst.msk [vmem:[%s614 + $0x80] sm:$0xff] %vm6935, %v6919
        %6953 = vst.msk [vmem:[%s614 + $0x88] sm:$0xff] %vm6935, %v6920
        %6954 = vst.msk [vmem:[%s614 + $0x90] sm:$0xff] %vm6935, %v6921
        %6955 = vst.msk [vmem:[%s614 + $0x98] sm:$0xff] %vm6935, %v6922
        %6956 = vst.msk [vmem:[%s614 + $0xa0] sm:$0xff] %vm6935, %v6923
        %6957 = vst.msk [vmem:[%s614 + $0xa8] sm:$0xff] %vm6935, %v6924
        %6958 = vst.msk [vmem:[%s614 + $0xb0] sm:$0xff] %vm6935, %v6925
        %6959 = vst.msk [vmem:[%s614 + $0xb8] sm:$0xff] %vm6935, %v6926
        %6960 = vst.msk [vmem:[%s614 + $0xc0] sm:$0xff] %vm6935, %v6927
        %6961 = vst.msk [vmem:[%s614 + $0xc8] sm:$0xff] %vm6935, %v6928
        %6962 = vst.msk [vmem:[%s614 + $0xd0] sm:$0xff] %vm6935, %v6929
        %6963 = vst.msk [vmem:[%s614 + $0xd8] sm:$0xff] %vm6935, %v6930
        %6964 = vst.msk [vmem:[%s614 + $0xe0] sm:$0xff] %vm6935, %v6931
        %6965 = vst.msk [vmem:[%s614 + $0xe8] sm:$0xff] %vm6935, %v6932
        %6966 = vst.msk [vmem:[%s614 + $0xf0] sm:$0xff] %vm6935, %v6933
        %6967 = vst.msk [vmem:[%s614 + $0xf8] sm:$0xff] %vm6935, %v6934
        %s6968 = sand.u32 %s322, 1
        %s6969 = scalar_lea.sflag [#allocation5], %s6968
        %s6970 = sand.u32 %s322, 1
        %s6971 = smul.addr %s6970, 256
        %s6972 = scalar_lea.vmem [#allocation24], %s6971
        // Predicated region
        $region125: #{tpu_custom_call.1} parent=71 // pred_check
          %p6973 = pneg %p332
        $region126: #{tpu_custom_call.1} parent=71 // pred_check_branch
          %6975 = sbr.rel (%p6973) target = $region128
        $region127: #{tpu_custom_call.1} parent=71 // pred_region
          %s6977 = ssub.s32 4096, 4096
          %6978 = vsyncadd %s6969, %s6977
          %s6979 = smul.addr %s36, 32
          %s6980 = smul.addr %s6979, 128
          %s6981 = scalar_lea.hbm %s13, %s6980
          %s6982 = sshll.u32 %s6972, 4
          %s6983 = int_to_ptr.vmem [resolvable:$true] %s6982
          %6988 = dma.vmem_to_hbm [thread:$0]  %s6983, 4096, %s6981, %s6969, 128, 128, 8
        $region128: #{tpu_custom_call.1} parent=71 // pred_fallthru
          _
      $region72: #{tpu_custom_call.1} parent=5 // pred_fallthru
        _
      %p6989 = scmp.le.s32.totalorder 2, %s31
      // Predicated region
      $region129: #{tpu_custom_call.1} parent=5 // pred_check
        %p6990 = pneg %p6989
      $region130: #{tpu_custom_call.1} parent=5 // pred_check_branch
        %6992 = sbr.rel (%p6990) target = $region132
      $region131: #{tpu_custom_call.1} parent=5 // pred_region
        %s6993 = ssub.s32 %s31, 2
        // Predicated region
        $region133: #{tpu_custom_call.1} parent=131 // pred_check
          %p6994 = pneg %p338
        $region134: #{tpu_custom_call.1} parent=131 // pred_check_branch
          %6996 = sbr.rel (%p6994) target = $region136
        $region135: #{tpu_custom_call.1} parent=131 // pred_region
          %s6997 = sand.u32 %s323, 1
          %s6998 = scalar_lea.sflag [#allocation5], %s6997
          %s6999 = sand.u32 %s323, 1
          %s7000 = smul.addr %s6999, 256
          %s7001 = scalar_lea.vmem [#allocation24], %s7000
          %7002 = dma.done %s6998, 4096
        $region136: #{tpu_custom_call.1} parent=131 // pred_fallthru
          _
      $region132: #{tpu_custom_call.1} parent=5 // pred_fallthru
        _
    $region6: #{tpu_custom_call.1} parent=1 // loop_footer
      %s35 = sadd.s32 1, %s31
    $region7: #{tpu_custom_call.1} parent=1 // loop_footer_branch
      %30 = sbr.rel target = $region3
    $region8: #{tpu_custom_call.1} parent=1 // loop_exit
      _
    %7003 = vsyncpa [#allocation4], 1
    %s7004 = scalar_lea.sflag [#allocation4], 1
    %7005 = vsyncpa %s7004, 1
    %7006 = vsyncpa [#allocation7], 1
    %7007 = vsyncpa [#allocation10], 1
    %7008 = vsyncpa [#allocation13], 1
    %7009 = vsyncpa [#allocation16], 1
    %7010 = vsyncpa [#allocation19], 1
    %7011 = vsyncpa [#allocation22], 1
    %7012 = vsyncpa [#allocation5], 1
    %s7013 = scalar_lea.sflag [#allocation5], 1
    %7014 = vsyncpa %s7013, 1

</llo_original>
